<compile_context>
chip_gen: v7x
topology: tpu7x:2x2x1
jax: 0.10.0
libtpu: 0.0.40
codegen_flags: <defaults>
</compile_context>

<pallas_src>
import functools

import numpy as np
import jax
import jax.numpy as jnp
from jax import lax
from jax.experimental import pallas as pl
from jax.experimental.pallas import tpu as pltpu

KSIZE = 3                 # 3x3 convs, 'same' padding
NTAPS = KSIZE * KSIZE


def _resblock_kernel(x_ref, w1_ref, b1_ref, w2_ref, b2_ref, m_ref, o_ref, *,
                     shifts, res_scale, mxu_dtype):
    # x_ref : (C, L)      input (f32); lanes L = B*H*W (batch folded on lanes)
    # w*_ref: (9, C, C)   per-tap weight matrices (tap, c_out, c_in), mxu_dtype
    # b*_ref: (C, 1)      conv biases (f32)
    # m_ref : (9, 1, L)   per-tap 0/1 border masks, mxu_dtype
    # o_ref : (C, L)      output (f32), full-lane dense store
    # shifts: static tuple of 9 non-negative lane-rotate amounts (0 == center)
    x = x_ref[...]                                        # (C, L) f32

    # Masks are loop-invariant across both convs: load each once.
    masks = [None if s == 0 else m_ref[t] for t, s in enumerate(shifts)]

    def conv3x3_bias_relu(flat_f32, w_ref, b_ref):
        flat = flat_f32.astype(mxu_dtype)                 # cast once per conv
        acc = None
        for t, s in enumerate(shifts):
            if s == 0:                                    # center tap
                tap = flat
            else:
                # XLU lane rotation + border mask.  The mask zeroes every lane
                # whose 3x3 neighbour falls outside its own image, which also
                # covers rotation wrap and batch-seam crossings.
                tap = pltpu.roll(flat, s, axis=1) * masks[t]
            d = jnp.dot(w_ref[t], tap,
                        preferred_element_type=jnp.float32)   # (C, L) f32 acc
            acc = d if acc is None else acc + d
        return jnp.maximum(acc + b_ref[...], 0.0)         # bias + ReLU in f32

    h1 = conv3x3_bias_relu(x, w1_ref, b1_ref)
    h2 = conv3x3_bias_relu(h1, w2_ref, b2_ref)

    # residual: body(x) * res_scale + x   (lane-dense, unmasked store)
    o_ref[...] = h2 * res_scale + x


def resblock_pallas(x_nchw, w1_oihw, b1, w2_oihw, b2, *,
                    res_scale=2.0, mxu_dtype=jnp.float32):
    """x_nchw: (B,C,H,W) f32; w: (C,C,3,3) OIHW (PyTorch layout); b: (C,)."""
    B, C, H, W = x_nchw.shape
    HW = H * W
    L = B * HW          # lane axis: batch folded onto flattened spatial dims

    # (B,C,H,W) -> (C, B*H*W): lane-dense layout, one fat step.
    x_cl = jnp.transpose(x_nchw.reshape(B, C, HW), (1, 0, 2)).reshape(C, L)

    # OIHW -> per-tap matrices (tap, c_out, c_in), tap = dy*3 + dx.
    def to_taps(w):
        return jnp.transpose(w, (2, 3, 0, 1)).reshape(NTAPS, C, C).astype(mxu_dtype)

    w1_t = to_taps(w1_oihw)
    w2_t = to_taps(w2_oihw)
    b1_c = b1.reshape(C, 1).astype(jnp.float32)
    b2_c = b2.reshape(C, 1).astype(jnp.float32)

    # Static tap plan: lane-rotate amounts + border masks, built host-side so
    # the kernel does no per-step iota / div / mod work.
    lane = np.arange(L)
    p = lane % HW
    row, col = p // W, p % W
    shifts = []
    masks = np.empty((NTAPS, 1, L), dtype=np.float32)
    for dy in range(KSIZE):
        for dx in range(KSIZE):
            oy, ox = dy - KSIZE // 2, dx - KSIZE // 2
            t = dy * KSIZE + dx
            shifts.append((-(oy * W + ox)) % L)           # pltpu.roll amount
            ok = ((row + oy >= 0) & (row + oy < H) &
                  (col + ox >= 0) & (col + ox < W))
            masks[t, 0, :] = ok.astype(np.float32)
    masks = jnp.asarray(masks).astype(mxu_dtype)

    kernel = functools.partial(_resblock_kernel, shifts=tuple(shifts),
                               res_scale=res_scale, mxu_dtype=mxu_dtype)

    grid_spec = pltpu.PrefetchScalarGridSpec(
        num_scalar_prefetch=0,
        grid=(1,),   # whole (tiny) problem in one fat step: per-step overhead
                     # paid once, 512 lanes per MXU pass.
        in_specs=[
            pl.BlockSpec((C, L), lambda i: (0, 0)),
            pl.BlockSpec((NTAPS, C, C), lambda i: (0, 0, 0)),
            pl.BlockSpec((C, 1), lambda i: (0, 0)),
            pl.BlockSpec((NTAPS, C, C), lambda i: (0, 0, 0)),
            pl.BlockSpec((C, 1), lambda i: (0, 0)),
            pl.BlockSpec((NTAPS, 1, L), lambda i: (0, 0, 0)),
        ],
        out_specs=pl.BlockSpec((C, L), lambda i: (0, 0)),
    )

    out_cl = pl.pallas_call(
        kernel,
        out_shape=jax.ShapeDtypeStruct((C, L), jnp.float32),
        grid_spec=grid_spec,
        # TODO(synk): at real EDSR sizes (C>=64, large images) tile the lane
        # axis into halo'd H-strips via the index_map so each TensorCore (v7x
        # has two) gets several pipelined steps, and size the per-step working
        # set per generation (v7x VMEM is 64 MiB vs 128 MiB on v5e/v6e),
        # setting vmem_limit_bytes explicitly.
        compiler_params=pltpu.CompilerParams(
            dimension_semantics=("arbitrary",)),
    )(x_cl, w1_t, b1_c, w2_t, b2_c, masks)

    # (C, B*H*W) -> (B, C, H, W)
    return jnp.transpose(out_cl.reshape(C, B, HW), (1, 0, 2)).reshape(B, C, H, W)


def resblock_reference(x_nchw, w1_oihw, b1, w2_oihw, b2, *, res_scale=2.0):
    """Pure-JAX f32 reference (NCHW / OIHW), matching the PyTorch module."""
    dn = ('NCHW', 'OIHW', 'NCHW')
    h = lax.conv_general_dilated(x_nchw, w1_oihw, (1, 1), 'SAME',
                                 dimension_numbers=dn) + b1.reshape(1, -1, 1, 1)
    h = jnp.maximum(h, 0.0)
    h = lax.conv_general_dilated(h, w2_oihw, (1, 1), 'SAME',
                                 dimension_numbers=dn) + b2.reshape(1, -1, 1, 1)
    h = jnp.maximum(h, 0.0)
    return h * res_scale + x_nchw


if __name__ == "__main__":
    # Small shapes consistent with the module: batch=2, n_feats=4, spatial=16.
    B, C, H, W = 2, 4, 16, 16
    res_scale = 2.0  # module default

    key = jax.random.PRNGKey(0)
    kx, kw1, kb1, kw2, kb2 = jax.random.split(key, 5)

    # PyTorch-layout inputs/params (NCHW activations, OIHW weights).
    x = jax.random.normal(kx, (B, C, H, W), dtype=jnp.float32)
    w1 = 0.1 * jax.random.normal(kw1, (C, C, KSIZE, KSIZE), dtype=jnp.float32)
    b1 = 0.1 * jax.random.normal(kb1, (C,), dtype=jnp.float32)
    w2 = 0.1 * jax.random.normal(kw2, (C, C, KSIZE, KSIZE), dtype=jnp.float32)
    b2 = 0.1 * jax.random.normal(kb2, (C,), dtype=jnp.float32)

    ref = resblock_reference(x, w1, b1, w2, b2, res_scale=res_scale)

    # f32 MXU path: strict check against the f32 reference.
    out = resblock_pallas(x, w1, b1, w2, b2, res_scale=res_scale,
                          mxu_dtype=jnp.float32)
    out = jax.block_until_ready(out)
    assert out.shape == (B, C, H, W)
    assert jnp.allclose(out, ref, atol=1e-4, rtol=1e-4), "f32 mismatch vs reference"

    # bf16 MXU-operand path (fine on v5e/v6e/v7x): only the dot operands and
    # masks are bf16; accumulation, bias, ReLU and residual stay f32.
    out_bf16 = resblock_pallas(x, w1, b1, w2, b2, res_scale=res_scale,
                               mxu_dtype=jnp.bfloat16)
    out_bf16 = jax.block_until_ready(out_bf16)
    assert jnp.allclose(out_bf16, ref, atol=5e-2, rtol=5e-2), "bf16 mismatch vs reference"

    print("KERNEL_OK")
</pallas_src>

<mosaic_0001>
module attributes {stable_mosaic.version = 11 : i64} {
  func.func @_resblock_kernel(%arg0: i32, %arg1: memref<4x512xf32, #tpu.memory_space<vmem>>, %arg2: memref<9x4x4xf32, #tpu.memory_space<vmem>>, %arg3: memref<4x1xf32, #tpu.memory_space<vmem>>, %arg4: memref<9x4x4xf32, #tpu.memory_space<vmem>>, %arg5: memref<4x1xf32, #tpu.memory_space<vmem>>, %arg6: memref<9x1x512xf32, #tpu.memory_space<vmem>>, %arg7: memref<4x512xf32, #tpu.memory_space<vmem>>) attributes {dimension_semantics = [#tpu.dimension_semantics<arbitrary>], iteration_bounds = array<i64: 1>, scalar_prefetch = 0 : i64, scratch_operands = 0 : i64, tpu.core_type = #tpu.core_type<tc>, window_params = [{pipeline_mode = #tpu.pipeline_mode<synchronous>, transform_indices = @transform_0, window_bounds = array<i64: 4, 512>}, {pipeline_mode = #tpu.pipeline_mode<synchronous>, transform_indices = @transform_1, window_bounds = array<i64: 9, 4, 4>}, {pipeline_mode = #tpu.pipeline_mode<synchronous>, transform_indices = @transform_2, window_bounds = array<i64: 4, 1>}, {pipeline_mode = #tpu.pipeline_mode<synchronous>, transform_indices = @transform_3, window_bounds = array<i64: 9, 4, 4>}, {pipeline_mode = #tpu.pipeline_mode<synchronous>, transform_indices = @transform_4, window_bounds = array<i64: 4, 1>}, {pipeline_mode = #tpu.pipeline_mode<synchronous>, transform_indices = @transform_5, window_bounds = array<i64: 9, 1, 512>}, {pipeline_mode = #tpu.pipeline_mode<synchronous>, transform_indices = @transform_6, window_bounds = array<i64: 4, 512>}]} {
    %c0 = arith.constant 0 : index
    %c0_0 = arith.constant 0 : index
    %0 = vector.load %arg1[%c0, %c0_0] : memref<4x512xf32, #tpu.memory_space<vmem>>, vector<4x512xf32>
    %c0_1 = arith.constant 0 : index
    %c0_2 = arith.constant 0 : index
    %c0_3 = arith.constant 0 : index
    %1 = vector.load %arg6[%c0_1, %c0_2, %c0_3] : memref<9x1x512xf32, #tpu.memory_space<vmem>>, vector<1x1x512xf32>
    %2 = vector.shape_cast %1 : vector<1x1x512xf32> to vector<1x512xf32>
    %c1 = arith.constant 1 : index
    %c0_4 = arith.constant 0 : index
    %c0_5 = arith.constant 0 : index
    %3 = vector.load %arg6[%c1, %c0_4, %c0_5] : memref<9x1x512xf32, #tpu.memory_space<vmem>>, vector<1x1x512xf32>
    %4 = vector.shape_cast %3 : vector<1x1x512xf32> to vector<1x512xf32>
    %c2 = arith.constant 2 : index
    %c0_6 = arith.constant 0 : index
    %c0_7 = arith.constant 0 : index
    %5 = vector.load %arg6[%c2, %c0_6, %c0_7] : memref<9x1x512xf32, #tpu.memory_space<vmem>>, vector<1x1x512xf32>
    %6 = vector.shape_cast %5 : vector<1x1x512xf32> to vector<1x512xf32>
    %c3 = arith.constant 3 : index
    %c0_8 = arith.constant 0 : index
    %c0_9 = arith.constant 0 : index
    %7 = vector.load %arg6[%c3, %c0_8, %c0_9] : memref<9x1x512xf32, #tpu.memory_space<vmem>>, vector<1x1x512xf32>
    %8 = vector.shape_cast %7 : vector<1x1x512xf32> to vector<1x512xf32>
    %c5 = arith.constant 5 : index
    %c0_10 = arith.constant 0 : index
    %c0_11 = arith.constant 0 : index
    %9 = vector.load %arg6[%c5, %c0_10, %c0_11] : memref<9x1x512xf32, #tpu.memory_space<vmem>>, vector<1x1x512xf32>
    %10 = vector.shape_cast %9 : vector<1x1x512xf32> to vector<1x512xf32>
    %c6 = arith.constant 6 : index
    %c0_12 = arith.constant 0 : index
    %c0_13 = arith.constant 0 : index
    %11 = vector.load %arg6[%c6, %c0_12, %c0_13] : memref<9x1x512xf32, #tpu.memory_space<vmem>>, vector<1x1x512xf32>
    %12 = vector.shape_cast %11 : vector<1x1x512xf32> to vector<1x512xf32>
    %c7 = arith.constant 7 : index
    %c0_14 = arith.constant 0 : index
    %c0_15 = arith.constant 0 : index
    %13 = vector.load %arg6[%c7, %c0_14, %c0_15] : memref<9x1x512xf32, #tpu.memory_space<vmem>>, vector<1x1x512xf32>
    %14 = vector.shape_cast %13 : vector<1x1x512xf32> to vector<1x512xf32>
    %c8 = arith.constant 8 : index
    %c0_16 = arith.constant 0 : index
    %c0_17 = arith.constant 0 : index
    %15 = vector.load %arg6[%c8, %c0_16, %c0_17] : memref<9x1x512xf32, #tpu.memory_space<vmem>>, vector<1x1x512xf32>
    %16 = vector.shape_cast %15 : vector<1x1x512xf32> to vector<1x512xf32>
    %c17_i32 = arith.constant 17 : i32
    %17 = tpu.dynamic_rotate %0 by %c17_i32 dim 1 : vector<4x512xf32>, i32 -> vector<4x512xf32>
    %18 = vector.broadcast %2 : vector<1x512xf32> to vector<4x512xf32>
    %19 = arith.mulf %17, %18 : vector<4x512xf32>
    %c0_18 = arith.constant 0 : index
    %c0_19 = arith.constant 0 : index
    %c0_20 = arith.constant 0 : index
    %20 = vector.load %arg2[%c0_18, %c0_19, %c0_20] : memref<9x4x4xf32, #tpu.memory_space<vmem>>, vector<1x4x4xf32>
    %21 = vector.shape_cast %20 : vector<1x4x4xf32> to vector<4x4xf32>
    %cst = arith.constant dense<0.000000e+00> : vector<4x512xf32>
    %22 = tpu.matmul %21, %19, %cst {dimension_numbers = #tpu.dot_dimension_numbers<[1], [0], [0], [1], [0, 0, 1, 1], [], []>} : vector<4x4xf32>, vector<4x512xf32>, vector<4x512xf32> -> vector<4x512xf32>
    %c16_i32 = arith.constant 16 : i32
    %23 = tpu.dynamic_rotate %0 by %c16_i32 dim 1 : vector<4x512xf32>, i32 -> vector<4x512xf32>
    %24 = vector.broadcast %4 : vector<1x512xf32> to vector<4x512xf32>
    %25 = arith.mulf %23, %24 : vector<4x512xf32>
    %c1_21 = arith.constant 1 : index
    %c0_22 = arith.constant 0 : index
    %c0_23 = arith.constant 0 : index
    %26 = vector.load %arg2[%c1_21, %c0_22, %c0_23] : memref<9x4x4xf32, #tpu.memory_space<vmem>>, vector<1x4x4xf32>
    %27 = vector.shape_cast %26 : vector<1x4x4xf32> to vector<4x4xf32>
    %cst_24 = arith.constant dense<0.000000e+00> : vector<4x512xf32>
    %28 = tpu.matmul %27, %25, %cst_24 {dimension_numbers = #tpu.dot_dimension_numbers<[1], [0], [0], [1], [0, 0, 1, 1], [], []>} : vector<4x4xf32>, vector<4x512xf32>, vector<4x512xf32> -> vector<4x512xf32>
    %29 = arith.addf %22, %28 : vector<4x512xf32>
    %c15_i32 = arith.constant 15 : i32
    %30 = tpu.dynamic_rotate %0 by %c15_i32 dim 1 : vector<4x512xf32>, i32 -> vector<4x512xf32>
    %31 = vector.broadcast %6 : vector<1x512xf32> to vector<4x512xf32>
    %32 = arith.mulf %30, %31 : vector<4x512xf32>
    %c2_25 = arith.constant 2 : index
    %c0_26 = arith.constant 0 : index
    %c0_27 = arith.constant 0 : index
    %33 = vector.load %arg2[%c2_25, %c0_26, %c0_27] : memref<9x4x4xf32, #tpu.memory_space<vmem>>, vector<1x4x4xf32>
    %34 = vector.shape_cast %33 : vector<1x4x4xf32> to vector<4x4xf32>
    %cst_28 = arith.constant dense<0.000000e+00> : vector<4x512xf32>
    %35 = tpu.matmul %34, %32, %cst_28 {dimension_numbers = #tpu.dot_dimension_numbers<[1], [0], [0], [1], [0, 0, 1, 1], [], []>} : vector<4x4xf32>, vector<4x512xf32>, vector<4x512xf32> -> vector<4x512xf32>
    %36 = arith.addf %29, %35 : vector<4x512xf32>
    %c1_i32 = arith.constant 1 : i32
    %37 = tpu.dynamic_rotate %0 by %c1_i32 dim 1 : vector<4x512xf32>, i32 -> vector<4x512xf32>
    %38 = vector.broadcast %8 : vector<1x512xf32> to vector<4x512xf32>
    %39 = arith.mulf %37, %38 : vector<4x512xf32>
    %c3_29 = arith.constant 3 : index
    %c0_30 = arith.constant 0 : index
    %c0_31 = arith.constant 0 : index
    %40 = vector.load %arg2[%c3_29, %c0_30, %c0_31] : memref<9x4x4xf32, #tpu.memory_space<vmem>>, vector<1x4x4xf32>
    %41 = vector.shape_cast %40 : vector<1x4x4xf32> to vector<4x4xf32>
    %cst_32 = arith.constant dense<0.000000e+00> : vector<4x512xf32>
    %42 = tpu.matmul %41, %39, %cst_32 {dimension_numbers = #tpu.dot_dimension_numbers<[1], [0], [0], [1], [0, 0, 1, 1], [], []>} : vector<4x4xf32>, vector<4x512xf32>, vector<4x512xf32> -> vector<4x512xf32>
    %43 = arith.addf %36, %42 : vector<4x512xf32>
    %c4 = arith.constant 4 : index
    %c0_33 = arith.constant 0 : index
    %c0_34 = arith.constant 0 : index
    %44 = vector.load %arg2[%c4, %c0_33, %c0_34] : memref<9x4x4xf32, #tpu.memory_space<vmem>>, vector<1x4x4xf32>
    %45 = vector.shape_cast %44 : vector<1x4x4xf32> to vector<4x4xf32>
    %cst_35 = arith.constant dense<0.000000e+00> : vector<4x512xf32>
    %46 = tpu.matmul %45, %0, %cst_35 {dimension_numbers = #tpu.dot_dimension_numbers<[1], [0], [0], [1], [0, 0, 1, 1], [], []>} : vector<4x4xf32>, vector<4x512xf32>, vector<4x512xf32> -> vector<4x512xf32>
    %47 = arith.addf %43, %46 : vector<4x512xf32>
    %c511_i32 = arith.constant 511 : i32
    %48 = tpu.dynamic_rotate %0 by %c511_i32 dim 1 : vector<4x512xf32>, i32 -> vector<4x512xf32>
    %49 = vector.broadcast %10 : vector<1x512xf32> to vector<4x512xf32>
    %50 = arith.mulf %48, %49 : vector<4x512xf32>
    %c5_36 = arith.constant 5 : index
    %c0_37 = arith.constant 0 : index
    %c0_38 = arith.constant 0 : index
    %51 = vector.load %arg2[%c5_36, %c0_37, %c0_38] : memref<9x4x4xf32, #tpu.memory_space<vmem>>, vector<1x4x4xf32>
    %52 = vector.shape_cast %51 : vector<1x4x4xf32> to vector<4x4xf32>
    %cst_39 = arith.constant dense<0.000000e+00> : vector<4x512xf32>
    %53 = tpu.matmul %52, %50, %cst_39 {dimension_numbers = #tpu.dot_dimension_numbers<[1], [0], [0], [1], [0, 0, 1, 1], [], []>} : vector<4x4xf32>, vector<4x512xf32>, vector<4x512xf32> -> vector<4x512xf32>
    %54 = arith.addf %47, %53 : vector<4x512xf32>
    %c497_i32 = arith.constant 497 : i32
    %55 = tpu.dynamic_rotate %0 by %c497_i32 dim 1 : vector<4x512xf32>, i32 -> vector<4x512xf32>
    %56 = vector.broadcast %12 : vector<1x512xf32> to vector<4x512xf32>
    %57 = arith.mulf %55, %56 : vector<4x512xf32>
    %c6_40 = arith.constant 6 : index
    %c0_41 = arith.constant 0 : index
    %c0_42 = arith.constant 0 : index
    %58 = vector.load %arg2[%c6_40, %c0_41, %c0_42] : memref<9x4x4xf32, #tpu.memory_space<vmem>>, vector<1x4x4xf32>
    %59 = vector.shape_cast %58 : vector<1x4x4xf32> to vector<4x4xf32>
    %cst_43 = arith.constant dense<0.000000e+00> : vector<4x512xf32>
    %60 = tpu.matmul %59, %57, %cst_43 {dimension_numbers = #tpu.dot_dimension_numbers<[1], [0], [0], [1], [0, 0, 1, 1], [], []>} : vector<4x4xf32>, vector<4x512xf32>, vector<4x512xf32> -> vector<4x512xf32>
    %61 = arith.addf %54, %60 : vector<4x512xf32>
    %c496_i32 = arith.constant 496 : i32
    %62 = tpu.dynamic_rotate %0 by %c496_i32 dim 1 : vector<4x512xf32>, i32 -> vector<4x512xf32>
    %63 = vector.broadcast %14 : vector<1x512xf32> to vector<4x512xf32>
    %64 = arith.mulf %62, %63 : vector<4x512xf32>
    %c7_44 = arith.constant 7 : index
    %c0_45 = arith.constant 0 : index
    %c0_46 = arith.constant 0 : index
    %65 = vector.load %arg2[%c7_44, %c0_45, %c0_46] : memref<9x4x4xf32, #tpu.memory_space<vmem>>, vector<1x4x4xf32>
    %66 = vector.shape_cast %65 : vector<1x4x4xf32> to vector<4x4xf32>
    %cst_47 = arith.constant dense<0.000000e+00> : vector<4x512xf32>
    %67 = tpu.matmul %66, %64, %cst_47 {dimension_numbers = #tpu.dot_dimension_numbers<[1], [0], [0], [1], [0, 0, 1, 1], [], []>} : vector<4x4xf32>, vector<4x512xf32>, vector<4x512xf32> -> vector<4x512xf32>
    %68 = arith.addf %61, %67 : vector<4x512xf32>
    %c495_i32 = arith.constant 495 : i32
    %69 = tpu.dynamic_rotate %0 by %c495_i32 dim 1 : vector<4x512xf32>, i32 -> vector<4x512xf32>
    %70 = vector.broadcast %16 : vector<1x512xf32> to vector<4x512xf32>
    %71 = arith.mulf %69, %70 : vector<4x512xf32>
    %c8_48 = arith.constant 8 : index
    %c0_49 = arith.constant 0 : index
    %c0_50 = arith.constant 0 : index
    %72 = vector.load %arg2[%c8_48, %c0_49, %c0_50] : memref<9x4x4xf32, #tpu.memory_space<vmem>>, vector<1x4x4xf32>
    %73 = vector.shape_cast %72 : vector<1x4x4xf32> to vector<4x4xf32>
    %cst_51 = arith.constant dense<0.000000e+00> : vector<4x512xf32>
    %74 = tpu.matmul %73, %71, %cst_51 {dimension_numbers = #tpu.dot_dimension_numbers<[1], [0], [0], [1], [0, 0, 1, 1], [], []>} : vector<4x4xf32>, vector<4x512xf32>, vector<4x512xf32> -> vector<4x512xf32>
    %75 = arith.addf %68, %74 : vector<4x512xf32>
    %c0_52 = arith.constant 0 : index
    %c0_53 = arith.constant 0 : index
    %76 = vector.load %arg3[%c0_52, %c0_53] : memref<4x1xf32, #tpu.memory_space<vmem>>, vector<4x1xf32>
    %77 = vector.broadcast %76 : vector<4x1xf32> to vector<4x512xf32>
    %78 = arith.addf %75, %77 : vector<4x512xf32>
    %cst_54 = arith.constant 0.000000e+00 : f32
    %79 = vector.broadcast %cst_54 : f32 to vector<4x512xf32>
    %80 = arith.maximumf %78, %79 : vector<4x512xf32>
    %c17_i32_55 = arith.constant 17 : i32
    %81 = tpu.dynamic_rotate %80 by %c17_i32_55 dim 1 : vector<4x512xf32>, i32 -> vector<4x512xf32>
    %82 = vector.broadcast %2 : vector<1x512xf32> to vector<4x512xf32>
    %83 = arith.mulf %81, %82 : vector<4x512xf32>
    %c0_56 = arith.constant 0 : index
    %c0_57 = arith.constant 0 : index
    %c0_58 = arith.constant 0 : index
    %84 = vector.load %arg4[%c0_56, %c0_57, %c0_58] : memref<9x4x4xf32, #tpu.memory_space<vmem>>, vector<1x4x4xf32>
    %85 = vector.shape_cast %84 : vector<1x4x4xf32> to vector<4x4xf32>
    %cst_59 = arith.constant dense<0.000000e+00> : vector<4x512xf32>
    %86 = tpu.matmul %85, %83, %cst_59 {dimension_numbers = #tpu.dot_dimension_numbers<[1], [0], [0], [1], [0, 0, 1, 1], [], []>} : vector<4x4xf32>, vector<4x512xf32>, vector<4x512xf32> -> vector<4x512xf32>
    %c16_i32_60 = arith.constant 16 : i32
    %87 = tpu.dynamic_rotate %80 by %c16_i32_60 dim 1 : vector<4x512xf32>, i32 -> vector<4x512xf32>
    %88 = vector.broadcast %4 : vector<1x512xf32> to vector<4x512xf32>
    %89 = arith.mulf %87, %88 : vector<4x512xf32>
    %c1_61 = arith.constant 1 : index
    %c0_62 = arith.constant 0 : index
    %c0_63 = arith.constant 0 : index
    %90 = vector.load %arg4[%c1_61, %c0_62, %c0_63] : memref<9x4x4xf32, #tpu.memory_space<vmem>>, vector<1x4x4xf32>
    %91 = vector.shape_cast %90 : vector<1x4x4xf32> to vector<4x4xf32>
    %cst_64 = arith.constant dense<0.000000e+00> : vector<4x512xf32>
    %92 = tpu.matmul %91, %89, %cst_64 {dimension_numbers = #tpu.dot_dimension_numbers<[1], [0], [0], [1], [0, 0, 1, 1], [], []>} : vector<4x4xf32>, vector<4x512xf32>, vector<4x512xf32> -> vector<4x512xf32>
    %93 = arith.addf %86, %92 : vector<4x512xf32>
    %c15_i32_65 = arith.constant 15 : i32
    %94 = tpu.dynamic_rotate %80 by %c15_i32_65 dim 1 : vector<4x512xf32>, i32 -> vector<4x512xf32>
    %95 = vector.broadcast %6 : vector<1x512xf32> to vector<4x512xf32>
    %96 = arith.mulf %94, %95 : vector<4x512xf32>
    %c2_66 = arith.constant 2 : index
    %c0_67 = arith.constant 0 : index
    %c0_68 = arith.constant 0 : index
    %97 = vector.load %arg4[%c2_66, %c0_67, %c0_68] : memref<9x4x4xf32, #tpu.memory_space<vmem>>, vector<1x4x4xf32>
    %98 = vector.shape_cast %97 : vector<1x4x4xf32> to vector<4x4xf32>
    %cst_69 = arith.constant dense<0.000000e+00> : vector<4x512xf32>
    %99 = tpu.matmul %98, %96, %cst_69 {dimension_numbers = #tpu.dot_dimension_numbers<[1], [0], [0], [1], [0, 0, 1, 1], [], []>} : vector<4x4xf32>, vector<4x512xf32>, vector<4x512xf32> -> vector<4x512xf32>
    %100 = arith.addf %93, %99 : vector<4x512xf32>
    %c1_i32_70 = arith.constant 1 : i32
    %101 = tpu.dynamic_rotate %80 by %c1_i32_70 dim 1 : vector<4x512xf32>, i32 -> vector<4x512xf32>
    %102 = vector.broadcast %8 : vector<1x512xf32> to vector<4x512xf32>
    %103 = arith.mulf %101, %102 : vector<4x512xf32>
    %c3_71 = arith.constant 3 : index
    %c0_72 = arith.constant 0 : index
    %c0_73 = arith.constant 0 : index
    %104 = vector.load %arg4[%c3_71, %c0_72, %c0_73] : memref<9x4x4xf32, #tpu.memory_space<vmem>>, vector<1x4x4xf32>
    %105 = vector.shape_cast %104 : vector<1x4x4xf32> to vector<4x4xf32>
    %cst_74 = arith.constant dense<0.000000e+00> : vector<4x512xf32>
    %106 = tpu.matmul %105, %103, %cst_74 {dimension_numbers = #tpu.dot_dimension_numbers<[1], [0], [0], [1], [0, 0, 1, 1], [], []>} : vector<4x4xf32>, vector<4x512xf32>, vector<4x512xf32> -> vector<4x512xf32>
    %107 = arith.addf %100, %106 : vector<4x512xf32>
    %c4_75 = arith.constant 4 : index
    %c0_76 = arith.constant 0 : index
    %c0_77 = arith.constant 0 : index
    %108 = vector.load %arg4[%c4_75, %c0_76, %c0_77] : memref<9x4x4xf32, #tpu.memory_space<vmem>>, vector<1x4x4xf32>
    %109 = vector.shape_cast %108 : vector<1x4x4xf32> to vector<4x4xf32>
    %cst_78 = arith.constant dense<0.000000e+00> : vector<4x512xf32>
    %110 = tpu.matmul %109, %80, %cst_78 {dimension_numbers = #tpu.dot_dimension_numbers<[1], [0], [0], [1], [0, 0, 1, 1], [], []>} : vector<4x4xf32>, vector<4x512xf32>, vector<4x512xf32> -> vector<4x512xf32>
    %111 = arith.addf %107, %110 : vector<4x512xf32>
    %c511_i32_79 = arith.constant 511 : i32
    %112 = tpu.dynamic_rotate %80 by %c511_i32_79 dim 1 : vector<4x512xf32>, i32 -> vector<4x512xf32>
    %113 = vector.broadcast %10 : vector<1x512xf32> to vector<4x512xf32>
    %114 = arith.mulf %112, %113 : vector<4x512xf32>
    %c5_80 = arith.constant 5 : index
    %c0_81 = arith.constant 0 : index
    %c0_82 = arith.constant 0 : index
    %115 = vector.load %arg4[%c5_80, %c0_81, %c0_82] : memref<9x4x4xf32, #tpu.memory_space<vmem>>, vector<1x4x4xf32>
    %116 = vector.shape_cast %115 : vector<1x4x4xf32> to vector<4x4xf32>
    %cst_83 = arith.constant dense<0.000000e+00> : vector<4x512xf32>
    %117 = tpu.matmul %116, %114, %cst_83 {dimension_numbers = #tpu.dot_dimension_numbers<[1], [0], [0], [1], [0, 0, 1, 1], [], []>} : vector<4x4xf32>, vector<4x512xf32>, vector<4x512xf32> -> vector<4x512xf32>
    %118 = arith.addf %111, %117 : vector<4x512xf32>
    %c497_i32_84 = arith.constant 497 : i32
    %119 = tpu.dynamic_rotate %80 by %c497_i32_84 dim 1 : vector<4x512xf32>, i32 -> vector<4x512xf32>
    %120 = vector.broadcast %12 : vector<1x512xf32> to vector<4x512xf32>
    %121 = arith.mulf %119, %120 : vector<4x512xf32>
    %c6_85 = arith.constant 6 : index
    %c0_86 = arith.constant 0 : index
    %c0_87 = arith.constant 0 : index
    %122 = vector.load %arg4[%c6_85, %c0_86, %c0_87] : memref<9x4x4xf32, #tpu.memory_space<vmem>>, vector<1x4x4xf32>
    %123 = vector.shape_cast %122 : vector<1x4x4xf32> to vector<4x4xf32>
    %cst_88 = arith.constant dense<0.000000e+00> : vector<4x512xf32>
    %124 = tpu.matmul %123, %121, %cst_88 {dimension_numbers = #tpu.dot_dimension_numbers<[1], [0], [0], [1], [0, 0, 1, 1], [], []>} : vector<4x4xf32>, vector<4x512xf32>, vector<4x512xf32> -> vector<4x512xf32>
    %125 = arith.addf %118, %124 : vector<4x512xf32>
    %c496_i32_89 = arith.constant 496 : i32
    %126 = tpu.dynamic_rotate %80 by %c496_i32_89 dim 1 : vector<4x512xf32>, i32 -> vector<4x512xf32>
    %127 = vector.broadcast %14 : vector<1x512xf32> to vector<4x512xf32>
    %128 = arith.mulf %126, %127 : vector<4x512xf32>
    %c7_90 = arith.constant 7 : index
    %c0_91 = arith.constant 0 : index
    %c0_92 = arith.constant 0 : index
    %129 = vector.load %arg4[%c7_90, %c0_91, %c0_92] : memref<9x4x4xf32, #tpu.memory_space<vmem>>, vector<1x4x4xf32>
    %130 = vector.shape_cast %129 : vector<1x4x4xf32> to vector<4x4xf32>
    %cst_93 = arith.constant dense<0.000000e+00> : vector<4x512xf32>
    %131 = tpu.matmul %130, %128, %cst_93 {dimension_numbers = #tpu.dot_dimension_numbers<[1], [0], [0], [1], [0, 0, 1, 1], [], []>} : vector<4x4xf32>, vector<4x512xf32>, vector<4x512xf32> -> vector<4x512xf32>
    %132 = arith.addf %125, %131 : vector<4x512xf32>
    %c495_i32_94 = arith.constant 495 : i32
    %133 = tpu.dynamic_rotate %80 by %c495_i32_94 dim 1 : vector<4x512xf32>, i32 -> vector<4x512xf32>
    %134 = vector.broadcast %16 : vector<1x512xf32> to vector<4x512xf32>
    %135 = arith.mulf %133, %134 : vector<4x512xf32>
    %c8_95 = arith.constant 8 : index
    %c0_96 = arith.constant 0 : index
    %c0_97 = arith.constant 0 : index
    %136 = vector.load %arg4[%c8_95, %c0_96, %c0_97] : memref<9x4x4xf32, #tpu.memory_space<vmem>>, vector<1x4x4xf32>
    %137 = vector.shape_cast %136 : vector<1x4x4xf32> to vector<4x4xf32>
    %cst_98 = arith.constant dense<0.000000e+00> : vector<4x512xf32>
    %138 = tpu.matmul %137, %135, %cst_98 {dimension_numbers = #tpu.dot_dimension_numbers<[1], [0], [0], [1], [0, 0, 1, 1], [], []>} : vector<4x4xf32>, vector<4x512xf32>, vector<4x512xf32> -> vector<4x512xf32>
    %139 = arith.addf %132, %138 : vector<4x512xf32>
    %c0_99 = arith.constant 0 : index
    %c0_100 = arith.constant 0 : index
    %140 = vector.load %arg5[%c0_99, %c0_100] : memref<4x1xf32, #tpu.memory_space<vmem>>, vector<4x1xf32>
    %141 = vector.broadcast %140 : vector<4x1xf32> to vector<4x512xf32>
    %142 = arith.addf %139, %141 : vector<4x512xf32>
    %cst_101 = arith.constant 0.000000e+00 : f32
    %143 = vector.broadcast %cst_101 : f32 to vector<4x512xf32>
    %144 = arith.maximumf %142, %143 : vector<4x512xf32>
    %cst_102 = arith.constant 2.000000e+00 : f32
    %145 = vector.broadcast %cst_102 : f32 to vector<4x512xf32>
    %146 = arith.mulf %144, %145 : vector<4x512xf32>
    %147 = arith.addf %146, %0 : vector<4x512xf32>
    %c0_103 = arith.constant 0 : index
    %c0_104 = arith.constant 0 : index
    %148 = vector.load %arg7[%c0_103, %c0_104] : memref<4x512xf32, #tpu.memory_space<vmem>>, vector<4x512xf32>
    tpu.vector_store %arg7[%c0_103, %c0_104], %147 {strides = array<i32>} : memref<4x512xf32, #tpu.memory_space<vmem>>, vector<4x512xf32>,
    return
  }
  func.func @transform_0(%arg0: i32) -> (i32, i32) {
    %c0_i32 = arith.constant 0 : i32
    %c0_i32_0 = arith.constant 0 : i32
    %c0_i32_1 = arith.constant 0 : i32
    return %c0_i32, %c0_i32_0 : i32, i32
  }
  func.func @transform_1(%arg0: i32) -> (i32, i32, i32) {
    %c0_i32 = arith.constant 0 : i32
    %c0_i32_0 = arith.constant 0 : i32
    %c0_i32_1 = arith.constant 0 : i32
    %c0_i32_2 = arith.constant 0 : i32
    return %c0_i32, %c0_i32_0, %c0_i32_1 : i32, i32, i32
  }
  func.func @transform_2(%arg0: i32) -> (i32, i32) {
    %c0_i32 = arith.constant 0 : i32
    %c0_i32_0 = arith.constant 0 : i32
    %c0_i32_1 = arith.constant 0 : i32
    return %c0_i32, %c0_i32_0 : i32, i32
  }
  func.func @transform_3(%arg0: i32) -> (i32, i32, i32) {
    %c0_i32 = arith.constant 0 : i32
    %c0_i32_0 = arith.constant 0 : i32
    %c0_i32_1 = arith.constant 0 : i32
    %c0_i32_2 = arith.constant 0 : i32
    return %c0_i32, %c0_i32_0, %c0_i32_1 : i32, i32, i32
  }
  func.func @transform_4(%arg0: i32) -> (i32, i32) {
    %c0_i32 = arith.constant 0 : i32
    %c0_i32_0 = arith.constant 0 : i32
    %c0_i32_1 = arith.constant 0 : i32
    return %c0_i32, %c0_i32_0 : i32, i32
  }
  func.func @transform_5(%arg0: i32) -> (i32, i32, i32) {
    %c0_i32 = arith.constant 0 : i32
    %c0_i32_0 = arith.constant 0 : i32
    %c0_i32_1 = arith.constant 0 : i32
    %c0_i32_2 = arith.constant 0 : i32
    return %c0_i32, %c0_i32_0, %c0_i32_1 : i32, i32, i32
  }
  func.func @transform_6(%arg0: i32) -> (i32, i32) {
    %c0_i32 = arith.constant 0 : i32
    %c0_i32_0 = arith.constant 0 : i32
    %c0_i32_1 = arith.constant 0 : i32
    return %c0_i32, %c0_i32_0 : i32, i32
  }
}

</mosaic_0001>

<llo_original>
// kernel: tpu_custom_call.1
$region0: #{tpu_custom_call.1}
  #allocation0 [shape = 'u32[]', space=smem, size = 0x4, offset = 0x4, fixed_abs, tag = 'smem constant byte address 0x4 - core index']
  #allocation1 [shape = 'u32[144,128]{1,0:T(1,128)}', space=vmem, size = 0x12000, scoped, tag = 'internal scratch']
  %s0 = inlined_call_operand.vmem [shape: f32[4,512], index: 0, kind: input, shape index: {}]
  %s1 = inlined_call_operand.vmem [shape: f32[9,4,4], index: 1, kind: input, shape index: {}]
  %s2 = inlined_call_operand.vmem [shape: f32[4,1], index: 2, kind: input, shape index: {}]
  %s3 = inlined_call_operand.vmem [shape: f32[9,4,4], index: 3, kind: input, shape index: {}]
  %s4 = inlined_call_operand.vmem [shape: f32[4,1], index: 4, kind: input, shape index: {}]
  %s5 = inlined_call_operand.vmem [shape: f32[9,1,512], index: 5, kind: input, shape index: {}]
  %s6 = inlined_call_operand.hbm [shape: f32[4,512], index: 6, kind: output, shape index: {}]
  %s7 = sld [smem:[#allocation0]]
  $region34: #{tpu_custom_call.1} parent=0
    _
  %s9 = ssub.s32 1, %s7
  %s10 = scalar_select 0, %s9, %s7
  $region1: #{tpu_custom_call.1} parent=0
    #allocation2 [shape = 'u8[8192]{0}', space=vmem, size = 0x2000, scoped, tag = 'output window, operand 0, single buffered']
    #allocation3 [shape = 's32[1]{0}', space=sflag, size = 0x4, scoped, tag = 'scoped memory for tpu_custom_call.1']
    %11 = vsyncpa [#allocation3], 0
    // Predicated region
    $region2: #{tpu_custom_call.1} parent=1 // pred_check
      _
    $region3: #{tpu_custom_call.1} parent=1 // pred_check_branch
      %13 = sbr.rel (0) target = $region5
    $region4: #{tpu_custom_call.1} parent=1 // pred_region
      _
    $region5: #{tpu_custom_call.1} parent=1 // pred_fallthru
      _
    // Predicated region
    $region6: #{tpu_custom_call.1} parent=1 // pred_check
      _
    $region7: #{tpu_custom_call.1} parent=1 // pred_check_branch
      %15 = sbr.rel (0) target = $region9
    $region8: #{tpu_custom_call.1} parent=1 // pred_region
      _
    $region9: #{tpu_custom_call.1} parent=1 // pred_fallthru
      _
    // Predicated region
    $region10: #{tpu_custom_call.1} parent=1 // pred_check
      _
    $region11: #{tpu_custom_call.1} parent=1 // pred_check_branch
      %17 = sbr.rel (0) target = $region13
    $region12: #{tpu_custom_call.1} parent=1 // pred_region
      _
    $region13: #{tpu_custom_call.1} parent=1 // pred_fallthru
      _
    // Predicated region
    $region14: #{tpu_custom_call.1} parent=1 // pred_check
      _
    $region15: #{tpu_custom_call.1} parent=1 // pred_check_branch
      %19 = sbr.rel (0) target = $region17
    $region16: #{tpu_custom_call.1} parent=1 // pred_region
      _
    $region17: #{tpu_custom_call.1} parent=1 // pred_fallthru
      _
    // Predicated region
    $region18: #{tpu_custom_call.1} parent=1 // pred_check
      _
    $region19: #{tpu_custom_call.1} parent=1 // pred_check_branch
      %21 = sbr.rel (0) target = $region21
    $region20: #{tpu_custom_call.1} parent=1 // pred_region
      _
    $region21: #{tpu_custom_call.1} parent=1 // pred_fallthru
      _
    // Predicated region
    $region22: #{tpu_custom_call.1} parent=1 // pred_check
      _
    $region23: #{tpu_custom_call.1} parent=1 // pred_check_branch
      %23 = sbr.rel (0) target = $region25
    $region24: #{tpu_custom_call.1} parent=1 // pred_region
      _
    $region25: #{tpu_custom_call.1} parent=1 // pred_fallthru
      _
    %v24 = vld [vmem:[%s0] sm:$0xff]
    %v25 = vld [vmem:[%s0 + $0x8] sm:$0xff]
    %v26 = vld [vmem:[%s5] sm:$0xf]
    %s27 = scalar_lea.vmem %s5, 4
    %v28 = vld [vmem:[%s27] sm:$0xf]
    %s29 = scalar_lea.vmem %s5, 8
    %v30 = vld [vmem:[%s29] sm:$0xf]
    %s31 = scalar_lea.vmem %s5, 12
    %v32 = vld [vmem:[%s31] sm:$0xf]
    %s33 = scalar_lea.vmem %s5, 20
    %v34 = vld [vmem:[%s33] sm:$0xf]
    %s35 = scalar_lea.vmem %s5, 24
    %v36 = vld [vmem:[%s35] sm:$0xf]
    %s37 = scalar_lea.vmem %s5, 28
    %v38 = vld [vmem:[%s37] sm:$0xf]
    %s39 = scalar_lea.vmem %s5, 32
    %v40 = vld [vmem:[%s39] sm:$0xf]
    %v43 = vcombine.high %v24, %v24
    %v44 = vcombine.high %v25, %v25
    %47 = vrot.lane.b32.xlu0 %v24, 17
    %v48 = vpop.permute.xlu0 %47
    %49 = vrot.lane.b32.xlu0 %v43, 17
    %v50 = vpop.permute.xlu0 %49
    %51 = vrot.lane.b32.xlu0 %v25, 17
    %v52 = vpop.permute.xlu0 %51
    %53 = vrot.lane.b32.xlu0 %v44, 17
    %v54 = vpop.permute.xlu0 %53
    %v55 = vlaneseq
    %v56 = vand.u32 %v55, 127
    %vm57 = vcmp.lt.s32.totalorder %v56, 17
    %v58 = vsel %vm57, %v52, %v54
    %v59 = vsel %vm57, %v50, %v52
    %v60 = vsel %vm57, %v48, %v50
    %v61 = vsel %vm57, %v54, %v48
    %v63 = vlaneseq
    %v64 = vshrl.u32 %v63, 7
    %v65 = vsub.s32 0, %v64
    %v66 = vrot.slane %v26, %v65
    %v67 = vlaneseq
    %v68 = vshrl.u32 %v67, 7
    %v69 = vsub.s32 1, %v68
    %v70 = vrot.slane %v26, %v69
    %v71 = vlaneseq
    %v72 = vshrl.u32 %v71, 7
    %v73 = vsub.s32 2, %v72
    %v74 = vrot.slane %v26, %v73
    %v75 = vlaneseq
    %v76 = vshrl.u32 %v75, 7
    %v77 = vsub.s32 3, %v76
    %v78 = vrot.slane %v26, %v77
    %v83 = vmul.f32 %v61, %v66
    %v84 = vmul.f32 %v60, %v70
    %v85 = vmul.f32 %v59, %v74
    %v86 = vmul.f32 %v58, %v78
    %v87 = vld [vmem:[%s1] sm:$0xf]
    %88 = vrot.lane.b32.xlu0 %v24, 16
    %v89 = vpop.permute.xlu0 %88
    %90 = vrot.lane.b32.xlu0 %v43, 16
    %v91 = vpop.permute.xlu0 %90
    %92 = vrot.lane.b32.xlu0 %v25, 16
    %v93 = vpop.permute.xlu0 %92
    %94 = vrot.lane.b32.xlu0 %v44, 16
    %v95 = vpop.permute.xlu0 %94
    %vm96 = vcmp.lt.s32.totalorder %v56, 16
    %v97 = vsel %vm96, %v93, %v95
    %v98 = vsel %vm96, %v91, %v93
    %v99 = vsel %vm96, %v89, %v91
    %v100 = vsel %vm96, %v95, %v89
    %v102 = vlaneseq
    %v103 = vshrl.u32 %v102, 7
    %v104 = vsub.s32 0, %v103
    %v105 = vrot.slane %v28, %v104
    %v106 = vlaneseq
    %v107 = vshrl.u32 %v106, 7
    %v108 = vsub.s32 1, %v107
    %v109 = vrot.slane %v28, %v108
    %v110 = vlaneseq
    %v111 = vshrl.u32 %v110, 7
    %v112 = vsub.s32 2, %v111
    %v113 = vrot.slane %v28, %v112
    %v114 = vlaneseq
    %v115 = vshrl.u32 %v114, 7
    %v116 = vsub.s32 3, %v115
    %v117 = vrot.slane %v28, %v116
    %v122 = vmul.f32 %v100, %v105
    %v123 = vmul.f32 %v99, %v109
    %v124 = vmul.f32 %v98, %v113
    %v125 = vmul.f32 %v97, %v117
    %s126 = scalar_lea.vmem %s1, 4
    %v127 = vld [vmem:[%s126] sm:$0xf]
    %vm128 = vcmask 31744
    %v130 = vsel %vm128, %v127, 0
    %vm132 = vcmask 1043456
    %v134 = vsel %vm132, %v122, 0
    %v137 = vsel %vm132, %v123, 0
    %v140 = vsel %vm132, %v124, 0
    %v143 = vsel %vm132, %v125, 0
    %145 = vmatprep.subr.mxu0 %v137
    %146 = vmatpush1.msra.mxu0 %v134
    %147 = vmatprep.subr.mxu0 0.0
    %148 = vmatpush1.msra.mxu0 0.0
    %149 = vmatprep.subr.mxu0 0.0
    %150 = vmatpush1.msra.mxu0 0.0
    %151 = vmatprep.subr.mxu0 0.0
    %152 = vmatpush1.msra.mxu0 0.0
    %153 = vmatprep.subr.mxu0 0.0
    %154 = vmatpush1.msra.mxu0 0.0
    %155 = vmatprep.subr.mxu0 0.0
    %156 = vmatpush1.msra.mxu0 0.0
    %157 = vmatprep.subr.mxu0 0.0
    %158 = vmatpush1.msra.mxu0 0.0
    %159 = vmatprep.subr.mxu0 0.0
    %160 = vmatpush1.msra.mxu0 0.0
    %161 = vmatprep.subr.mxu0 0.0
    %162 = vmatpush1.msra.mxu0 0.0
    %163 = vmatprep.subr.mxu0 0.0
    %164 = vmatpush1.msra.mxu0 0.0
    %165 = vmatprep.subr.mxu0 0.0
    %166 = vmatpush1.msra.mxu0 0.0
    %167 = vmatprep.subr.mxu0 0.0
    %168 = vmatpush1.msra.mxu0 0.0
    %169 = vmatprep.subr.mxu0 0.0
    %170 = vmatpush1.msra.mxu0 0.0
    %171 = vmatprep.subr.mxu0 0.0
    %172 = vmatpush1.msra.mxu0 0.0
    %173 = vmatprep.subr.mxu0 0.0
    %174 = vmatpush1.msra.mxu0 0.0
    %175 = vmatprep.subr.mxu0 0.0
    %176 = vmatpush1.msra.mxu0 0.0
    %177 = vmatprep.subr.mxu0 0.0
    %178 = vmatpush1.msra.mxu0 0.0
    %179 = vmatprep.subr.mxu0 0.0
    %180 = vmatpush1.msra.mxu0 0.0
    %181 = vmatprep.subr.mxu0 0.0
    %182 = vmatpush1.msra.mxu0 0.0
    %183 = vmatprep.subr.mxu0 0.0
    %184 = vmatpush1.msra.mxu0 0.0
    %185 = vmatprep.subr.mxu0 0.0
    %186 = vmatpush1.msra.mxu0 0.0
    %187 = vmatprep.subr.mxu0 0.0
    %188 = vmatpush1.msra.mxu0 0.0
    %189 = vmatprep.subr.mxu0 0.0
    %190 = vmatpush1.msra.mxu0 0.0
    %191 = vmatprep.subr.mxu0 0.0
    %192 = vmatpush1.msra.mxu0 0.0
    %193 = vmatprep.subr.mxu0 0.0
    %194 = vmatpush1.msra.mxu0 0.0
    %195 = vmatprep.subr.mxu0 0.0
    %196 = vmatpush1.msra.mxu0 0.0
    %197 = vmatprep.subr.mxu0 0.0
    %198 = vmatpush1.msra.mxu0 0.0
    %199 = vmatprep.subr.mxu0 0.0
    %200 = vmatpush1.msra.mxu0 0.0
    %201 = vmatprep.subr.mxu0 0.0
    %202 = vmatpush1.msra.mxu0 0.0
    %203 = vmatprep.subr.mxu0 0.0
    %204 = vmatpush1.msra.mxu0 0.0
    %205 = vmatprep.subr.mxu0 0.0
    %206 = vmatpush1.msra.mxu0 0.0
    %207 = vmatprep.subr.mxu0 0.0
    %208 = vmatpush1.msra.mxu0 0.0
    %209 = vmatprep.mubr.f32.mxu0 0.0
    %210 = vmatmul.mubr.f32.gmra.mrb[0].mxu0 %v130
    %v211 = vpop.f32.mrb[0].mxu0
    %v212 = vadd.f32 0.0, %v211
    %v213 = vpop.f32.mrb[0].mxu0
    %v214 = vadd.f32 0.0, %v213
    %215 = vdwg.mxu0
    %216 = vmatprep.subr.mxu0 %v143
    %217 = vmatpush1.msra.mxu0 %v140
    %218 = vmatprep.subr.mxu0 0.0
    %219 = vmatpush1.msra.mxu0 0.0
    %220 = vmatprep.subr.mxu0 0.0
    %221 = vmatpush1.msra.mxu0 0.0
    %222 = vmatprep.subr.mxu0 0.0
    %223 = vmatpush1.msra.mxu0 0.0
    %224 = vmatprep.subr.mxu0 0.0
    %225 = vmatpush1.msra.mxu0 0.0
    %226 = vmatprep.subr.mxu0 0.0
    %227 = vmatpush1.msra.mxu0 0.0
    %228 = vmatprep.subr.mxu0 0.0
    %229 = vmatpush1.msra.mxu0 0.0
    %230 = vmatprep.subr.mxu0 0.0
    %231 = vmatpush1.msra.mxu0 0.0
    %232 = vmatprep.subr.mxu0 0.0
    %233 = vmatpush1.msra.mxu0 0.0
    %234 = vmatprep.subr.mxu0 0.0
    %235 = vmatpush1.msra.mxu0 0.0
    %236 = vmatprep.subr.mxu0 0.0
    %237 = vmatpush1.msra.mxu0 0.0
    %238 = vmatprep.subr.mxu0 0.0
    %239 = vmatpush1.msra.mxu0 0.0
    %240 = vmatprep.subr.mxu0 0.0
    %241 = vmatpush1.msra.mxu0 0.0
    %242 = vmatprep.subr.mxu0 0.0
    %243 = vmatpush1.msra.mxu0 0.0
    %244 = vmatprep.subr.mxu0 0.0
    %245 = vmatpush1.msra.mxu0 0.0
    %246 = vmatprep.subr.mxu0 0.0
    %247 = vmatpush1.msra.mxu0 0.0
    %248 = vmatprep.subr.mxu0 0.0
    %249 = vmatpush1.msra.mxu0 0.0
    %250 = vmatprep.subr.mxu0 0.0
    %251 = vmatpush1.msra.mxu0 0.0
    %252 = vmatprep.subr.mxu0 0.0
    %253 = vmatpush1.msra.mxu0 0.0
    %254 = vmatprep.subr.mxu0 0.0
    %255 = vmatpush1.msra.mxu0 0.0
    %256 = vmatprep.subr.mxu0 0.0
    %257 = vmatpush1.msra.mxu0 0.0
    %258 = vmatprep.subr.mxu0 0.0
    %259 = vmatpush1.msra.mxu0 0.0
    %260 = vmatprep.subr.mxu0 0.0
    %261 = vmatpush1.msra.mxu0 0.0
    %262 = vmatprep.subr.mxu0 0.0
    %263 = vmatpush1.msra.mxu0 0.0
    %264 = vmatprep.subr.mxu0 0.0
    %265 = vmatpush1.msra.mxu0 0.0
    %266 = vmatprep.subr.mxu0 0.0
    %267 = vmatpush1.msra.mxu0 0.0
    %268 = vmatprep.subr.mxu0 0.0
    %269 = vmatpush1.msra.mxu0 0.0
    %270 = vmatprep.subr.mxu0 0.0
    %271 = vmatpush1.msra.mxu0 0.0
    %272 = vmatprep.subr.mxu0 0.0
    %273 = vmatpush1.msra.mxu0 0.0
    %274 = vmatprep.subr.mxu0 0.0
    %275 = vmatpush1.msra.mxu0 0.0
    %276 = vmatprep.subr.mxu0 0.0
    %277 = vmatpush1.msra.mxu0 0.0
    %278 = vmatprep.subr.mxu0 0.0
    %279 = vmatpush1.msra.mxu0 0.0
    %280 = vmatprep.mubr.f32.mxu0 0.0
    %281 = vmatmul.mubr.f32.gmra.mrb[0].mxu0 %v130
    %v282 = vpop.f32.mrb[0].mxu0
    %v283 = vadd.f32 0.0, %v282
    %v284 = vpop.f32.mrb[0].mxu0
    %v285 = vadd.f32 0.0, %v284
    %286 = vdwg.mxu0
    %v288 = vsel %vm128, %v87, 0
    %v291 = vsel %vm132, %v83, 0
    %v294 = vsel %vm132, %v84, 0
    %v297 = vsel %vm132, %v85, 0
    %v300 = vsel %vm132, %v86, 0
    %302 = vmatprep.subr.mxu0 %v294
    %303 = vmatpush1.msra.mxu0 %v291
    %304 = vmatprep.subr.mxu0 0.0
    %305 = vmatpush1.msra.mxu0 0.0
    %306 = vmatprep.subr.mxu0 0.0
    %307 = vmatpush1.msra.mxu0 0.0
    %308 = vmatprep.subr.mxu0 0.0
    %309 = vmatpush1.msra.mxu0 0.0
    %310 = vmatprep.subr.mxu0 0.0
    %311 = vmatpush1.msra.mxu0 0.0
    %312 = vmatprep.subr.mxu0 0.0
    %313 = vmatpush1.msra.mxu0 0.0
    %314 = vmatprep.subr.mxu0 0.0
    %315 = vmatpush1.msra.mxu0 0.0
    %316 = vmatprep.subr.mxu0 0.0
    %317 = vmatpush1.msra.mxu0 0.0
    %318 = vmatprep.subr.mxu0 0.0
    %319 = vmatpush1.msra.mxu0 0.0
    %320 = vmatprep.subr.mxu0 0.0
    %321 = vmatpush1.msra.mxu0 0.0
    %322 = vmatprep.subr.mxu0 0.0
    %323 = vmatpush1.msra.mxu0 0.0
    %324 = vmatprep.subr.mxu0 0.0
    %325 = vmatpush1.msra.mxu0 0.0
    %326 = vmatprep.subr.mxu0 0.0
    %327 = vmatpush1.msra.mxu0 0.0
    %328 = vmatprep.subr.mxu0 0.0
    %329 = vmatpush1.msra.mxu0 0.0
    %330 = vmatprep.subr.mxu0 0.0
    %331 = vmatpush1.msra.mxu0 0.0
    %332 = vmatprep.subr.mxu0 0.0
    %333 = vmatpush1.msra.mxu0 0.0
    %334 = vmatprep.subr.mxu0 0.0
    %335 = vmatpush1.msra.mxu0 0.0
    %336 = vmatprep.subr.mxu0 0.0
    %337 = vmatpush1.msra.mxu0 0.0
    %338 = vmatprep.subr.mxu0 0.0
    %339 = vmatpush1.msra.mxu0 0.0
    %340 = vmatprep.subr.mxu0 0.0
    %341 = vmatpush1.msra.mxu0 0.0
    %342 = vmatprep.subr.mxu0 0.0
    %343 = vmatpush1.msra.mxu0 0.0
    %344 = vmatprep.subr.mxu0 0.0
    %345 = vmatpush1.msra.mxu0 0.0
    %346 = vmatprep.subr.mxu0 0.0
    %347 = vmatpush1.msra.mxu0 0.0
    %348 = vmatprep.subr.mxu0 0.0
    %349 = vmatpush1.msra.mxu0 0.0
    %350 = vmatprep.subr.mxu0 0.0
    %351 = vmatpush1.msra.mxu0 0.0
    %352 = vmatprep.subr.mxu0 0.0
    %353 = vmatpush1.msra.mxu0 0.0
    %354 = vmatprep.subr.mxu0 0.0
    %355 = vmatpush1.msra.mxu0 0.0
    %356 = vmatprep.subr.mxu0 0.0
    %357 = vmatpush1.msra.mxu0 0.0
    %358 = vmatprep.subr.mxu0 0.0
    %359 = vmatpush1.msra.mxu0 0.0
    %360 = vmatprep.subr.mxu0 0.0
    %361 = vmatpush1.msra.mxu0 0.0
    %362 = vmatprep.subr.mxu0 0.0
    %363 = vmatpush1.msra.mxu0 0.0
    %364 = vmatprep.subr.mxu0 0.0
    %365 = vmatpush1.msra.mxu0 0.0
    %366 = vmatprep.mubr.f32.mxu0 0.0
    %367 = vmatmul.mubr.f32.gmra.mrb[0].mxu0 %v288
    %v368 = vpop.f32.mrb[0].mxu0
    %v369 = vadd.f32 %v212, %v368
    %v370 = vpop.f32.mrb[0].mxu0
    %v371 = vadd.f32 %v214, %v370
    %372 = vdwg.mxu0
    %373 = vmatprep.subr.mxu0 %v300
    %374 = vmatpush1.msra.mxu0 %v297
    %375 = vmatprep.subr.mxu0 0.0
    %376 = vmatpush1.msra.mxu0 0.0
    %377 = vmatprep.subr.mxu0 0.0
    %378 = vmatpush1.msra.mxu0 0.0
    %379 = vmatprep.subr.mxu0 0.0
    %380 = vmatpush1.msra.mxu0 0.0
    %381 = vmatprep.subr.mxu0 0.0
    %382 = vmatpush1.msra.mxu0 0.0
    %383 = vmatprep.subr.mxu0 0.0
    %384 = vmatpush1.msra.mxu0 0.0
    %385 = vmatprep.subr.mxu0 0.0
    %386 = vmatpush1.msra.mxu0 0.0
    %387 = vmatprep.subr.mxu0 0.0
    %388 = vmatpush1.msra.mxu0 0.0
    %389 = vmatprep.subr.mxu0 0.0
    %390 = vmatpush1.msra.mxu0 0.0
    %391 = vmatprep.subr.mxu0 0.0
    %392 = vmatpush1.msra.mxu0 0.0
    %393 = vmatprep.subr.mxu0 0.0
    %394 = vmatpush1.msra.mxu0 0.0
    %395 = vmatprep.subr.mxu0 0.0
    %396 = vmatpush1.msra.mxu0 0.0
    %397 = vmatprep.subr.mxu0 0.0
    %398 = vmatpush1.msra.mxu0 0.0
    %399 = vmatprep.subr.mxu0 0.0
    %400 = vmatpush1.msra.mxu0 0.0
    %401 = vmatprep.subr.mxu0 0.0
    %402 = vmatpush1.msra.mxu0 0.0
    %403 = vmatprep.subr.mxu0 0.0
    %404 = vmatpush1.msra.mxu0 0.0
    %405 = vmatprep.subr.mxu0 0.0
    %406 = vmatpush1.msra.mxu0 0.0
    %407 = vmatprep.subr.mxu0 0.0
    %408 = vmatpush1.msra.mxu0 0.0
    %409 = vmatprep.subr.mxu0 0.0
    %410 = vmatpush1.msra.mxu0 0.0
    %411 = vmatprep.subr.mxu0 0.0
    %412 = vmatpush1.msra.mxu0 0.0
    %413 = vmatprep.subr.mxu0 0.0
    %414 = vmatpush1.msra.mxu0 0.0
    %415 = vmatprep.subr.mxu0 0.0
    %416 = vmatpush1.msra.mxu0 0.0
    %417 = vmatprep.subr.mxu0 0.0
    %418 = vmatpush1.msra.mxu0 0.0
    %419 = vmatprep.subr.mxu0 0.0
    %420 = vmatpush1.msra.mxu0 0.0
    %421 = vmatprep.subr.mxu0 0.0
    %422 = vmatpush1.msra.mxu0 0.0
    %423 = vmatprep.subr.mxu0 0.0
    %424 = vmatpush1.msra.mxu0 0.0
    %425 = vmatprep.subr.mxu0 0.0
    %426 = vmatpush1.msra.mxu0 0.0
    %427 = vmatprep.subr.mxu0 0.0
    %428 = vmatpush1.msra.mxu0 0.0
    %429 = vmatprep.subr.mxu0 0.0
    %430 = vmatpush1.msra.mxu0 0.0
    %431 = vmatprep.subr.mxu0 0.0
    %432 = vmatpush1.msra.mxu0 0.0
    %433 = vmatprep.subr.mxu0 0.0
    %434 = vmatpush1.msra.mxu0 0.0
    %435 = vmatprep.subr.mxu0 0.0
    %436 = vmatpush1.msra.mxu0 0.0
    %437 = vmatprep.mubr.f32.mxu0 0.0
    %438 = vmatmul.mubr.f32.gmra.mrb[0].mxu0 %v288
    %v439 = vpop.f32.mrb[0].mxu0
    %v440 = vadd.f32 %v283, %v439
    %v441 = vpop.f32.mrb[0].mxu0
    %v442 = vadd.f32 %v285, %v441
    %443 = vdwg.mxu0
    %444 = vrot.lane.b32.xlu0 %v24, 15
    %v445 = vpop.permute.xlu0 %444
    %446 = vrot.lane.b32.xlu0 %v43, 15
    %v447 = vpop.permute.xlu0 %446
    %448 = vrot.lane.b32.xlu0 %v25, 15
    %v449 = vpop.permute.xlu0 %448
    %450 = vrot.lane.b32.xlu0 %v44, 15
    %v451 = vpop.permute.xlu0 %450
    %vm452 = vcmp.lt.s32.totalorder %v56, 15
    %v453 = vsel %vm452, %v449, %v451
    %v454 = vsel %vm452, %v447, %v449
    %v455 = vsel %vm452, %v445, %v447
    %v456 = vsel %vm452, %v451, %v445
    %v458 = vlaneseq
    %v459 = vshrl.u32 %v458, 7
    %v460 = vsub.s32 0, %v459
    %v461 = vrot.slane %v30, %v460
    %v462 = vlaneseq
    %v463 = vshrl.u32 %v462, 7
    %v464 = vsub.s32 1, %v463
    %v465 = vrot.slane %v30, %v464
    %v466 = vlaneseq
    %v467 = vshrl.u32 %v466, 7
    %v468 = vsub.s32 2, %v467
    %v469 = vrot.slane %v30, %v468
    %v470 = vlaneseq
    %v471 = vshrl.u32 %v470, 7
    %v472 = vsub.s32 3, %v471
    %v473 = vrot.slane %v30, %v472
    %v478 = vmul.f32 %v456, %v461
    %v479 = vmul.f32 %v455, %v465
    %v480 = vmul.f32 %v454, %v469
    %v481 = vmul.f32 %v453, %v473
    %s482 = scalar_lea.vmem %s1, 8
    %v483 = vld [vmem:[%s482] sm:$0xf]
    %v485 = vsel %vm128, %v483, 0
    %v488 = vsel %vm132, %v478, 0
    %v491 = vsel %vm132, %v479, 0
    %v494 = vsel %vm132, %v480, 0
    %v497 = vsel %vm132, %v481, 0
    %499 = vmatprep.subr.mxu0 %v491
    %500 = vmatpush1.msra.mxu0 %v488
    %501 = vmatprep.subr.mxu0 0.0
    %502 = vmatpush1.msra.mxu0 0.0
    %503 = vmatprep.subr.mxu0 0.0
    %504 = vmatpush1.msra.mxu0 0.0
    %505 = vmatprep.subr.mxu0 0.0
    %506 = vmatpush1.msra.mxu0 0.0
    %507 = vmatprep.subr.mxu0 0.0
    %508 = vmatpush1.msra.mxu0 0.0
    %509 = vmatprep.subr.mxu0 0.0
    %510 = vmatpush1.msra.mxu0 0.0
    %511 = vmatprep.subr.mxu0 0.0
    %512 = vmatpush1.msra.mxu0 0.0
    %513 = vmatprep.subr.mxu0 0.0
    %514 = vmatpush1.msra.mxu0 0.0
    %515 = vmatprep.subr.mxu0 0.0
    %516 = vmatpush1.msra.mxu0 0.0
    %517 = vmatprep.subr.mxu0 0.0
    %518 = vmatpush1.msra.mxu0 0.0
    %519 = vmatprep.subr.mxu0 0.0
    %520 = vmatpush1.msra.mxu0 0.0
    %521 = vmatprep.subr.mxu0 0.0
    %522 = vmatpush1.msra.mxu0 0.0
    %523 = vmatprep.subr.mxu0 0.0
    %524 = vmatpush1.msra.mxu0 0.0
    %525 = vmatprep.subr.mxu0 0.0
    %526 = vmatpush1.msra.mxu0 0.0
    %527 = vmatprep.subr.mxu0 0.0
    %528 = vmatpush1.msra.mxu0 0.0
    %529 = vmatprep.subr.mxu0 0.0
    %530 = vmatpush1.msra.mxu0 0.0
    %531 = vmatprep.subr.mxu0 0.0
    %532 = vmatpush1.msra.mxu0 0.0
    %533 = vmatprep.subr.mxu0 0.0
    %534 = vmatpush1.msra.mxu0 0.0
    %535 = vmatprep.subr.mxu0 0.0
    %536 = vmatpush1.msra.mxu0 0.0
    %537 = vmatprep.subr.mxu0 0.0
    %538 = vmatpush1.msra.mxu0 0.0
    %539 = vmatprep.subr.mxu0 0.0
    %540 = vmatpush1.msra.mxu0 0.0
    %541 = vmatprep.subr.mxu0 0.0
    %542 = vmatpush1.msra.mxu0 0.0
    %543 = vmatprep.subr.mxu0 0.0
    %544 = vmatpush1.msra.mxu0 0.0
    %545 = vmatprep.subr.mxu0 0.0
    %546 = vmatpush1.msra.mxu0 0.0
    %547 = vmatprep.subr.mxu0 0.0
    %548 = vmatpush1.msra.mxu0 0.0
    %549 = vmatprep.subr.mxu0 0.0
    %550 = vmatpush1.msra.mxu0 0.0
    %551 = vmatprep.subr.mxu0 0.0
    %552 = vmatpush1.msra.mxu0 0.0
    %553 = vmatprep.subr.mxu0 0.0
    %554 = vmatpush1.msra.mxu0 0.0
    %555 = vmatprep.subr.mxu0 0.0
    %556 = vmatpush1.msra.mxu0 0.0
    %557 = vmatprep.subr.mxu0 0.0
    %558 = vmatpush1.msra.mxu0 0.0
    %559 = vmatprep.subr.mxu0 0.0
    %560 = vmatpush1.msra.mxu0 0.0
    %561 = vmatprep.subr.mxu0 0.0
    %562 = vmatpush1.msra.mxu0 0.0
    %563 = vmatprep.mubr.f32.mxu0 0.0
    %564 = vmatmul.mubr.f32.gmra.mrb[0].mxu0 %v485
    %v565 = vpop.f32.mrb[0].mxu0
    %v566 = vadd.f32 0.0, %v565
    %v567 = vpop.f32.mrb[0].mxu0
    %v568 = vadd.f32 0.0, %v567
    %569 = vdwg.mxu0
    %570 = vmatprep.subr.mxu0 %v497
    %571 = vmatpush1.msra.mxu0 %v494
    %572 = vmatprep.subr.mxu0 0.0
    %573 = vmatpush1.msra.mxu0 0.0
    %574 = vmatprep.subr.mxu0 0.0
    %575 = vmatpush1.msra.mxu0 0.0
    %576 = vmatprep.subr.mxu0 0.0
    %577 = vmatpush1.msra.mxu0 0.0
    %578 = vmatprep.subr.mxu0 0.0
    %579 = vmatpush1.msra.mxu0 0.0
    %580 = vmatprep.subr.mxu0 0.0
    %581 = vmatpush1.msra.mxu0 0.0
    %582 = vmatprep.subr.mxu0 0.0
    %583 = vmatpush1.msra.mxu0 0.0
    %584 = vmatprep.subr.mxu0 0.0
    %585 = vmatpush1.msra.mxu0 0.0
    %586 = vmatprep.subr.mxu0 0.0
    %587 = vmatpush1.msra.mxu0 0.0
    %588 = vmatprep.subr.mxu0 0.0
    %589 = vmatpush1.msra.mxu0 0.0
    %590 = vmatprep.subr.mxu0 0.0
    %591 = vmatpush1.msra.mxu0 0.0
    %592 = vmatprep.subr.mxu0 0.0
    %593 = vmatpush1.msra.mxu0 0.0
    %594 = vmatprep.subr.mxu0 0.0
    %595 = vmatpush1.msra.mxu0 0.0
    %596 = vmatprep.subr.mxu0 0.0
    %597 = vmatpush1.msra.mxu0 0.0
    %598 = vmatprep.subr.mxu0 0.0
    %599 = vmatpush1.msra.mxu0 0.0
    %600 = vmatprep.subr.mxu0 0.0
    %601 = vmatpush1.msra.mxu0 0.0
    %602 = vmatprep.subr.mxu0 0.0
    %603 = vmatpush1.msra.mxu0 0.0
    %604 = vmatprep.subr.mxu0 0.0
    %605 = vmatpush1.msra.mxu0 0.0
    %606 = vmatprep.subr.mxu0 0.0
    %607 = vmatpush1.msra.mxu0 0.0
    %608 = vmatprep.subr.mxu0 0.0
    %609 = vmatpush1.msra.mxu0 0.0
    %610 = vmatprep.subr.mxu0 0.0
    %611 = vmatpush1.msra.mxu0 0.0
    %612 = vmatprep.subr.mxu0 0.0
    %613 = vmatpush1.msra.mxu0 0.0
    %614 = vmatprep.subr.mxu0 0.0
    %615 = vmatpush1.msra.mxu0 0.0
    %616 = vmatprep.subr.mxu0 0.0
    %617 = vmatpush1.msra.mxu0 0.0
    %618 = vmatprep.subr.mxu0 0.0
    %619 = vmatpush1.msra.mxu0 0.0
    %620 = vmatprep.subr.mxu0 0.0
    %621 = vmatpush1.msra.mxu0 0.0
    %622 = vmatprep.subr.mxu0 0.0
    %623 = vmatpush1.msra.mxu0 0.0
    %624 = vmatprep.subr.mxu0 0.0
    %625 = vmatpush1.msra.mxu0 0.0
    %626 = vmatprep.subr.mxu0 0.0
    %627 = vmatpush1.msra.mxu0 0.0
    %628 = vmatprep.subr.mxu0 0.0
    %629 = vmatpush1.msra.mxu0 0.0
    %630 = vmatprep.subr.mxu0 0.0
    %631 = vmatpush1.msra.mxu0 0.0
    %632 = vmatprep.subr.mxu0 0.0
    %633 = vmatpush1.msra.mxu0 0.0
    %634 = vmatprep.mubr.f32.mxu0 0.0
    %635 = vmatmul.mubr.f32.gmra.mrb[0].mxu0 %v485
    %v636 = vpop.f32.mrb[0].mxu0
    %v637 = vadd.f32 0.0, %v636
    %v638 = vpop.f32.mrb[0].mxu0
    %v639 = vadd.f32 0.0, %v638
    %640 = vdwg.mxu0
    %v641 = vadd.f32 %v369, %v566
    %v642 = vadd.f32 %v371, %v568
    %v643 = vadd.f32 %v440, %v637
    %v644 = vadd.f32 %v442, %v639
    %645 = vrot.lane.b32.xlu0 %v24, 1
    %v646 = vpop.permute.xlu0 %645
    %647 = vrot.lane.b32.xlu0 %v43, 1
    %v648 = vpop.permute.xlu0 %647
    %649 = vrot.lane.b32.xlu0 %v25, 1
    %v650 = vpop.permute.xlu0 %649
    %651 = vrot.lane.b32.xlu0 %v44, 1
    %v652 = vpop.permute.xlu0 %651
    %vm653 = vcmp.lt.s32.totalorder %v56, 1
    %v654 = vsel %vm653, %v650, %v652
    %v655 = vsel %vm653, %v648, %v650
    %v656 = vsel %vm653, %v646, %v648
    %v657 = vsel %vm653, %v652, %v646
    %v659 = vlaneseq
    %v660 = vshrl.u32 %v659, 7
    %v661 = vsub.s32 0, %v660
    %v662 = vrot.slane %v32, %v661
    %v663 = vlaneseq
    %v664 = vshrl.u32 %v663, 7
    %v665 = vsub.s32 1, %v664
    %v666 = vrot.slane %v32, %v665
    %v667 = vlaneseq
    %v668 = vshrl.u32 %v667, 7
    %v669 = vsub.s32 2, %v668
    %v670 = vrot.slane %v32, %v669
    %v671 = vlaneseq
    %v672 = vshrl.u32 %v671, 7
    %v673 = vsub.s32 3, %v672
    %v674 = vrot.slane %v32, %v673
    %v679 = vmul.f32 %v657, %v662
    %v680 = vmul.f32 %v656, %v666
    %v681 = vmul.f32 %v655, %v670
    %v682 = vmul.f32 %v654, %v674
    %s683 = scalar_lea.vmem %s1, 12
    %v684 = vld [vmem:[%s683] sm:$0xf]
    %v686 = vsel %vm128, %v684, 0
    %v689 = vsel %vm132, %v679, 0
    %v692 = vsel %vm132, %v680, 0
    %v695 = vsel %vm132, %v681, 0
    %v698 = vsel %vm132, %v682, 0
    %700 = vmatprep.subr.mxu0 %v692
    %701 = vmatpush1.msra.mxu0 %v689
    %702 = vmatprep.subr.mxu0 0.0
    %703 = vmatpush1.msra.mxu0 0.0
    %704 = vmatprep.subr.mxu0 0.0
    %705 = vmatpush1.msra.mxu0 0.0
    %706 = vmatprep.subr.mxu0 0.0
    %707 = vmatpush1.msra.mxu0 0.0
    %708 = vmatprep.subr.mxu0 0.0
    %709 = vmatpush1.msra.mxu0 0.0
    %710 = vmatprep.subr.mxu0 0.0
    %711 = vmatpush1.msra.mxu0 0.0
    %712 = vmatprep.subr.mxu0 0.0
    %713 = vmatpush1.msra.mxu0 0.0
    %714 = vmatprep.subr.mxu0 0.0
    %715 = vmatpush1.msra.mxu0 0.0
    %716 = vmatprep.subr.mxu0 0.0
    %717 = vmatpush1.msra.mxu0 0.0
    %718 = vmatprep.subr.mxu0 0.0
    %719 = vmatpush1.msra.mxu0 0.0
    %720 = vmatprep.subr.mxu0 0.0
    %721 = vmatpush1.msra.mxu0 0.0
    %722 = vmatprep.subr.mxu0 0.0
    %723 = vmatpush1.msra.mxu0 0.0
    %724 = vmatprep.subr.mxu0 0.0
    %725 = vmatpush1.msra.mxu0 0.0
    %726 = vmatprep.subr.mxu0 0.0
    %727 = vmatpush1.msra.mxu0 0.0
    %728 = vmatprep.subr.mxu0 0.0
    %729 = vmatpush1.msra.mxu0 0.0
    %730 = vmatprep.subr.mxu0 0.0
    %731 = vmatpush1.msra.mxu0 0.0
    %732 = vmatprep.subr.mxu0 0.0
    %733 = vmatpush1.msra.mxu0 0.0
    %734 = vmatprep.subr.mxu0 0.0
    %735 = vmatpush1.msra.mxu0 0.0
    %736 = vmatprep.subr.mxu0 0.0
    %737 = vmatpush1.msra.mxu0 0.0
    %738 = vmatprep.subr.mxu0 0.0
    %739 = vmatpush1.msra.mxu0 0.0
    %740 = vmatprep.subr.mxu0 0.0
    %741 = vmatpush1.msra.mxu0 0.0
    %742 = vmatprep.subr.mxu0 0.0
    %743 = vmatpush1.msra.mxu0 0.0
    %744 = vmatprep.subr.mxu0 0.0
    %745 = vmatpush1.msra.mxu0 0.0
    %746 = vmatprep.subr.mxu0 0.0
    %747 = vmatpush1.msra.mxu0 0.0
    %748 = vmatprep.subr.mxu0 0.0
    %749 = vmatpush1.msra.mxu0 0.0
    %750 = vmatprep.subr.mxu0 0.0
    %751 = vmatpush1.msra.mxu0 0.0
    %752 = vmatprep.subr.mxu0 0.0
    %753 = vmatpush1.msra.mxu0 0.0
    %754 = vmatprep.subr.mxu0 0.0
    %755 = vmatpush1.msra.mxu0 0.0
    %756 = vmatprep.subr.mxu0 0.0
    %757 = vmatpush1.msra.mxu0 0.0
    %758 = vmatprep.subr.mxu0 0.0
    %759 = vmatpush1.msra.mxu0 0.0
    %760 = vmatprep.subr.mxu0 0.0
    %761 = vmatpush1.msra.mxu0 0.0
    %762 = vmatprep.subr.mxu0 0.0
    %763 = vmatpush1.msra.mxu0 0.0
    %764 = vmatprep.mubr.f32.mxu0 0.0
    %765 = vmatmul.mubr.f32.gmra.mrb[0].mxu0 %v686
    %v766 = vpop.f32.mrb[0].mxu0
    %v767 = vadd.f32 0.0, %v766
    %v768 = vpop.f32.mrb[0].mxu0
    %v769 = vadd.f32 0.0, %v768
    %770 = vdwg.mxu0
    %771 = vmatprep.subr.mxu0 %v698
    %772 = vmatpush1.msra.mxu0 %v695
    %773 = vmatprep.subr.mxu0 0.0
    %774 = vmatpush1.msra.mxu0 0.0
    %775 = vmatprep.subr.mxu0 0.0
    %776 = vmatpush1.msra.mxu0 0.0
    %777 = vmatprep.subr.mxu0 0.0
    %778 = vmatpush1.msra.mxu0 0.0
    %779 = vmatprep.subr.mxu0 0.0
    %780 = vmatpush1.msra.mxu0 0.0
    %781 = vmatprep.subr.mxu0 0.0
    %782 = vmatpush1.msra.mxu0 0.0
    %783 = vmatprep.subr.mxu0 0.0
    %784 = vmatpush1.msra.mxu0 0.0
    %785 = vmatprep.subr.mxu0 0.0
    %786 = vmatpush1.msra.mxu0 0.0
    %787 = vmatprep.subr.mxu0 0.0
    %788 = vmatpush1.msra.mxu0 0.0
    %789 = vmatprep.subr.mxu0 0.0
    %790 = vmatpush1.msra.mxu0 0.0
    %791 = vmatprep.subr.mxu0 0.0
    %792 = vmatpush1.msra.mxu0 0.0
    %793 = vmatprep.subr.mxu0 0.0
    %794 = vmatpush1.msra.mxu0 0.0
    %795 = vmatprep.subr.mxu0 0.0
    %796 = vmatpush1.msra.mxu0 0.0
    %797 = vmatprep.subr.mxu0 0.0
    %798 = vmatpush1.msra.mxu0 0.0
    %799 = vmatprep.subr.mxu0 0.0
    %800 = vmatpush1.msra.mxu0 0.0
    %801 = vmatprep.subr.mxu0 0.0
    %802 = vmatpush1.msra.mxu0 0.0
    %803 = vmatprep.subr.mxu0 0.0
    %804 = vmatpush1.msra.mxu0 0.0
    %805 = vmatprep.subr.mxu0 0.0
    %806 = vmatpush1.msra.mxu0 0.0
    %807 = vmatprep.subr.mxu0 0.0
    %808 = vmatpush1.msra.mxu0 0.0
    %809 = vmatprep.subr.mxu0 0.0
    %810 = vmatpush1.msra.mxu0 0.0
    %811 = vmatprep.subr.mxu0 0.0
    %812 = vmatpush1.msra.mxu0 0.0
    %813 = vmatprep.subr.mxu0 0.0
    %814 = vmatpush1.msra.mxu0 0.0
    %815 = vmatprep.subr.mxu0 0.0
    %816 = vmatpush1.msra.mxu0 0.0
    %817 = vmatprep.subr.mxu0 0.0
    %818 = vmatpush1.msra.mxu0 0.0
    %819 = vmatprep.subr.mxu0 0.0
    %820 = vmatpush1.msra.mxu0 0.0
    %821 = vmatprep.subr.mxu0 0.0
    %822 = vmatpush1.msra.mxu0 0.0
    %823 = vmatprep.subr.mxu0 0.0
    %824 = vmatpush1.msra.mxu0 0.0
    %825 = vmatprep.subr.mxu0 0.0
    %826 = vmatpush1.msra.mxu0 0.0
    %827 = vmatprep.subr.mxu0 0.0
    %828 = vmatpush1.msra.mxu0 0.0
    %829 = vmatprep.subr.mxu0 0.0
    %830 = vmatpush1.msra.mxu0 0.0
    %831 = vmatprep.subr.mxu0 0.0
    %832 = vmatpush1.msra.mxu0 0.0
    %833 = vmatprep.subr.mxu0 0.0
    %834 = vmatpush1.msra.mxu0 0.0
    %835 = vmatprep.mubr.f32.mxu0 0.0
    %836 = vmatmul.mubr.f32.gmra.mrb[0].mxu0 %v686
    %v837 = vpop.f32.mrb[0].mxu0
    %v838 = vadd.f32 0.0, %v837
    %v839 = vpop.f32.mrb[0].mxu0
    %v840 = vadd.f32 0.0, %v839
    %841 = vdwg.mxu0
    %v842 = vadd.f32 %v641, %v767
    %v843 = vadd.f32 %v642, %v769
    %v844 = vadd.f32 %v643, %v838
    %v845 = vadd.f32 %v644, %v840
    %s846 = scalar_lea.vmem %s1, 16
    %v847 = vld [vmem:[%s846] sm:$0xf]
    %v849 = vsel %vm128, %v847, 0
    %v851 = vsel %vm132, %v24, 0
    %v853 = vsel %vm132, %v43, 0
    %v855 = vsel %vm132, %v25, 0
    %v857 = vsel %vm132, %v44, 0
    %859 = vmatprep.subr.mxu0 %v853
    %860 = vmatpush1.msra.mxu0 %v851
    %861 = vmatprep.subr.mxu0 0.0
    %862 = vmatpush1.msra.mxu0 0.0
    %863 = vmatprep.subr.mxu0 0.0
    %864 = vmatpush1.msra.mxu0 0.0
    %865 = vmatprep.subr.mxu0 0.0
    %866 = vmatpush1.msra.mxu0 0.0
    %867 = vmatprep.subr.mxu0 0.0
    %868 = vmatpush1.msra.mxu0 0.0
    %869 = vmatprep.subr.mxu0 0.0
    %870 = vmatpush1.msra.mxu0 0.0
    %871 = vmatprep.subr.mxu0 0.0
    %872 = vmatpush1.msra.mxu0 0.0
    %873 = vmatprep.subr.mxu0 0.0
    %874 = vmatpush1.msra.mxu0 0.0
    %875 = vmatprep.subr.mxu0 0.0
    %876 = vmatpush1.msra.mxu0 0.0
    %877 = vmatprep.subr.mxu0 0.0
    %878 = vmatpush1.msra.mxu0 0.0
    %879 = vmatprep.subr.mxu0 0.0
    %880 = vmatpush1.msra.mxu0 0.0
    %881 = vmatprep.subr.mxu0 0.0
    %882 = vmatpush1.msra.mxu0 0.0
    %883 = vmatprep.subr.mxu0 0.0
    %884 = vmatpush1.msra.mxu0 0.0
    %885 = vmatprep.subr.mxu0 0.0
    %886 = vmatpush1.msra.mxu0 0.0
    %887 = vmatprep.subr.mxu0 0.0
    %888 = vmatpush1.msra.mxu0 0.0
    %889 = vmatprep.subr.mxu0 0.0
    %890 = vmatpush1.msra.mxu0 0.0
    %891 = vmatprep.subr.mxu0 0.0
    %892 = vmatpush1.msra.mxu0 0.0
    %893 = vmatprep.subr.mxu0 0.0
    %894 = vmatpush1.msra.mxu0 0.0
    %895 = vmatprep.subr.mxu0 0.0
    %896 = vmatpush1.msra.mxu0 0.0
    %897 = vmatprep.subr.mxu0 0.0
    %898 = vmatpush1.msra.mxu0 0.0
    %899 = vmatprep.subr.mxu0 0.0
    %900 = vmatpush1.msra.mxu0 0.0
    %901 = vmatprep.subr.mxu0 0.0
    %902 = vmatpush1.msra.mxu0 0.0
    %903 = vmatprep.subr.mxu0 0.0
    %904 = vmatpush1.msra.mxu0 0.0
    %905 = vmatprep.subr.mxu0 0.0
    %906 = vmatpush1.msra.mxu0 0.0
    %907 = vmatprep.subr.mxu0 0.0
    %908 = vmatpush1.msra.mxu0 0.0
    %909 = vmatprep.subr.mxu0 0.0
    %910 = vmatpush1.msra.mxu0 0.0
    %911 = vmatprep.subr.mxu0 0.0
    %912 = vmatpush1.msra.mxu0 0.0
    %913 = vmatprep.subr.mxu0 0.0
    %914 = vmatpush1.msra.mxu0 0.0
    %915 = vmatprep.subr.mxu0 0.0
    %916 = vmatpush1.msra.mxu0 0.0
    %917 = vmatprep.subr.mxu0 0.0
    %918 = vmatpush1.msra.mxu0 0.0
    %919 = vmatprep.subr.mxu0 0.0
    %920 = vmatpush1.msra.mxu0 0.0
    %921 = vmatprep.subr.mxu0 0.0
    %922 = vmatpush1.msra.mxu0 0.0
    %923 = vmatprep.mubr.f32.mxu0 0.0
    %924 = vmatmul.mubr.f32.gmra.mrb[0].mxu0 %v849
    %v925 = vpop.f32.mrb[0].mxu0
    %v926 = vadd.f32 0.0, %v925
    %v927 = vpop.f32.mrb[0].mxu0
    %v928 = vadd.f32 0.0, %v927
    %929 = vdwg.mxu0
    %930 = vmatprep.subr.mxu0 %v857
    %931 = vmatpush1.msra.mxu0 %v855
    %932 = vmatprep.subr.mxu0 0.0
    %933 = vmatpush1.msra.mxu0 0.0
    %934 = vmatprep.subr.mxu0 0.0
    %935 = vmatpush1.msra.mxu0 0.0
    %936 = vmatprep.subr.mxu0 0.0
    %937 = vmatpush1.msra.mxu0 0.0
    %938 = vmatprep.subr.mxu0 0.0
    %939 = vmatpush1.msra.mxu0 0.0
    %940 = vmatprep.subr.mxu0 0.0
    %941 = vmatpush1.msra.mxu0 0.0
    %942 = vmatprep.subr.mxu0 0.0
    %943 = vmatpush1.msra.mxu0 0.0
    %944 = vmatprep.subr.mxu0 0.0
    %945 = vmatpush1.msra.mxu0 0.0
    %946 = vmatprep.subr.mxu0 0.0
    %947 = vmatpush1.msra.mxu0 0.0
    %948 = vmatprep.subr.mxu0 0.0
    %949 = vmatpush1.msra.mxu0 0.0
    %950 = vmatprep.subr.mxu0 0.0
    %951 = vmatpush1.msra.mxu0 0.0
    %952 = vmatprep.subr.mxu0 0.0
    %953 = vmatpush1.msra.mxu0 0.0
    %954 = vmatprep.subr.mxu0 0.0
    %955 = vmatpush1.msra.mxu0 0.0
    %956 = vmatprep.subr.mxu0 0.0
    %957 = vmatpush1.msra.mxu0 0.0
    %958 = vmatprep.subr.mxu0 0.0
    %959 = vmatpush1.msra.mxu0 0.0
    %960 = vmatprep.subr.mxu0 0.0
    %961 = vmatpush1.msra.mxu0 0.0
    %962 = vmatprep.subr.mxu0 0.0
    %963 = vmatpush1.msra.mxu0 0.0
    %964 = vmatprep.subr.mxu0 0.0
    %965 = vmatpush1.msra.mxu0 0.0
    %966 = vmatprep.subr.mxu0 0.0
    %967 = vmatpush1.msra.mxu0 0.0
    %968 = vmatprep.subr.mxu0 0.0
    %969 = vmatpush1.msra.mxu0 0.0
    %970 = vmatprep.subr.mxu0 0.0
    %971 = vmatpush1.msra.mxu0 0.0
    %972 = vmatprep.subr.mxu0 0.0
    %973 = vmatpush1.msra.mxu0 0.0
    %974 = vmatprep.subr.mxu0 0.0
    %975 = vmatpush1.msra.mxu0 0.0
    %976 = vmatprep.subr.mxu0 0.0
    %977 = vmatpush1.msra.mxu0 0.0
    %978 = vmatprep.subr.mxu0 0.0
    %979 = vmatpush1.msra.mxu0 0.0
    %980 = vmatprep.subr.mxu0 0.0
    %981 = vmatpush1.msra.mxu0 0.0
    %982 = vmatprep.subr.mxu0 0.0
    %983 = vmatpush1.msra.mxu0 0.0
    %984 = vmatprep.subr.mxu0 0.0
    %985 = vmatpush1.msra.mxu0 0.0
    %986 = vmatprep.subr.mxu0 0.0
    %987 = vmatpush1.msra.mxu0 0.0
    %988 = vmatprep.subr.mxu0 0.0
    %989 = vmatpush1.msra.mxu0 0.0
    %990 = vmatprep.subr.mxu0 0.0
    %991 = vmatpush1.msra.mxu0 0.0
    %992 = vmatprep.subr.mxu0 0.0
    %993 = vmatpush1.msra.mxu0 0.0
    %994 = vmatprep.mubr.f32.mxu0 0.0
    %995 = vmatmul.mubr.f32.gmra.mrb[0].mxu0 %v849
    %v996 = vpop.f32.mrb[0].mxu0
    %v997 = vadd.f32 0.0, %v996
    %v998 = vpop.f32.mrb[0].mxu0
    %v999 = vadd.f32 0.0, %v998
    %1000 = vdwg.mxu0
    %v1001 = vadd.f32 %v842, %v926
    %v1002 = vadd.f32 %v843, %v928
    %v1003 = vadd.f32 %v844, %v997
    %v1004 = vadd.f32 %v845, %v999
    %1005 = vrot.lane.b32.xlu0 %v24, 127
    %v1006 = vpop.permute.xlu0 %1005
    %1007 = vrot.lane.b32.xlu0 %v43, 127
    %v1008 = vpop.permute.xlu0 %1007
    %1009 = vrot.lane.b32.xlu0 %v25, 127
    %v1010 = vpop.permute.xlu0 %1009
    %1011 = vrot.lane.b32.xlu0 %v44, 127
    %v1012 = vpop.permute.xlu0 %1011
    %vm1013 = vcmp.lt.s32.totalorder %v56, 127
    %v1014 = vsel %vm1013, %v1010, %v1012
    %v1015 = vsel %vm1013, %v1008, %v1010
    %v1016 = vsel %vm1013, %v1006, %v1008
    %v1017 = vsel %vm1013, %v1012, %v1006
    %v1019 = vlaneseq
    %v1020 = vshrl.u32 %v1019, 7
    %v1021 = vsub.s32 0, %v1020
    %v1022 = vrot.slane %v34, %v1021
    %v1023 = vlaneseq
    %v1024 = vshrl.u32 %v1023, 7
    %v1025 = vsub.s32 1, %v1024
    %v1026 = vrot.slane %v34, %v1025
    %v1027 = vlaneseq
    %v1028 = vshrl.u32 %v1027, 7
    %v1029 = vsub.s32 2, %v1028
    %v1030 = vrot.slane %v34, %v1029
    %v1031 = vlaneseq
    %v1032 = vshrl.u32 %v1031, 7
    %v1033 = vsub.s32 3, %v1032
    %v1034 = vrot.slane %v34, %v1033
    %v1039 = vmul.f32 %v1016, %v1022
    %v1040 = vmul.f32 %v1015, %v1026
    %v1041 = vmul.f32 %v1014, %v1030
    %v1042 = vmul.f32 %v1017, %v1034
    %s1043 = scalar_lea.vmem %s1, 20
    %v1044 = vld [vmem:[%s1043] sm:$0xf]
    %v1046 = vsel %vm128, %v1044, 0
    %v1049 = vsel %vm132, %v1039, 0
    %v1052 = vsel %vm132, %v1040, 0
    %v1055 = vsel %vm132, %v1041, 0
    %v1058 = vsel %vm132, %v1042, 0
    %1060 = vmatprep.subr.mxu0 %v1052
    %1061 = vmatpush1.msra.mxu0 %v1049
    %1062 = vmatprep.subr.mxu0 0.0
    %1063 = vmatpush1.msra.mxu0 0.0
    %1064 = vmatprep.subr.mxu0 0.0
    %1065 = vmatpush1.msra.mxu0 0.0
    %1066 = vmatprep.subr.mxu0 0.0
    %1067 = vmatpush1.msra.mxu0 0.0
    %1068 = vmatprep.subr.mxu0 0.0
    %1069 = vmatpush1.msra.mxu0 0.0
    %1070 = vmatprep.subr.mxu0 0.0
    %1071 = vmatpush1.msra.mxu0 0.0
    %1072 = vmatprep.subr.mxu0 0.0
    %1073 = vmatpush1.msra.mxu0 0.0
    %1074 = vmatprep.subr.mxu0 0.0
    %1075 = vmatpush1.msra.mxu0 0.0
    %1076 = vmatprep.subr.mxu0 0.0
    %1077 = vmatpush1.msra.mxu0 0.0
    %1078 = vmatprep.subr.mxu0 0.0
    %1079 = vmatpush1.msra.mxu0 0.0
    %1080 = vmatprep.subr.mxu0 0.0
    %1081 = vmatpush1.msra.mxu0 0.0
    %1082 = vmatprep.subr.mxu0 0.0
    %1083 = vmatpush1.msra.mxu0 0.0
    %1084 = vmatprep.subr.mxu0 0.0
    %1085 = vmatpush1.msra.mxu0 0.0
    %1086 = vmatprep.subr.mxu0 0.0
    %1087 = vmatpush1.msra.mxu0 0.0
    %1088 = vmatprep.subr.mxu0 0.0
    %1089 = vmatpush1.msra.mxu0 0.0
    %1090 = vmatprep.subr.mxu0 0.0
    %1091 = vmatpush1.msra.mxu0 0.0
    %1092 = vmatprep.subr.mxu0 0.0
    %1093 = vmatpush1.msra.mxu0 0.0
    %1094 = vmatprep.subr.mxu0 0.0
    %1095 = vmatpush1.msra.mxu0 0.0
    %1096 = vmatprep.subr.mxu0 0.0
    %1097 = vmatpush1.msra.mxu0 0.0
    %1098 = vmatprep.subr.mxu0 0.0
    %1099 = vmatpush1.msra.mxu0 0.0
    %1100 = vmatprep.subr.mxu0 0.0
    %1101 = vmatpush1.msra.mxu0 0.0
    %1102 = vmatprep.subr.mxu0 0.0
    %1103 = vmatpush1.msra.mxu0 0.0
    %1104 = vmatprep.subr.mxu0 0.0
    %1105 = vmatpush1.msra.mxu0 0.0
    %1106 = vmatprep.subr.mxu0 0.0
    %1107 = vmatpush1.msra.mxu0 0.0
    %1108 = vmatprep.subr.mxu0 0.0
    %1109 = vmatpush1.msra.mxu0 0.0
    %1110 = vmatprep.subr.mxu0 0.0
    %1111 = vmatpush1.msra.mxu0 0.0
    %1112 = vmatprep.subr.mxu0 0.0
    %1113 = vmatpush1.msra.mxu0 0.0
    %1114 = vmatprep.subr.mxu0 0.0
    %1115 = vmatpush1.msra.mxu0 0.0
    %1116 = vmatprep.subr.mxu0 0.0
    %1117 = vmatpush1.msra.mxu0 0.0
    %1118 = vmatprep.subr.mxu0 0.0
    %1119 = vmatpush1.msra.mxu0 0.0
    %1120 = vmatprep.subr.mxu0 0.0
    %1121 = vmatpush1.msra.mxu0 0.0
    %1122 = vmatprep.subr.mxu0 0.0
    %1123 = vmatpush1.msra.mxu0 0.0
    %1124 = vmatprep.mubr.f32.mxu0 0.0
    %1125 = vmatmul.mubr.f32.gmra.mrb[0].mxu0 %v1046
    %v1126 = vpop.f32.mrb[0].mxu0
    %v1127 = vadd.f32 0.0, %v1126
    %v1128 = vpop.f32.mrb[0].mxu0
    %v1129 = vadd.f32 0.0, %v1128
    %1130 = vdwg.mxu0
    %1131 = vmatprep.subr.mxu0 %v1058
    %1132 = vmatpush1.msra.mxu0 %v1055
    %1133 = vmatprep.subr.mxu0 0.0
    %1134 = vmatpush1.msra.mxu0 0.0
    %1135 = vmatprep.subr.mxu0 0.0
    %1136 = vmatpush1.msra.mxu0 0.0
    %1137 = vmatprep.subr.mxu0 0.0
    %1138 = vmatpush1.msra.mxu0 0.0
    %1139 = vmatprep.subr.mxu0 0.0
    %1140 = vmatpush1.msra.mxu0 0.0
    %1141 = vmatprep.subr.mxu0 0.0
    %1142 = vmatpush1.msra.mxu0 0.0
    %1143 = vmatprep.subr.mxu0 0.0
    %1144 = vmatpush1.msra.mxu0 0.0
    %1145 = vmatprep.subr.mxu0 0.0
    %1146 = vmatpush1.msra.mxu0 0.0
    %1147 = vmatprep.subr.mxu0 0.0
    %1148 = vmatpush1.msra.mxu0 0.0
    %1149 = vmatprep.subr.mxu0 0.0
    %1150 = vmatpush1.msra.mxu0 0.0
    %1151 = vmatprep.subr.mxu0 0.0
    %1152 = vmatpush1.msra.mxu0 0.0
    %1153 = vmatprep.subr.mxu0 0.0
    %1154 = vmatpush1.msra.mxu0 0.0
    %1155 = vmatprep.subr.mxu0 0.0
    %1156 = vmatpush1.msra.mxu0 0.0
    %1157 = vmatprep.subr.mxu0 0.0
    %1158 = vmatpush1.msra.mxu0 0.0
    %1159 = vmatprep.subr.mxu0 0.0
    %1160 = vmatpush1.msra.mxu0 0.0
    %1161 = vmatprep.subr.mxu0 0.0
    %1162 = vmatpush1.msra.mxu0 0.0
    %1163 = vmatprep.subr.mxu0 0.0
    %1164 = vmatpush1.msra.mxu0 0.0
    %1165 = vmatprep.subr.mxu0 0.0
    %1166 = vmatpush1.msra.mxu0 0.0
    %1167 = vmatprep.subr.mxu0 0.0
    %1168 = vmatpush1.msra.mxu0 0.0
    %1169 = vmatprep.subr.mxu0 0.0
    %1170 = vmatpush1.msra.mxu0 0.0
    %1171 = vmatprep.subr.mxu0 0.0
    %1172 = vmatpush1.msra.mxu0 0.0
    %1173 = vmatprep.subr.mxu0 0.0
    %1174 = vmatpush1.msra.mxu0 0.0
    %1175 = vmatprep.subr.mxu0 0.0
    %1176 = vmatpush1.msra.mxu0 0.0
    %1177 = vmatprep.subr.mxu0 0.0
    %1178 = vmatpush1.msra.mxu0 0.0
    %1179 = vmatprep.subr.mxu0 0.0
    %1180 = vmatpush1.msra.mxu0 0.0
    %1181 = vmatprep.subr.mxu0 0.0
    %1182 = vmatpush1.msra.mxu0 0.0
    %1183 = vmatprep.subr.mxu0 0.0
    %1184 = vmatpush1.msra.mxu0 0.0
    %1185 = vmatprep.subr.mxu0 0.0
    %1186 = vmatpush1.msra.mxu0 0.0
    %1187 = vmatprep.subr.mxu0 0.0
    %1188 = vmatpush1.msra.mxu0 0.0
    %1189 = vmatprep.subr.mxu0 0.0
    %1190 = vmatpush1.msra.mxu0 0.0
    %1191 = vmatprep.subr.mxu0 0.0
    %1192 = vmatpush1.msra.mxu0 0.0
    %1193 = vmatprep.subr.mxu0 0.0
    %1194 = vmatpush1.msra.mxu0 0.0
    %1195 = vmatprep.mubr.f32.mxu0 0.0
    %1196 = vmatmul.mubr.f32.gmra.mrb[0].mxu0 %v1046
    %v1197 = vpop.f32.mrb[0].mxu0
    %v1198 = vadd.f32 0.0, %v1197
    %v1199 = vpop.f32.mrb[0].mxu0
    %v1200 = vadd.f32 0.0, %v1199
    %1201 = vdwg.mxu0
    %v1202 = vadd.f32 %v1001, %v1127
    %v1203 = vadd.f32 %v1002, %v1129
    %v1204 = vadd.f32 %v1003, %v1198
    %v1205 = vadd.f32 %v1004, %v1200
    %1206 = vrot.lane.b32.xlu0 %v24, 113
    %v1207 = vpop.permute.xlu0 %1206
    %1208 = vrot.lane.b32.xlu0 %v43, 113
    %v1209 = vpop.permute.xlu0 %1208
    %1210 = vrot.lane.b32.xlu0 %v25, 113
    %v1211 = vpop.permute.xlu0 %1210
    %1212 = vrot.lane.b32.xlu0 %v44, 113
    %v1213 = vpop.permute.xlu0 %1212
    %vm1214 = vcmp.lt.s32.totalorder %v56, 113
    %v1215 = vsel %vm1214, %v1211, %v1213
    %v1216 = vsel %vm1214, %v1209, %v1211
    %v1217 = vsel %vm1214, %v1207, %v1209
    %v1218 = vsel %vm1214, %v1213, %v1207
    %v1220 = vlaneseq
    %v1221 = vshrl.u32 %v1220, 7
    %v1222 = vsub.s32 0, %v1221
    %v1223 = vrot.slane %v36, %v1222
    %v1224 = vlaneseq
    %v1225 = vshrl.u32 %v1224, 7
    %v1226 = vsub.s32 1, %v1225
    %v1227 = vrot.slane %v36, %v1226
    %v1228 = vlaneseq
    %v1229 = vshrl.u32 %v1228, 7
    %v1230 = vsub.s32 2, %v1229
    %v1231 = vrot.slane %v36, %v1230
    %v1232 = vlaneseq
    %v1233 = vshrl.u32 %v1232, 7
    %v1234 = vsub.s32 3, %v1233
    %v1235 = vrot.slane %v36, %v1234
    %v1240 = vmul.f32 %v1217, %v1223
    %v1241 = vmul.f32 %v1216, %v1227
    %v1242 = vmul.f32 %v1215, %v1231
    %v1243 = vmul.f32 %v1218, %v1235
    %s1244 = scalar_lea.vmem %s1, 24
    %v1245 = vld [vmem:[%s1244] sm:$0xf]
    %v1247 = vsel %vm128, %v1245, 0
    %v1250 = vsel %vm132, %v1240, 0
    %v1253 = vsel %vm132, %v1241, 0
    %v1256 = vsel %vm132, %v1242, 0
    %v1259 = vsel %vm132, %v1243, 0
    %1261 = vmatprep.subr.mxu0 %v1253
    %1262 = vmatpush1.msra.mxu0 %v1250
    %1263 = vmatprep.subr.mxu0 0.0
    %1264 = vmatpush1.msra.mxu0 0.0
    %1265 = vmatprep.subr.mxu0 0.0
    %1266 = vmatpush1.msra.mxu0 0.0
    %1267 = vmatprep.subr.mxu0 0.0
    %1268 = vmatpush1.msra.mxu0 0.0
    %1269 = vmatprep.subr.mxu0 0.0
    %1270 = vmatpush1.msra.mxu0 0.0
    %1271 = vmatprep.subr.mxu0 0.0
    %1272 = vmatpush1.msra.mxu0 0.0
    %1273 = vmatprep.subr.mxu0 0.0
    %1274 = vmatpush1.msra.mxu0 0.0
    %1275 = vmatprep.subr.mxu0 0.0
    %1276 = vmatpush1.msra.mxu0 0.0
    %1277 = vmatprep.subr.mxu0 0.0
    %1278 = vmatpush1.msra.mxu0 0.0
    %1279 = vmatprep.subr.mxu0 0.0
    %1280 = vmatpush1.msra.mxu0 0.0
    %1281 = vmatprep.subr.mxu0 0.0
    %1282 = vmatpush1.msra.mxu0 0.0
    %1283 = vmatprep.subr.mxu0 0.0
    %1284 = vmatpush1.msra.mxu0 0.0
    %1285 = vmatprep.subr.mxu0 0.0
    %1286 = vmatpush1.msra.mxu0 0.0
    %1287 = vmatprep.subr.mxu0 0.0
    %1288 = vmatpush1.msra.mxu0 0.0
    %1289 = vmatprep.subr.mxu0 0.0
    %1290 = vmatpush1.msra.mxu0 0.0
    %1291 = vmatprep.subr.mxu0 0.0
    %1292 = vmatpush1.msra.mxu0 0.0
    %1293 = vmatprep.subr.mxu0 0.0
    %1294 = vmatpush1.msra.mxu0 0.0
    %1295 = vmatprep.subr.mxu0 0.0
    %1296 = vmatpush1.msra.mxu0 0.0
    %1297 = vmatprep.subr.mxu0 0.0
    %1298 = vmatpush1.msra.mxu0 0.0
    %1299 = vmatprep.subr.mxu0 0.0
    %1300 = vmatpush1.msra.mxu0 0.0
    %1301 = vmatprep.subr.mxu0 0.0
    %1302 = vmatpush1.msra.mxu0 0.0
    %1303 = vmatprep.subr.mxu0 0.0
    %1304 = vmatpush1.msra.mxu0 0.0
    %1305 = vmatprep.subr.mxu0 0.0
    %1306 = vmatpush1.msra.mxu0 0.0
    %1307 = vmatprep.subr.mxu0 0.0
    %1308 = vmatpush1.msra.mxu0 0.0
    %1309 = vmatprep.subr.mxu0 0.0
    %1310 = vmatpush1.msra.mxu0 0.0
    %1311 = vmatprep.subr.mxu0 0.0
    %1312 = vmatpush1.msra.mxu0 0.0
    %1313 = vmatprep.subr.mxu0 0.0
    %1314 = vmatpush1.msra.mxu0 0.0
    %1315 = vmatprep.subr.mxu0 0.0
    %1316 = vmatpush1.msra.mxu0 0.0
    %1317 = vmatprep.subr.mxu0 0.0
    %1318 = vmatpush1.msra.mxu0 0.0
    %1319 = vmatprep.subr.mxu0 0.0
    %1320 = vmatpush1.msra.mxu0 0.0
    %1321 = vmatprep.subr.mxu0 0.0
    %1322 = vmatpush1.msra.mxu0 0.0
    %1323 = vmatprep.subr.mxu0 0.0
    %1324 = vmatpush1.msra.mxu0 0.0
    %1325 = vmatprep.mubr.f32.mxu0 0.0
    %1326 = vmatmul.mubr.f32.gmra.mrb[0].mxu0 %v1247
    %v1327 = vpop.f32.mrb[0].mxu0
    %v1328 = vadd.f32 0.0, %v1327
    %v1329 = vpop.f32.mrb[0].mxu0
    %v1330 = vadd.f32 0.0, %v1329
    %1331 = vdwg.mxu0
    %1332 = vmatprep.subr.mxu0 %v1259
    %1333 = vmatpush1.msra.mxu0 %v1256
    %1334 = vmatprep.subr.mxu0 0.0
    %1335 = vmatpush1.msra.mxu0 0.0
    %1336 = vmatprep.subr.mxu0 0.0
    %1337 = vmatpush1.msra.mxu0 0.0
    %1338 = vmatprep.subr.mxu0 0.0
    %1339 = vmatpush1.msra.mxu0 0.0
    %1340 = vmatprep.subr.mxu0 0.0
    %1341 = vmatpush1.msra.mxu0 0.0
    %1342 = vmatprep.subr.mxu0 0.0
    %1343 = vmatpush1.msra.mxu0 0.0
    %1344 = vmatprep.subr.mxu0 0.0
    %1345 = vmatpush1.msra.mxu0 0.0
    %1346 = vmatprep.subr.mxu0 0.0
    %1347 = vmatpush1.msra.mxu0 0.0
    %1348 = vmatprep.subr.mxu0 0.0
    %1349 = vmatpush1.msra.mxu0 0.0
    %1350 = vmatprep.subr.mxu0 0.0
    %1351 = vmatpush1.msra.mxu0 0.0
    %1352 = vmatprep.subr.mxu0 0.0
    %1353 = vmatpush1.msra.mxu0 0.0
    %1354 = vmatprep.subr.mxu0 0.0
    %1355 = vmatpush1.msra.mxu0 0.0
    %1356 = vmatprep.subr.mxu0 0.0
    %1357 = vmatpush1.msra.mxu0 0.0
    %1358 = vmatprep.subr.mxu0 0.0
    %1359 = vmatpush1.msra.mxu0 0.0
    %1360 = vmatprep.subr.mxu0 0.0
    %1361 = vmatpush1.msra.mxu0 0.0
    %1362 = vmatprep.subr.mxu0 0.0
    %1363 = vmatpush1.msra.mxu0 0.0
    %1364 = vmatprep.subr.mxu0 0.0
    %1365 = vmatpush1.msra.mxu0 0.0
    %1366 = vmatprep.subr.mxu0 0.0
    %1367 = vmatpush1.msra.mxu0 0.0
    %1368 = vmatprep.subr.mxu0 0.0
    %1369 = vmatpush1.msra.mxu0 0.0
    %1370 = vmatprep.subr.mxu0 0.0
    %1371 = vmatpush1.msra.mxu0 0.0
    %1372 = vmatprep.subr.mxu0 0.0
    %1373 = vmatpush1.msra.mxu0 0.0
    %1374 = vmatprep.subr.mxu0 0.0
    %1375 = vmatpush1.msra.mxu0 0.0
    %1376 = vmatprep.subr.mxu0 0.0
    %1377 = vmatpush1.msra.mxu0 0.0
    %1378 = vmatprep.subr.mxu0 0.0
    %1379 = vmatpush1.msra.mxu0 0.0
    %1380 = vmatprep.subr.mxu0 0.0
    %1381 = vmatpush1.msra.mxu0 0.0
    %1382 = vmatprep.subr.mxu0 0.0
    %1383 = vmatpush1.msra.mxu0 0.0
    %1384 = vmatprep.subr.mxu0 0.0
    %1385 = vmatpush1.msra.mxu0 0.0
    %1386 = vmatprep.subr.mxu0 0.0
    %1387 = vmatpush1.msra.mxu0 0.0
    %1388 = vmatprep.subr.mxu0 0.0
    %1389 = vmatpush1.msra.mxu0 0.0
    %1390 = vmatprep.subr.mxu0 0.0
    %1391 = vmatpush1.msra.mxu0 0.0
    %1392 = vmatprep.subr.mxu0 0.0
    %1393 = vmatpush1.msra.mxu0 0.0
    %1394 = vmatprep.subr.mxu0 0.0
    %1395 = vmatpush1.msra.mxu0 0.0
    %1396 = vmatprep.mubr.f32.mxu0 0.0
    %1397 = vmatmul.mubr.f32.gmra.mrb[0].mxu0 %v1247
    %v1398 = vpop.f32.mrb[0].mxu0
    %v1399 = vadd.f32 0.0, %v1398
    %v1400 = vpop.f32.mrb[0].mxu0
    %v1401 = vadd.f32 0.0, %v1400
    %1402 = vdwg.mxu0
    %v1403 = vadd.f32 %v1202, %v1328
    %v1404 = vadd.f32 %v1203, %v1330
    %v1405 = vadd.f32 %v1204, %v1399
    %v1406 = vadd.f32 %v1205, %v1401
    %1407 = vrot.lane.b32.xlu0 %v24, 112
    %v1408 = vpop.permute.xlu0 %1407
    %1409 = vrot.lane.b32.xlu0 %v43, 112
    %v1410 = vpop.permute.xlu0 %1409
    %1411 = vrot.lane.b32.xlu0 %v25, 112
    %v1412 = vpop.permute.xlu0 %1411
    %1413 = vrot.lane.b32.xlu0 %v44, 112
    %v1414 = vpop.permute.xlu0 %1413
    %vm1415 = vcmp.lt.s32.totalorder %v56, 112
    %v1416 = vsel %vm1415, %v1412, %v1414
    %v1417 = vsel %vm1415, %v1410, %v1412
    %v1418 = vsel %vm1415, %v1408, %v1410
    %v1419 = vsel %vm1415, %v1414, %v1408
    %v1421 = vlaneseq
    %v1422 = vshrl.u32 %v1421, 7
    %v1423 = vsub.s32 0, %v1422
    %v1424 = vrot.slane %v38, %v1423
    %v1425 = vlaneseq
    %v1426 = vshrl.u32 %v1425, 7
    %v1427 = vsub.s32 1, %v1426
    %v1428 = vrot.slane %v38, %v1427
    %v1429 = vlaneseq
    %v1430 = vshrl.u32 %v1429, 7
    %v1431 = vsub.s32 2, %v1430
    %v1432 = vrot.slane %v38, %v1431
    %v1433 = vlaneseq
    %v1434 = vshrl.u32 %v1433, 7
    %v1435 = vsub.s32 3, %v1434
    %v1436 = vrot.slane %v38, %v1435
    %v1441 = vmul.f32 %v1418, %v1424
    %v1442 = vmul.f32 %v1417, %v1428
    %v1443 = vmul.f32 %v1416, %v1432
    %v1444 = vmul.f32 %v1419, %v1436
    %s1445 = scalar_lea.vmem %s1, 28
    %v1446 = vld [vmem:[%s1445] sm:$0xf]
    %v1448 = vsel %vm128, %v1446, 0
    %v1451 = vsel %vm132, %v1441, 0
    %v1454 = vsel %vm132, %v1442, 0
    %v1457 = vsel %vm132, %v1443, 0
    %v1460 = vsel %vm132, %v1444, 0
    %1462 = vmatprep.subr.mxu0 %v1454
    %1463 = vmatpush1.msra.mxu0 %v1451
    %1464 = vmatprep.subr.mxu0 0.0
    %1465 = vmatpush1.msra.mxu0 0.0
    %1466 = vmatprep.subr.mxu0 0.0
    %1467 = vmatpush1.msra.mxu0 0.0
    %1468 = vmatprep.subr.mxu0 0.0
    %1469 = vmatpush1.msra.mxu0 0.0
    %1470 = vmatprep.subr.mxu0 0.0
    %1471 = vmatpush1.msra.mxu0 0.0
    %1472 = vmatprep.subr.mxu0 0.0
    %1473 = vmatpush1.msra.mxu0 0.0
    %1474 = vmatprep.subr.mxu0 0.0
    %1475 = vmatpush1.msra.mxu0 0.0
    %1476 = vmatprep.subr.mxu0 0.0
    %1477 = vmatpush1.msra.mxu0 0.0
    %1478 = vmatprep.subr.mxu0 0.0
    %1479 = vmatpush1.msra.mxu0 0.0
    %1480 = vmatprep.subr.mxu0 0.0
    %1481 = vmatpush1.msra.mxu0 0.0
    %1482 = vmatprep.subr.mxu0 0.0
    %1483 = vmatpush1.msra.mxu0 0.0
    %1484 = vmatprep.subr.mxu0 0.0
    %1485 = vmatpush1.msra.mxu0 0.0
    %1486 = vmatprep.subr.mxu0 0.0
    %1487 = vmatpush1.msra.mxu0 0.0
    %1488 = vmatprep.subr.mxu0 0.0
    %1489 = vmatpush1.msra.mxu0 0.0
    %1490 = vmatprep.subr.mxu0 0.0
    %1491 = vmatpush1.msra.mxu0 0.0
    %1492 = vmatprep.subr.mxu0 0.0
    %1493 = vmatpush1.msra.mxu0 0.0
    %1494 = vmatprep.subr.mxu0 0.0
    %1495 = vmatpush1.msra.mxu0 0.0
    %1496 = vmatprep.subr.mxu0 0.0
    %1497 = vmatpush1.msra.mxu0 0.0
    %1498 = vmatprep.subr.mxu0 0.0
    %1499 = vmatpush1.msra.mxu0 0.0
    %1500 = vmatprep.subr.mxu0 0.0
    %1501 = vmatpush1.msra.mxu0 0.0
    %1502 = vmatprep.subr.mxu0 0.0
    %1503 = vmatpush1.msra.mxu0 0.0
    %1504 = vmatprep.subr.mxu0 0.0
    %1505 = vmatpush1.msra.mxu0 0.0
    %1506 = vmatprep.subr.mxu0 0.0
    %1507 = vmatpush1.msra.mxu0 0.0
    %1508 = vmatprep.subr.mxu0 0.0
    %1509 = vmatpush1.msra.mxu0 0.0
    %1510 = vmatprep.subr.mxu0 0.0
    %1511 = vmatpush1.msra.mxu0 0.0
    %1512 = vmatprep.subr.mxu0 0.0
    %1513 = vmatpush1.msra.mxu0 0.0
    %1514 = vmatprep.subr.mxu0 0.0
    %1515 = vmatpush1.msra.mxu0 0.0
    %1516 = vmatprep.subr.mxu0 0.0
    %1517 = vmatpush1.msra.mxu0 0.0
    %1518 = vmatprep.subr.mxu0 0.0
    %1519 = vmatpush1.msra.mxu0 0.0
    %1520 = vmatprep.subr.mxu0 0.0
    %1521 = vmatpush1.msra.mxu0 0.0
    %1522 = vmatprep.subr.mxu0 0.0
    %1523 = vmatpush1.msra.mxu0 0.0
    %1524 = vmatprep.subr.mxu0 0.0
    %1525 = vmatpush1.msra.mxu0 0.0
    %1526 = vmatprep.mubr.f32.mxu0 0.0
    %1527 = vmatmul.mubr.f32.gmra.mrb[0].mxu0 %v1448
    %v1528 = vpop.f32.mrb[0].mxu0
    %v1529 = vadd.f32 0.0, %v1528
    %v1530 = vpop.f32.mrb[0].mxu0
    %v1531 = vadd.f32 0.0, %v1530
    %1532 = vdwg.mxu0
    %1533 = vmatprep.subr.mxu0 %v1460
    %1534 = vmatpush1.msra.mxu0 %v1457
    %1535 = vmatprep.subr.mxu0 0.0
    %1536 = vmatpush1.msra.mxu0 0.0
    %1537 = vmatprep.subr.mxu0 0.0
    %1538 = vmatpush1.msra.mxu0 0.0
    %1539 = vmatprep.subr.mxu0 0.0
    %1540 = vmatpush1.msra.mxu0 0.0
    %1541 = vmatprep.subr.mxu0 0.0
    %1542 = vmatpush1.msra.mxu0 0.0
    %1543 = vmatprep.subr.mxu0 0.0
    %1544 = vmatpush1.msra.mxu0 0.0
    %1545 = vmatprep.subr.mxu0 0.0
    %1546 = vmatpush1.msra.mxu0 0.0
    %1547 = vmatprep.subr.mxu0 0.0
    %1548 = vmatpush1.msra.mxu0 0.0
    %1549 = vmatprep.subr.mxu0 0.0
    %1550 = vmatpush1.msra.mxu0 0.0
    %1551 = vmatprep.subr.mxu0 0.0
    %1552 = vmatpush1.msra.mxu0 0.0
    %1553 = vmatprep.subr.mxu0 0.0
    %1554 = vmatpush1.msra.mxu0 0.0
    %1555 = vmatprep.subr.mxu0 0.0
    %1556 = vmatpush1.msra.mxu0 0.0
    %1557 = vmatprep.subr.mxu0 0.0
    %1558 = vmatpush1.msra.mxu0 0.0
    %1559 = vmatprep.subr.mxu0 0.0
    %1560 = vmatpush1.msra.mxu0 0.0
    %1561 = vmatprep.subr.mxu0 0.0
    %1562 = vmatpush1.msra.mxu0 0.0
    %1563 = vmatprep.subr.mxu0 0.0
    %1564 = vmatpush1.msra.mxu0 0.0
    %1565 = vmatprep.subr.mxu0 0.0
    %1566 = vmatpush1.msra.mxu0 0.0
    %1567 = vmatprep.subr.mxu0 0.0
    %1568 = vmatpush1.msra.mxu0 0.0
    %1569 = vmatprep.subr.mxu0 0.0
    %1570 = vmatpush1.msra.mxu0 0.0
    %1571 = vmatprep.subr.mxu0 0.0
    %1572 = vmatpush1.msra.mxu0 0.0
    %1573 = vmatprep.subr.mxu0 0.0
    %1574 = vmatpush1.msra.mxu0 0.0
    %1575 = vmatprep.subr.mxu0 0.0
    %1576 = vmatpush1.msra.mxu0 0.0
    %1577 = vmatprep.subr.mxu0 0.0
    %1578 = vmatpush1.msra.mxu0 0.0
    %1579 = vmatprep.subr.mxu0 0.0
    %1580 = vmatpush1.msra.mxu0 0.0
    %1581 = vmatprep.subr.mxu0 0.0
    %1582 = vmatpush1.msra.mxu0 0.0
    %1583 = vmatprep.subr.mxu0 0.0
    %1584 = vmatpush1.msra.mxu0 0.0
    %1585 = vmatprep.subr.mxu0 0.0
    %1586 = vmatpush1.msra.mxu0 0.0
    %1587 = vmatprep.subr.mxu0 0.0
    %1588 = vmatpush1.msra.mxu0 0.0
    %1589 = vmatprep.subr.mxu0 0.0
    %1590 = vmatpush1.msra.mxu0 0.0
    %1591 = vmatprep.subr.mxu0 0.0
    %1592 = vmatpush1.msra.mxu0 0.0
    %1593 = vmatprep.subr.mxu0 0.0
    %1594 = vmatpush1.msra.mxu0 0.0
    %1595 = vmatprep.subr.mxu0 0.0
    %1596 = vmatpush1.msra.mxu0 0.0
    %1597 = vmatprep.mubr.f32.mxu0 0.0
    %1598 = vmatmul.mubr.f32.gmra.mrb[0].mxu0 %v1448
    %v1599 = vpop.f32.mrb[0].mxu0
    %v1600 = vadd.f32 0.0, %v1599
    %v1601 = vpop.f32.mrb[0].mxu0
    %v1602 = vadd.f32 0.0, %v1601
    %1603 = vdwg.mxu0
    %v1604 = vadd.f32 %v1403, %v1529
    %v1605 = vadd.f32 %v1404, %v1531
    %v1606 = vadd.f32 %v1405, %v1600
    %v1607 = vadd.f32 %v1406, %v1602
    %1608 = vrot.lane.b32.xlu0 %v24, 111
    %v1609 = vpop.permute.xlu0 %1608
    %1610 = vrot.lane.b32.xlu0 %v43, 111
    %v1611 = vpop.permute.xlu0 %1610
    %1612 = vrot.lane.b32.xlu0 %v25, 111
    %v1613 = vpop.permute.xlu0 %1612
    %1614 = vrot.lane.b32.xlu0 %v44, 111
    %v1615 = vpop.permute.xlu0 %1614
    %vm1616 = vcmp.lt.s32.totalorder %v56, 111
    %v1617 = vsel %vm1616, %v1613, %v1615
    %v1618 = vsel %vm1616, %v1611, %v1613
    %v1619 = vsel %vm1616, %v1609, %v1611
    %v1620 = vsel %vm1616, %v1615, %v1609
    %v1622 = vlaneseq
    %v1623 = vshrl.u32 %v1622, 7
    %v1624 = vsub.s32 0, %v1623
    %v1625 = vrot.slane %v40, %v1624
    %v1626 = vlaneseq
    %v1627 = vshrl.u32 %v1626, 7
    %v1628 = vsub.s32 1, %v1627
    %v1629 = vrot.slane %v40, %v1628
    %v1630 = vlaneseq
    %v1631 = vshrl.u32 %v1630, 7
    %v1632 = vsub.s32 2, %v1631
    %v1633 = vrot.slane %v40, %v1632
    %v1634 = vlaneseq
    %v1635 = vshrl.u32 %v1634, 7
    %v1636 = vsub.s32 3, %v1635
    %v1637 = vrot.slane %v40, %v1636
    %v1642 = vmul.f32 %v1619, %v1625
    %v1643 = vmul.f32 %v1618, %v1629
    %v1644 = vmul.f32 %v1617, %v1633
    %v1645 = vmul.f32 %v1620, %v1637
    %s1646 = scalar_lea.vmem %s1, 32
    %v1647 = vld [vmem:[%s1646] sm:$0xf]
    %v1649 = vsel %vm128, %v1647, 0
    %v1652 = vsel %vm132, %v1642, 0
    %v1655 = vsel %vm132, %v1643, 0
    %v1658 = vsel %vm132, %v1644, 0
    %v1661 = vsel %vm132, %v1645, 0
    %1663 = vmatprep.subr.mxu0 %v1655
    %1664 = vmatpush1.msra.mxu0 %v1652
    %1665 = vmatprep.subr.mxu0 0.0
    %1666 = vmatpush1.msra.mxu0 0.0
    %1667 = vmatprep.subr.mxu0 0.0
    %1668 = vmatpush1.msra.mxu0 0.0
    %1669 = vmatprep.subr.mxu0 0.0
    %1670 = vmatpush1.msra.mxu0 0.0
    %1671 = vmatprep.subr.mxu0 0.0
    %1672 = vmatpush1.msra.mxu0 0.0
    %1673 = vmatprep.subr.mxu0 0.0
    %1674 = vmatpush1.msra.mxu0 0.0
    %1675 = vmatprep.subr.mxu0 0.0
    %1676 = vmatpush1.msra.mxu0 0.0
    %1677 = vmatprep.subr.mxu0 0.0
    %1678 = vmatpush1.msra.mxu0 0.0
    %1679 = vmatprep.subr.mxu0 0.0
    %1680 = vmatpush1.msra.mxu0 0.0
    %1681 = vmatprep.subr.mxu0 0.0
    %1682 = vmatpush1.msra.mxu0 0.0
    %1683 = vmatprep.subr.mxu0 0.0
    %1684 = vmatpush1.msra.mxu0 0.0
    %1685 = vmatprep.subr.mxu0 0.0
    %1686 = vmatpush1.msra.mxu0 0.0
    %1687 = vmatprep.subr.mxu0 0.0
    %1688 = vmatpush1.msra.mxu0 0.0
    %1689 = vmatprep.subr.mxu0 0.0
    %1690 = vmatpush1.msra.mxu0 0.0
    %1691 = vmatprep.subr.mxu0 0.0
    %1692 = vmatpush1.msra.mxu0 0.0
    %1693 = vmatprep.subr.mxu0 0.0
    %1694 = vmatpush1.msra.mxu0 0.0
    %1695 = vmatprep.subr.mxu0 0.0
    %1696 = vmatpush1.msra.mxu0 0.0
    %1697 = vmatprep.subr.mxu0 0.0
    %1698 = vmatpush1.msra.mxu0 0.0
    %1699 = vmatprep.subr.mxu0 0.0
    %1700 = vmatpush1.msra.mxu0 0.0
    %1701 = vmatprep.subr.mxu0 0.0
    %1702 = vmatpush1.msra.mxu0 0.0
    %1703 = vmatprep.subr.mxu0 0.0
    %1704 = vmatpush1.msra.mxu0 0.0
    %1705 = vmatprep.subr.mxu0 0.0
    %1706 = vmatpush1.msra.mxu0 0.0
    %1707 = vmatprep.subr.mxu0 0.0
    %1708 = vmatpush1.msra.mxu0 0.0
    %1709 = vmatprep.subr.mxu0 0.0
    %1710 = vmatpush1.msra.mxu0 0.0
    %1711 = vmatprep.subr.mxu0 0.0
    %1712 = vmatpush1.msra.mxu0 0.0
    %1713 = vmatprep.subr.mxu0 0.0
    %1714 = vmatpush1.msra.mxu0 0.0
    %1715 = vmatprep.subr.mxu0 0.0
    %1716 = vmatpush1.msra.mxu0 0.0
    %1717 = vmatprep.subr.mxu0 0.0
    %1718 = vmatpush1.msra.mxu0 0.0
    %1719 = vmatprep.subr.mxu0 0.0
    %1720 = vmatpush1.msra.mxu0 0.0
    %1721 = vmatprep.subr.mxu0 0.0
    %1722 = vmatpush1.msra.mxu0 0.0
    %1723 = vmatprep.subr.mxu0 0.0
    %1724 = vmatpush1.msra.mxu0 0.0
    %1725 = vmatprep.subr.mxu0 0.0
    %1726 = vmatpush1.msra.mxu0 0.0
    %1727 = vmatprep.mubr.f32.mxu0 0.0
    %1728 = vmatmul.mubr.f32.gmra.mrb[0].mxu0 %v1649
    %v1729 = vpop.f32.mrb[0].mxu0
    %v1730 = vadd.f32 0.0, %v1729
    %v1731 = vpop.f32.mrb[0].mxu0
    %v1732 = vadd.f32 0.0, %v1731
    %1733 = vdwg.mxu0
    %1734 = vmatprep.subr.mxu0 %v1661
    %1735 = vmatpush1.msra.mxu0 %v1658
    %1736 = vmatprep.subr.mxu0 0.0
    %1737 = vmatpush1.msra.mxu0 0.0
    %1738 = vmatprep.subr.mxu0 0.0
    %1739 = vmatpush1.msra.mxu0 0.0
    %1740 = vmatprep.subr.mxu0 0.0
    %1741 = vmatpush1.msra.mxu0 0.0
    %1742 = vmatprep.subr.mxu0 0.0
    %1743 = vmatpush1.msra.mxu0 0.0
    %1744 = vmatprep.subr.mxu0 0.0
    %1745 = vmatpush1.msra.mxu0 0.0
    %1746 = vmatprep.subr.mxu0 0.0
    %1747 = vmatpush1.msra.mxu0 0.0
    %1748 = vmatprep.subr.mxu0 0.0
    %1749 = vmatpush1.msra.mxu0 0.0
    %1750 = vmatprep.subr.mxu0 0.0
    %1751 = vmatpush1.msra.mxu0 0.0
    %1752 = vmatprep.subr.mxu0 0.0
    %1753 = vmatpush1.msra.mxu0 0.0
    %1754 = vmatprep.subr.mxu0 0.0
    %1755 = vmatpush1.msra.mxu0 0.0
    %1756 = vmatprep.subr.mxu0 0.0
    %1757 = vmatpush1.msra.mxu0 0.0
    %1758 = vmatprep.subr.mxu0 0.0
    %1759 = vmatpush1.msra.mxu0 0.0
    %1760 = vmatprep.subr.mxu0 0.0
    %1761 = vmatpush1.msra.mxu0 0.0
    %1762 = vmatprep.subr.mxu0 0.0
    %1763 = vmatpush1.msra.mxu0 0.0
    %1764 = vmatprep.subr.mxu0 0.0
    %1765 = vmatpush1.msra.mxu0 0.0
    %1766 = vmatprep.subr.mxu0 0.0
    %1767 = vmatpush1.msra.mxu0 0.0
    %1768 = vmatprep.subr.mxu0 0.0
    %1769 = vmatpush1.msra.mxu0 0.0
    %1770 = vmatprep.subr.mxu0 0.0
    %1771 = vmatpush1.msra.mxu0 0.0
    %1772 = vmatprep.subr.mxu0 0.0
    %1773 = vmatpush1.msra.mxu0 0.0
    %1774 = vmatprep.subr.mxu0 0.0
    %1775 = vmatpush1.msra.mxu0 0.0
    %1776 = vmatprep.subr.mxu0 0.0
    %1777 = vmatpush1.msra.mxu0 0.0
    %1778 = vmatprep.subr.mxu0 0.0
    %1779 = vmatpush1.msra.mxu0 0.0
    %1780 = vmatprep.subr.mxu0 0.0
    %1781 = vmatpush1.msra.mxu0 0.0
    %1782 = vmatprep.subr.mxu0 0.0
    %1783 = vmatpush1.msra.mxu0 0.0
    %1784 = vmatprep.subr.mxu0 0.0
    %1785 = vmatpush1.msra.mxu0 0.0
    %1786 = vmatprep.subr.mxu0 0.0
    %1787 = vmatpush1.msra.mxu0 0.0
    %1788 = vmatprep.subr.mxu0 0.0
    %1789 = vmatpush1.msra.mxu0 0.0
    %1790 = vmatprep.subr.mxu0 0.0
    %1791 = vmatpush1.msra.mxu0 0.0
    %1792 = vmatprep.subr.mxu0 0.0
    %1793 = vmatpush1.msra.mxu0 0.0
    %1794 = vmatprep.subr.mxu0 0.0
    %1795 = vmatpush1.msra.mxu0 0.0
    %1796 = vmatprep.subr.mxu0 0.0
    %1797 = vmatpush1.msra.mxu0 0.0
    %1798 = vmatprep.mubr.f32.mxu0 0.0
    %1799 = vmatmul.mubr.f32.gmra.mrb[0].mxu0 %v1649
    %v1800 = vpop.f32.mrb[0].mxu0
    %v1801 = vadd.f32 0.0, %v1800
    %v1802 = vpop.f32.mrb[0].mxu0
    %v1803 = vadd.f32 0.0, %v1802
    %1804 = vdwg.mxu0
    %v1805 = vadd.f32 %v1604, %v1730
    %v1806 = vadd.f32 %v1605, %v1732
    %v1807 = vadd.f32 %v1606, %v1801
    %v1808 = vadd.f32 %v1607, %v1803
    %v1809 = vld [vmem:[%s2] sm:$0xf]
    %1811 = vset.pattern.permute.xlu0 0
    %1812 = vperm.xlu0 %1811, %v1809
    %v1813 = vpop.permute.xlu0 %1812
    %v1815 = vadd.f32 %v1805, %v1813
    %v1816 = vadd.f32 %v1806, %v1813
    %v1817 = vadd.f32 %v1807, %v1813
    %v1818 = vadd.f32 %v1808, %v1813
    %v1819 = vmax.f32 %v1815, 0.0
    %v1820 = vmax.f32 %v1816, 0.0
    %v1821 = vmax.f32 %v1817, 0.0
    %v1822 = vmax.f32 %v1818, 0.0
    %1823 = vrot.lane.b32.xlu0 %v1819, 17
    %v1824 = vpop.permute.xlu0 %1823
    %1825 = vrot.lane.b32.xlu0 %v1820, 17
    %v1826 = vpop.permute.xlu0 %1825
    %1827 = vrot.lane.b32.xlu0 %v1821, 17
    %v1828 = vpop.permute.xlu0 %1827
    %1829 = vrot.lane.b32.xlu0 %v1822, 17
    %v1830 = vpop.permute.xlu0 %1829
    %v1831 = vsel %vm57, %v1828, %v1830
    %v1832 = vsel %vm57, %v1826, %v1828
    %v1833 = vsel %vm57, %v1824, %v1826
    %v1834 = vsel %vm57, %v1830, %v1824
    %v1835 = vmul.f32 %v1834, %v66
    %v1836 = vmul.f32 %v1833, %v70
    %v1837 = vmul.f32 %v1832, %v74
    %v1838 = vmul.f32 %v1831, %v78
    %v1839 = vld [vmem:[%s3] sm:$0xf]
    %1840 = vrot.lane.b32.xlu0 %v1819, 16
    %v1841 = vpop.permute.xlu0 %1840
    %1842 = vrot.lane.b32.xlu0 %v1820, 16
    %v1843 = vpop.permute.xlu0 %1842
    %1844 = vrot.lane.b32.xlu0 %v1821, 16
    %v1845 = vpop.permute.xlu0 %1844
    %1846 = vrot.lane.b32.xlu0 %v1822, 16
    %v1847 = vpop.permute.xlu0 %1846
    %v1848 = vsel %vm96, %v1845, %v1847
    %v1849 = vsel %vm96, %v1843, %v1845
    %v1850 = vsel %vm96, %v1841, %v1843
    %v1851 = vsel %vm96, %v1847, %v1841
    %v1852 = vmul.f32 %v1851, %v105
    %v1853 = vmul.f32 %v1850, %v109
    %v1854 = vmul.f32 %v1849, %v113
    %v1855 = vmul.f32 %v1848, %v117
    %s1856 = scalar_lea.vmem %s3, 4
    %v1857 = vld [vmem:[%s1856] sm:$0xf]
    %v1859 = vsel %vm128, %v1857, 0
    %v1862 = vsel %vm132, %v1852, 0
    %v1865 = vsel %vm132, %v1853, 0
    %v1868 = vsel %vm132, %v1854, 0
    %v1871 = vsel %vm132, %v1855, 0
    %1873 = vmatprep.subr.mxu0 %v1865
    %1874 = vmatpush1.msra.mxu0 %v1862
    %1875 = vmatprep.subr.mxu0 0.0
    %1876 = vmatpush1.msra.mxu0 0.0
    %1877 = vmatprep.subr.mxu0 0.0
    %1878 = vmatpush1.msra.mxu0 0.0
    %1879 = vmatprep.subr.mxu0 0.0
    %1880 = vmatpush1.msra.mxu0 0.0
    %1881 = vmatprep.subr.mxu0 0.0
    %1882 = vmatpush1.msra.mxu0 0.0
    %1883 = vmatprep.subr.mxu0 0.0
    %1884 = vmatpush1.msra.mxu0 0.0
    %1885 = vmatprep.subr.mxu0 0.0
    %1886 = vmatpush1.msra.mxu0 0.0
    %1887 = vmatprep.subr.mxu0 0.0
    %1888 = vmatpush1.msra.mxu0 0.0
    %1889 = vmatprep.subr.mxu0 0.0
    %1890 = vmatpush1.msra.mxu0 0.0
    %1891 = vmatprep.subr.mxu0 0.0
    %1892 = vmatpush1.msra.mxu0 0.0
    %1893 = vmatprep.subr.mxu0 0.0
    %1894 = vmatpush1.msra.mxu0 0.0
    %1895 = vmatprep.subr.mxu0 0.0
    %1896 = vmatpush1.msra.mxu0 0.0
    %1897 = vmatprep.subr.mxu0 0.0
    %1898 = vmatpush1.msra.mxu0 0.0
    %1899 = vmatprep.subr.mxu0 0.0
    %1900 = vmatpush1.msra.mxu0 0.0
    %1901 = vmatprep.subr.mxu0 0.0
    %1902 = vmatpush1.msra.mxu0 0.0
    %1903 = vmatprep.subr.mxu0 0.0
    %1904 = vmatpush1.msra.mxu0 0.0
    %1905 = vmatprep.subr.mxu0 0.0
    %1906 = vmatpush1.msra.mxu0 0.0
    %1907 = vmatprep.subr.mxu0 0.0
    %1908 = vmatpush1.msra.mxu0 0.0
    %1909 = vmatprep.subr.mxu0 0.0
    %1910 = vmatpush1.msra.mxu0 0.0
    %1911 = vmatprep.subr.mxu0 0.0
    %1912 = vmatpush1.msra.mxu0 0.0
    %1913 = vmatprep.subr.mxu0 0.0
    %1914 = vmatpush1.msra.mxu0 0.0
    %1915 = vmatprep.subr.mxu0 0.0
    %1916 = vmatpush1.msra.mxu0 0.0
    %1917 = vmatprep.subr.mxu0 0.0
    %1918 = vmatpush1.msra.mxu0 0.0
    %1919 = vmatprep.subr.mxu0 0.0
    %1920 = vmatpush1.msra.mxu0 0.0
    %1921 = vmatprep.subr.mxu0 0.0
    %1922 = vmatpush1.msra.mxu0 0.0
    %1923 = vmatprep.subr.mxu0 0.0
    %1924 = vmatpush1.msra.mxu0 0.0
    %1925 = vmatprep.subr.mxu0 0.0
    %1926 = vmatpush1.msra.mxu0 0.0
    %1927 = vmatprep.subr.mxu0 0.0
    %1928 = vmatpush1.msra.mxu0 0.0
    %1929 = vmatprep.subr.mxu0 0.0
    %1930 = vmatpush1.msra.mxu0 0.0
    %1931 = vmatprep.subr.mxu0 0.0
    %1932 = vmatpush1.msra.mxu0 0.0
    %1933 = vmatprep.subr.mxu0 0.0
    %1934 = vmatpush1.msra.mxu0 0.0
    %1935 = vmatprep.subr.mxu0 0.0
    %1936 = vmatpush1.msra.mxu0 0.0
    %1937 = vmatprep.mubr.f32.mxu0 0.0
    %1938 = vmatmul.mubr.f32.gmra.mrb[0].mxu0 %v1859
    %v1939 = vpop.f32.mrb[0].mxu0
    %v1940 = vadd.f32 0.0, %v1939
    %v1941 = vpop.f32.mrb[0].mxu0
    %v1942 = vadd.f32 0.0, %v1941
    %1943 = vdwg.mxu0
    %1944 = vmatprep.subr.mxu0 %v1871
    %1945 = vmatpush1.msra.mxu0 %v1868
    %1946 = vmatprep.subr.mxu0 0.0
    %1947 = vmatpush1.msra.mxu0 0.0
    %1948 = vmatprep.subr.mxu0 0.0
    %1949 = vmatpush1.msra.mxu0 0.0
    %1950 = vmatprep.subr.mxu0 0.0
    %1951 = vmatpush1.msra.mxu0 0.0
    %1952 = vmatprep.subr.mxu0 0.0
    %1953 = vmatpush1.msra.mxu0 0.0
    %1954 = vmatprep.subr.mxu0 0.0
    %1955 = vmatpush1.msra.mxu0 0.0
    %1956 = vmatprep.subr.mxu0 0.0
    %1957 = vmatpush1.msra.mxu0 0.0
    %1958 = vmatprep.subr.mxu0 0.0
    %1959 = vmatpush1.msra.mxu0 0.0
    %1960 = vmatprep.subr.mxu0 0.0
    %1961 = vmatpush1.msra.mxu0 0.0
    %1962 = vmatprep.subr.mxu0 0.0
    %1963 = vmatpush1.msra.mxu0 0.0
    %1964 = vmatprep.subr.mxu0 0.0
    %1965 = vmatpush1.msra.mxu0 0.0
    %1966 = vmatprep.subr.mxu0 0.0
    %1967 = vmatpush1.msra.mxu0 0.0
    %1968 = vmatprep.subr.mxu0 0.0
    %1969 = vmatpush1.msra.mxu0 0.0
    %1970 = vmatprep.subr.mxu0 0.0
    %1971 = vmatpush1.msra.mxu0 0.0
    %1972 = vmatprep.subr.mxu0 0.0
    %1973 = vmatpush1.msra.mxu0 0.0
    %1974 = vmatprep.subr.mxu0 0.0
    %1975 = vmatpush1.msra.mxu0 0.0
    %1976 = vmatprep.subr.mxu0 0.0
    %1977 = vmatpush1.msra.mxu0 0.0
    %1978 = vmatprep.subr.mxu0 0.0
    %1979 = vmatpush1.msra.mxu0 0.0
    %1980 = vmatprep.subr.mxu0 0.0
    %1981 = vmatpush1.msra.mxu0 0.0
    %1982 = vmatprep.subr.mxu0 0.0
    %1983 = vmatpush1.msra.mxu0 0.0
    %1984 = vmatprep.subr.mxu0 0.0
    %1985 = vmatpush1.msra.mxu0 0.0
    %1986 = vmatprep.subr.mxu0 0.0
    %1987 = vmatpush1.msra.mxu0 0.0
    %1988 = vmatprep.subr.mxu0 0.0
    %1989 = vmatpush1.msra.mxu0 0.0
    %1990 = vmatprep.subr.mxu0 0.0
    %1991 = vmatpush1.msra.mxu0 0.0
    %1992 = vmatprep.subr.mxu0 0.0
    %1993 = vmatpush1.msra.mxu0 0.0
    %1994 = vmatprep.subr.mxu0 0.0
    %1995 = vmatpush1.msra.mxu0 0.0
    %1996 = vmatprep.subr.mxu0 0.0
    %1997 = vmatpush1.msra.mxu0 0.0
    %1998 = vmatprep.subr.mxu0 0.0
    %1999 = vmatpush1.msra.mxu0 0.0
    %2000 = vmatprep.subr.mxu0 0.0
    %2001 = vmatpush1.msra.mxu0 0.0
    %2002 = vmatprep.subr.mxu0 0.0
    %2003 = vmatpush1.msra.mxu0 0.0
    %2004 = vmatprep.subr.mxu0 0.0
    %2005 = vmatpush1.msra.mxu0 0.0
    %2006 = vmatprep.subr.mxu0 0.0
    %2007 = vmatpush1.msra.mxu0 0.0
    %2008 = vmatprep.mubr.f32.mxu0 0.0
    %2009 = vmatmul.mubr.f32.gmra.mrb[0].mxu0 %v1859
    %v2010 = vpop.f32.mrb[0].mxu0
    %v2011 = vadd.f32 0.0, %v2010
    %v2012 = vpop.f32.mrb[0].mxu0
    %v2013 = vadd.f32 0.0, %v2012
    %2014 = vdwg.mxu0
    %v2016 = vsel %vm128, %v1839, 0
    %v2019 = vsel %vm132, %v1835, 0
    %v2022 = vsel %vm132, %v1836, 0
    %v2025 = vsel %vm132, %v1837, 0
    %v2028 = vsel %vm132, %v1838, 0
    %2030 = vmatprep.subr.mxu0 %v2022
    %2031 = vmatpush1.msra.mxu0 %v2019
    %2032 = vmatprep.subr.mxu0 0.0
    %2033 = vmatpush1.msra.mxu0 0.0
    %2034 = vmatprep.subr.mxu0 0.0
    %2035 = vmatpush1.msra.mxu0 0.0
    %2036 = vmatprep.subr.mxu0 0.0
    %2037 = vmatpush1.msra.mxu0 0.0
    %2038 = vmatprep.subr.mxu0 0.0
    %2039 = vmatpush1.msra.mxu0 0.0
    %2040 = vmatprep.subr.mxu0 0.0
    %2041 = vmatpush1.msra.mxu0 0.0
    %2042 = vmatprep.subr.mxu0 0.0
    %2043 = vmatpush1.msra.mxu0 0.0
    %2044 = vmatprep.subr.mxu0 0.0
    %2045 = vmatpush1.msra.mxu0 0.0
    %2046 = vmatprep.subr.mxu0 0.0
    %2047 = vmatpush1.msra.mxu0 0.0
    %2048 = vmatprep.subr.mxu0 0.0
    %2049 = vmatpush1.msra.mxu0 0.0
    %2050 = vmatprep.subr.mxu0 0.0
    %2051 = vmatpush1.msra.mxu0 0.0
    %2052 = vmatprep.subr.mxu0 0.0
    %2053 = vmatpush1.msra.mxu0 0.0
    %2054 = vmatprep.subr.mxu0 0.0
    %2055 = vmatpush1.msra.mxu0 0.0
    %2056 = vmatprep.subr.mxu0 0.0
    %2057 = vmatpush1.msra.mxu0 0.0
    %2058 = vmatprep.subr.mxu0 0.0
    %2059 = vmatpush1.msra.mxu0 0.0
    %2060 = vmatprep.subr.mxu0 0.0
    %2061 = vmatpush1.msra.mxu0 0.0
    %2062 = vmatprep.subr.mxu0 0.0
    %2063 = vmatpush1.msra.mxu0 0.0
    %2064 = vmatprep.subr.mxu0 0.0
    %2065 = vmatpush1.msra.mxu0 0.0
    %2066 = vmatprep.subr.mxu0 0.0
    %2067 = vmatpush1.msra.mxu0 0.0
    %2068 = vmatprep.subr.mxu0 0.0
    %2069 = vmatpush1.msra.mxu0 0.0
    %2070 = vmatprep.subr.mxu0 0.0
    %2071 = vmatpush1.msra.mxu0 0.0
    %2072 = vmatprep.subr.mxu0 0.0
    %2073 = vmatpush1.msra.mxu0 0.0
    %2074 = vmatprep.subr.mxu0 0.0
    %2075 = vmatpush1.msra.mxu0 0.0
    %2076 = vmatprep.subr.mxu0 0.0
    %2077 = vmatpush1.msra.mxu0 0.0
    %2078 = vmatprep.subr.mxu0 0.0
    %2079 = vmatpush1.msra.mxu0 0.0
    %2080 = vmatprep.subr.mxu0 0.0
    %2081 = vmatpush1.msra.mxu0 0.0
    %2082 = vmatprep.subr.mxu0 0.0
    %2083 = vmatpush1.msra.mxu0 0.0
    %2084 = vmatprep.subr.mxu0 0.0
    %2085 = vmatpush1.msra.mxu0 0.0
    %2086 = vmatprep.subr.mxu0 0.0
    %2087 = vmatpush1.msra.mxu0 0.0
    %2088 = vmatprep.subr.mxu0 0.0
    %2089 = vmatpush1.msra.mxu0 0.0
    %2090 = vmatprep.subr.mxu0 0.0
    %2091 = vmatpush1.msra.mxu0 0.0
    %2092 = vmatprep.subr.mxu0 0.0
    %2093 = vmatpush1.msra.mxu0 0.0
    %2094 = vmatprep.mubr.f32.mxu0 0.0
    %2095 = vmatmul.mubr.f32.gmra.mrb[0].mxu0 %v2016
    %v2096 = vpop.f32.mrb[0].mxu0
    %v2097 = vadd.f32 %v1940, %v2096
    %v2098 = vpop.f32.mrb[0].mxu0
    %v2099 = vadd.f32 %v1942, %v2098
    %2100 = vdwg.mxu0
    %2101 = vmatprep.subr.mxu0 %v2028
    %2102 = vmatpush1.msra.mxu0 %v2025
    %2103 = vmatprep.subr.mxu0 0.0
    %2104 = vmatpush1.msra.mxu0 0.0
    %2105 = vmatprep.subr.mxu0 0.0
    %2106 = vmatpush1.msra.mxu0 0.0
    %2107 = vmatprep.subr.mxu0 0.0
    %2108 = vmatpush1.msra.mxu0 0.0
    %2109 = vmatprep.subr.mxu0 0.0
    %2110 = vmatpush1.msra.mxu0 0.0
    %2111 = vmatprep.subr.mxu0 0.0
    %2112 = vmatpush1.msra.mxu0 0.0
    %2113 = vmatprep.subr.mxu0 0.0
    %2114 = vmatpush1.msra.mxu0 0.0
    %2115 = vmatprep.subr.mxu0 0.0
    %2116 = vmatpush1.msra.mxu0 0.0
    %2117 = vmatprep.subr.mxu0 0.0
    %2118 = vmatpush1.msra.mxu0 0.0
    %2119 = vmatprep.subr.mxu0 0.0
    %2120 = vmatpush1.msra.mxu0 0.0
    %2121 = vmatprep.subr.mxu0 0.0
    %2122 = vmatpush1.msra.mxu0 0.0
    %2123 = vmatprep.subr.mxu0 0.0
    %2124 = vmatpush1.msra.mxu0 0.0
    %2125 = vmatprep.subr.mxu0 0.0
    %2126 = vmatpush1.msra.mxu0 0.0
    %2127 = vmatprep.subr.mxu0 0.0
    %2128 = vmatpush1.msra.mxu0 0.0
    %2129 = vmatprep.subr.mxu0 0.0
    %2130 = vmatpush1.msra.mxu0 0.0
    %2131 = vmatprep.subr.mxu0 0.0
    %2132 = vmatpush1.msra.mxu0 0.0
    %2133 = vmatprep.subr.mxu0 0.0
    %2134 = vmatpush1.msra.mxu0 0.0
    %2135 = vmatprep.subr.mxu0 0.0
    %2136 = vmatpush1.msra.mxu0 0.0
    %2137 = vmatprep.subr.mxu0 0.0
    %2138 = vmatpush1.msra.mxu0 0.0
    %2139 = vmatprep.subr.mxu0 0.0
    %2140 = vmatpush1.msra.mxu0 0.0
    %2141 = vmatprep.subr.mxu0 0.0
    %2142 = vmatpush1.msra.mxu0 0.0
    %2143 = vmatprep.subr.mxu0 0.0
    %2144 = vmatpush1.msra.mxu0 0.0
    %2145 = vmatprep.subr.mxu0 0.0
    %2146 = vmatpush1.msra.mxu0 0.0
    %2147 = vmatprep.subr.mxu0 0.0
    %2148 = vmatpush1.msra.mxu0 0.0
    %2149 = vmatprep.subr.mxu0 0.0
    %2150 = vmatpush1.msra.mxu0 0.0
    %2151 = vmatprep.subr.mxu0 0.0
    %2152 = vmatpush1.msra.mxu0 0.0
    %2153 = vmatprep.subr.mxu0 0.0
    %2154 = vmatpush1.msra.mxu0 0.0
    %2155 = vmatprep.subr.mxu0 0.0
    %2156 = vmatpush1.msra.mxu0 0.0
    %2157 = vmatprep.subr.mxu0 0.0
    %2158 = vmatpush1.msra.mxu0 0.0
    %2159 = vmatprep.subr.mxu0 0.0
    %2160 = vmatpush1.msra.mxu0 0.0
    %2161 = vmatprep.subr.mxu0 0.0
    %2162 = vmatpush1.msra.mxu0 0.0
    %2163 = vmatprep.subr.mxu0 0.0
    %2164 = vmatpush1.msra.mxu0 0.0
    %2165 = vmatprep.mubr.f32.mxu0 0.0
    %2166 = vmatmul.mubr.f32.gmra.mrb[0].mxu0 %v2016
    %v2167 = vpop.f32.mrb[0].mxu0
    %v2168 = vadd.f32 %v2011, %v2167
    %v2169 = vpop.f32.mrb[0].mxu0
    %v2170 = vadd.f32 %v2013, %v2169
    %2171 = vdwg.mxu0
    %2172 = vrot.lane.b32.xlu0 %v1819, 15
    %v2173 = vpop.permute.xlu0 %2172
    %2174 = vrot.lane.b32.xlu0 %v1820, 15
    %v2175 = vpop.permute.xlu0 %2174
    %2176 = vrot.lane.b32.xlu0 %v1821, 15
    %v2177 = vpop.permute.xlu0 %2176
    %2178 = vrot.lane.b32.xlu0 %v1822, 15
    %v2179 = vpop.permute.xlu0 %2178
    %v2180 = vsel %vm452, %v2177, %v2179
    %v2181 = vsel %vm452, %v2175, %v2177
    %v2182 = vsel %vm452, %v2173, %v2175
    %v2183 = vsel %vm452, %v2179, %v2173
    %v2184 = vmul.f32 %v2183, %v461
    %v2185 = vmul.f32 %v2182, %v465
    %v2186 = vmul.f32 %v2181, %v469
    %v2187 = vmul.f32 %v2180, %v473
    %s2188 = scalar_lea.vmem %s3, 8
    %v2189 = vld [vmem:[%s2188] sm:$0xf]
    %v2191 = vsel %vm128, %v2189, 0
    %v2194 = vsel %vm132, %v2184, 0
    %v2197 = vsel %vm132, %v2185, 0
    %v2200 = vsel %vm132, %v2186, 0
    %v2203 = vsel %vm132, %v2187, 0
    %2205 = vmatprep.subr.mxu0 %v2197
    %2206 = vmatpush1.msra.mxu0 %v2194
    %2207 = vmatprep.subr.mxu0 0.0
    %2208 = vmatpush1.msra.mxu0 0.0
    %2209 = vmatprep.subr.mxu0 0.0
    %2210 = vmatpush1.msra.mxu0 0.0
    %2211 = vmatprep.subr.mxu0 0.0
    %2212 = vmatpush1.msra.mxu0 0.0
    %2213 = vmatprep.subr.mxu0 0.0
    %2214 = vmatpush1.msra.mxu0 0.0
    %2215 = vmatprep.subr.mxu0 0.0
    %2216 = vmatpush1.msra.mxu0 0.0
    %2217 = vmatprep.subr.mxu0 0.0
    %2218 = vmatpush1.msra.mxu0 0.0
    %2219 = vmatprep.subr.mxu0 0.0
    %2220 = vmatpush1.msra.mxu0 0.0
    %2221 = vmatprep.subr.mxu0 0.0
    %2222 = vmatpush1.msra.mxu0 0.0
    %2223 = vmatprep.subr.mxu0 0.0
    %2224 = vmatpush1.msra.mxu0 0.0
    %2225 = vmatprep.subr.mxu0 0.0
    %2226 = vmatpush1.msra.mxu0 0.0
    %2227 = vmatprep.subr.mxu0 0.0
    %2228 = vmatpush1.msra.mxu0 0.0
    %2229 = vmatprep.subr.mxu0 0.0
    %2230 = vmatpush1.msra.mxu0 0.0
    %2231 = vmatprep.subr.mxu0 0.0
    %2232 = vmatpush1.msra.mxu0 0.0
    %2233 = vmatprep.subr.mxu0 0.0
    %2234 = vmatpush1.msra.mxu0 0.0
    %2235 = vmatprep.subr.mxu0 0.0
    %2236 = vmatpush1.msra.mxu0 0.0
    %2237 = vmatprep.subr.mxu0 0.0
    %2238 = vmatpush1.msra.mxu0 0.0
    %2239 = vmatprep.subr.mxu0 0.0
    %2240 = vmatpush1.msra.mxu0 0.0
    %2241 = vmatprep.subr.mxu0 0.0
    %2242 = vmatpush1.msra.mxu0 0.0
    %2243 = vmatprep.subr.mxu0 0.0
    %2244 = vmatpush1.msra.mxu0 0.0
    %2245 = vmatprep.subr.mxu0 0.0
    %2246 = vmatpush1.msra.mxu0 0.0
    %2247 = vmatprep.subr.mxu0 0.0
    %2248 = vmatpush1.msra.mxu0 0.0
    %2249 = vmatprep.subr.mxu0 0.0
    %2250 = vmatpush1.msra.mxu0 0.0
    %2251 = vmatprep.subr.mxu0 0.0
    %2252 = vmatpush1.msra.mxu0 0.0
    %2253 = vmatprep.subr.mxu0 0.0
    %2254 = vmatpush1.msra.mxu0 0.0
    %2255 = vmatprep.subr.mxu0 0.0
    %2256 = vmatpush1.msra.mxu0 0.0
    %2257 = vmatprep.subr.mxu0 0.0
    %2258 = vmatpush1.msra.mxu0 0.0
    %2259 = vmatprep.subr.mxu0 0.0
    %2260 = vmatpush1.msra.mxu0 0.0
    %2261 = vmatprep.subr.mxu0 0.0
    %2262 = vmatpush1.msra.mxu0 0.0
    %2263 = vmatprep.subr.mxu0 0.0
    %2264 = vmatpush1.msra.mxu0 0.0
    %2265 = vmatprep.subr.mxu0 0.0
    %2266 = vmatpush1.msra.mxu0 0.0
    %2267 = vmatprep.subr.mxu0 0.0
    %2268 = vmatpush1.msra.mxu0 0.0
    %2269 = vmatprep.mubr.f32.mxu0 0.0
    %2270 = vmatmul.mubr.f32.gmra.mrb[0].mxu0 %v2191
    %v2271 = vpop.f32.mrb[0].mxu0
    %v2272 = vadd.f32 0.0, %v2271
    %v2273 = vpop.f32.mrb[0].mxu0
    %v2274 = vadd.f32 0.0, %v2273
    %2275 = vdwg.mxu0
    %2276 = vmatprep.subr.mxu0 %v2203
    %2277 = vmatpush1.msra.mxu0 %v2200
    %2278 = vmatprep.subr.mxu0 0.0
    %2279 = vmatpush1.msra.mxu0 0.0
    %2280 = vmatprep.subr.mxu0 0.0
    %2281 = vmatpush1.msra.mxu0 0.0
    %2282 = vmatprep.subr.mxu0 0.0
    %2283 = vmatpush1.msra.mxu0 0.0
    %2284 = vmatprep.subr.mxu0 0.0
    %2285 = vmatpush1.msra.mxu0 0.0
    %2286 = vmatprep.subr.mxu0 0.0
    %2287 = vmatpush1.msra.mxu0 0.0
    %2288 = vmatprep.subr.mxu0 0.0
    %2289 = vmatpush1.msra.mxu0 0.0
    %2290 = vmatprep.subr.mxu0 0.0
    %2291 = vmatpush1.msra.mxu0 0.0
    %2292 = vmatprep.subr.mxu0 0.0
    %2293 = vmatpush1.msra.mxu0 0.0
    %2294 = vmatprep.subr.mxu0 0.0
    %2295 = vmatpush1.msra.mxu0 0.0
    %2296 = vmatprep.subr.mxu0 0.0
    %2297 = vmatpush1.msra.mxu0 0.0
    %2298 = vmatprep.subr.mxu0 0.0
    %2299 = vmatpush1.msra.mxu0 0.0
    %2300 = vmatprep.subr.mxu0 0.0
    %2301 = vmatpush1.msra.mxu0 0.0
    %2302 = vmatprep.subr.mxu0 0.0
    %2303 = vmatpush1.msra.mxu0 0.0
    %2304 = vmatprep.subr.mxu0 0.0
    %2305 = vmatpush1.msra.mxu0 0.0
    %2306 = vmatprep.subr.mxu0 0.0
    %2307 = vmatpush1.msra.mxu0 0.0
    %2308 = vmatprep.subr.mxu0 0.0
    %2309 = vmatpush1.msra.mxu0 0.0
    %2310 = vmatprep.subr.mxu0 0.0
    %2311 = vmatpush1.msra.mxu0 0.0
    %2312 = vmatprep.subr.mxu0 0.0
    %2313 = vmatpush1.msra.mxu0 0.0
    %2314 = vmatprep.subr.mxu0 0.0
    %2315 = vmatpush1.msra.mxu0 0.0
    %2316 = vmatprep.subr.mxu0 0.0
    %2317 = vmatpush1.msra.mxu0 0.0
    %2318 = vmatprep.subr.mxu0 0.0
    %2319 = vmatpush1.msra.mxu0 0.0
    %2320 = vmatprep.subr.mxu0 0.0
    %2321 = vmatpush1.msra.mxu0 0.0
    %2322 = vmatprep.subr.mxu0 0.0
    %2323 = vmatpush1.msra.mxu0 0.0
    %2324 = vmatprep.subr.mxu0 0.0
    %2325 = vmatpush1.msra.mxu0 0.0
    %2326 = vmatprep.subr.mxu0 0.0
    %2327 = vmatpush1.msra.mxu0 0.0
    %2328 = vmatprep.subr.mxu0 0.0
    %2329 = vmatpush1.msra.mxu0 0.0
    %2330 = vmatprep.subr.mxu0 0.0
    %2331 = vmatpush1.msra.mxu0 0.0
    %2332 = vmatprep.subr.mxu0 0.0
    %2333 = vmatpush1.msra.mxu0 0.0
    %2334 = vmatprep.subr.mxu0 0.0
    %2335 = vmatpush1.msra.mxu0 0.0
    %2336 = vmatprep.subr.mxu0 0.0
    %2337 = vmatpush1.msra.mxu0 0.0
    %2338 = vmatprep.subr.mxu0 0.0
    %2339 = vmatpush1.msra.mxu0 0.0
    %2340 = vmatprep.mubr.f32.mxu0 0.0
    %2341 = vmatmul.mubr.f32.gmra.mrb[0].mxu0 %v2191
    %v2342 = vpop.f32.mrb[0].mxu0
    %v2343 = vadd.f32 0.0, %v2342
    %v2344 = vpop.f32.mrb[0].mxu0
    %v2345 = vadd.f32 0.0, %v2344
    %2346 = vdwg.mxu0
    %v2347 = vadd.f32 %v2097, %v2272
    %v2348 = vadd.f32 %v2099, %v2274
    %v2349 = vadd.f32 %v2168, %v2343
    %v2350 = vadd.f32 %v2170, %v2345
    %2351 = vrot.lane.b32.xlu0 %v1819, 1
    %v2352 = vpop.permute.xlu0 %2351
    %2353 = vrot.lane.b32.xlu0 %v1820, 1
    %v2354 = vpop.permute.xlu0 %2353
    %2355 = vrot.lane.b32.xlu0 %v1821, 1
    %v2356 = vpop.permute.xlu0 %2355
    %2357 = vrot.lane.b32.xlu0 %v1822, 1
    %v2358 = vpop.permute.xlu0 %2357
    %v2359 = vsel %vm653, %v2356, %v2358
    %v2360 = vsel %vm653, %v2354, %v2356
    %v2361 = vsel %vm653, %v2352, %v2354
    %v2362 = vsel %vm653, %v2358, %v2352
    %v2363 = vmul.f32 %v2362, %v662
    %v2364 = vmul.f32 %v2361, %v666
    %v2365 = vmul.f32 %v2360, %v670
    %v2366 = vmul.f32 %v2359, %v674
    %s2367 = scalar_lea.vmem %s3, 12
    %v2368 = vld [vmem:[%s2367] sm:$0xf]
    %v2370 = vsel %vm128, %v2368, 0
    %v2373 = vsel %vm132, %v2363, 0
    %v2376 = vsel %vm132, %v2364, 0
    %v2379 = vsel %vm132, %v2365, 0
    %v2382 = vsel %vm132, %v2366, 0
    %2384 = vmatprep.subr.mxu0 %v2376
    %2385 = vmatpush1.msra.mxu0 %v2373
    %2386 = vmatprep.subr.mxu0 0.0
    %2387 = vmatpush1.msra.mxu0 0.0
    %2388 = vmatprep.subr.mxu0 0.0
    %2389 = vmatpush1.msra.mxu0 0.0
    %2390 = vmatprep.subr.mxu0 0.0
    %2391 = vmatpush1.msra.mxu0 0.0
    %2392 = vmatprep.subr.mxu0 0.0
    %2393 = vmatpush1.msra.mxu0 0.0
    %2394 = vmatprep.subr.mxu0 0.0
    %2395 = vmatpush1.msra.mxu0 0.0
    %2396 = vmatprep.subr.mxu0 0.0
    %2397 = vmatpush1.msra.mxu0 0.0
    %2398 = vmatprep.subr.mxu0 0.0
    %2399 = vmatpush1.msra.mxu0 0.0
    %2400 = vmatprep.subr.mxu0 0.0
    %2401 = vmatpush1.msra.mxu0 0.0
    %2402 = vmatprep.subr.mxu0 0.0
    %2403 = vmatpush1.msra.mxu0 0.0
    %2404 = vmatprep.subr.mxu0 0.0
    %2405 = vmatpush1.msra.mxu0 0.0
    %2406 = vmatprep.subr.mxu0 0.0
    %2407 = vmatpush1.msra.mxu0 0.0
    %2408 = vmatprep.subr.mxu0 0.0
    %2409 = vmatpush1.msra.mxu0 0.0
    %2410 = vmatprep.subr.mxu0 0.0
    %2411 = vmatpush1.msra.mxu0 0.0
    %2412 = vmatprep.subr.mxu0 0.0
    %2413 = vmatpush1.msra.mxu0 0.0
    %2414 = vmatprep.subr.mxu0 0.0
    %2415 = vmatpush1.msra.mxu0 0.0
    %2416 = vmatprep.subr.mxu0 0.0
    %2417 = vmatpush1.msra.mxu0 0.0
    %2418 = vmatprep.subr.mxu0 0.0
    %2419 = vmatpush1.msra.mxu0 0.0
    %2420 = vmatprep.subr.mxu0 0.0
    %2421 = vmatpush1.msra.mxu0 0.0
    %2422 = vmatprep.subr.mxu0 0.0
    %2423 = vmatpush1.msra.mxu0 0.0
    %2424 = vmatprep.subr.mxu0 0.0
    %2425 = vmatpush1.msra.mxu0 0.0
    %2426 = vmatprep.subr.mxu0 0.0
    %2427 = vmatpush1.msra.mxu0 0.0
    %2428 = vmatprep.subr.mxu0 0.0
    %2429 = vmatpush1.msra.mxu0 0.0
    %2430 = vmatprep.subr.mxu0 0.0
    %2431 = vmatpush1.msra.mxu0 0.0
    %2432 = vmatprep.subr.mxu0 0.0
    %2433 = vmatpush1.msra.mxu0 0.0
    %2434 = vmatprep.subr.mxu0 0.0
    %2435 = vmatpush1.msra.mxu0 0.0
    %2436 = vmatprep.subr.mxu0 0.0
    %2437 = vmatpush1.msra.mxu0 0.0
    %2438 = vmatprep.subr.mxu0 0.0
    %2439 = vmatpush1.msra.mxu0 0.0
    %2440 = vmatprep.subr.mxu0 0.0
    %2441 = vmatpush1.msra.mxu0 0.0
    %2442 = vmatprep.subr.mxu0 0.0
    %2443 = vmatpush1.msra.mxu0 0.0
    %2444 = vmatprep.subr.mxu0 0.0
    %2445 = vmatpush1.msra.mxu0 0.0
    %2446 = vmatprep.subr.mxu0 0.0
    %2447 = vmatpush1.msra.mxu0 0.0
    %2448 = vmatprep.mubr.f32.mxu0 0.0
    %2449 = vmatmul.mubr.f32.gmra.mrb[0].mxu0 %v2370
    %v2450 = vpop.f32.mrb[0].mxu0
    %v2451 = vadd.f32 0.0, %v2450
    %v2452 = vpop.f32.mrb[0].mxu0
    %v2453 = vadd.f32 0.0, %v2452
    %2454 = vdwg.mxu0
    %2455 = vmatprep.subr.mxu0 %v2382
    %2456 = vmatpush1.msra.mxu0 %v2379
    %2457 = vmatprep.subr.mxu0 0.0
    %2458 = vmatpush1.msra.mxu0 0.0
    %2459 = vmatprep.subr.mxu0 0.0
    %2460 = vmatpush1.msra.mxu0 0.0
    %2461 = vmatprep.subr.mxu0 0.0
    %2462 = vmatpush1.msra.mxu0 0.0
    %2463 = vmatprep.subr.mxu0 0.0
    %2464 = vmatpush1.msra.mxu0 0.0
    %2465 = vmatprep.subr.mxu0 0.0
    %2466 = vmatpush1.msra.mxu0 0.0
    %2467 = vmatprep.subr.mxu0 0.0
    %2468 = vmatpush1.msra.mxu0 0.0
    %2469 = vmatprep.subr.mxu0 0.0
    %2470 = vmatpush1.msra.mxu0 0.0
    %2471 = vmatprep.subr.mxu0 0.0
    %2472 = vmatpush1.msra.mxu0 0.0
    %2473 = vmatprep.subr.mxu0 0.0
    %2474 = vmatpush1.msra.mxu0 0.0
    %2475 = vmatprep.subr.mxu0 0.0
    %2476 = vmatpush1.msra.mxu0 0.0
    %2477 = vmatprep.subr.mxu0 0.0
    %2478 = vmatpush1.msra.mxu0 0.0
    %2479 = vmatprep.subr.mxu0 0.0
    %2480 = vmatpush1.msra.mxu0 0.0
    %2481 = vmatprep.subr.mxu0 0.0
    %2482 = vmatpush1.msra.mxu0 0.0
    %2483 = vmatprep.subr.mxu0 0.0
    %2484 = vmatpush1.msra.mxu0 0.0
    %2485 = vmatprep.subr.mxu0 0.0
    %2486 = vmatpush1.msra.mxu0 0.0
    %2487 = vmatprep.subr.mxu0 0.0
    %2488 = vmatpush1.msra.mxu0 0.0
    %2489 = vmatprep.subr.mxu0 0.0
    %2490 = vmatpush1.msra.mxu0 0.0
    %2491 = vmatprep.subr.mxu0 0.0
    %2492 = vmatpush1.msra.mxu0 0.0
    %2493 = vmatprep.subr.mxu0 0.0
    %2494 = vmatpush1.msra.mxu0 0.0
    %2495 = vmatprep.subr.mxu0 0.0
    %2496 = vmatpush1.msra.mxu0 0.0
    %2497 = vmatprep.subr.mxu0 0.0
    %2498 = vmatpush1.msra.mxu0 0.0
    %2499 = vmatprep.subr.mxu0 0.0
    %2500 = vmatpush1.msra.mxu0 0.0
    %2501 = vmatprep.subr.mxu0 0.0
    %2502 = vmatpush1.msra.mxu0 0.0
    %2503 = vmatprep.subr.mxu0 0.0
    %2504 = vmatpush1.msra.mxu0 0.0
    %2505 = vmatprep.subr.mxu0 0.0
    %2506 = vmatpush1.msra.mxu0 0.0
    %2507 = vmatprep.subr.mxu0 0.0
    %2508 = vmatpush1.msra.mxu0 0.0
    %2509 = vmatprep.subr.mxu0 0.0
    %2510 = vmatpush1.msra.mxu0 0.0
    %2511 = vmatprep.subr.mxu0 0.0
    %2512 = vmatpush1.msra.mxu0 0.0
    %2513 = vmatprep.subr.mxu0 0.0
    %2514 = vmatpush1.msra.mxu0 0.0
    %2515 = vmatprep.subr.mxu0 0.0
    %2516 = vmatpush1.msra.mxu0 0.0
    %2517 = vmatprep.subr.mxu0 0.0
    %2518 = vmatpush1.msra.mxu0 0.0
    %2519 = vmatprep.mubr.f32.mxu0 0.0
    %2520 = vmatmul.mubr.f32.gmra.mrb[0].mxu0 %v2370
    %v2521 = vpop.f32.mrb[0].mxu0
    %v2522 = vadd.f32 0.0, %v2521
    %v2523 = vpop.f32.mrb[0].mxu0
    %v2524 = vadd.f32 0.0, %v2523
    %2525 = vdwg.mxu0
    %v2526 = vadd.f32 %v2347, %v2451
    %v2527 = vadd.f32 %v2348, %v2453
    %v2528 = vadd.f32 %v2349, %v2522
    %v2529 = vadd.f32 %v2350, %v2524
    %s2530 = scalar_lea.vmem %s3, 16
    %v2531 = vld [vmem:[%s2530] sm:$0xf]
    %v2533 = vsel %vm128, %v2531, 0
    %v2536 = vsel %vm132, %v1819, 0
    %v2539 = vsel %vm132, %v1820, 0
    %v2542 = vsel %vm132, %v1821, 0
    %v2545 = vsel %vm132, %v1822, 0
    %2547 = vmatprep.subr.mxu0 %v2539
    %2548 = vmatpush1.msra.mxu0 %v2536
    %2549 = vmatprep.subr.mxu0 0.0
    %2550 = vmatpush1.msra.mxu0 0.0
    %2551 = vmatprep.subr.mxu0 0.0
    %2552 = vmatpush1.msra.mxu0 0.0
    %2553 = vmatprep.subr.mxu0 0.0
    %2554 = vmatpush1.msra.mxu0 0.0
    %2555 = vmatprep.subr.mxu0 0.0
    %2556 = vmatpush1.msra.mxu0 0.0
    %2557 = vmatprep.subr.mxu0 0.0
    %2558 = vmatpush1.msra.mxu0 0.0
    %2559 = vmatprep.subr.mxu0 0.0
    %2560 = vmatpush1.msra.mxu0 0.0
    %2561 = vmatprep.subr.mxu0 0.0
    %2562 = vmatpush1.msra.mxu0 0.0
    %2563 = vmatprep.subr.mxu0 0.0
    %2564 = vmatpush1.msra.mxu0 0.0
    %2565 = vmatprep.subr.mxu0 0.0
    %2566 = vmatpush1.msra.mxu0 0.0
    %2567 = vmatprep.subr.mxu0 0.0
    %2568 = vmatpush1.msra.mxu0 0.0
    %2569 = vmatprep.subr.mxu0 0.0
    %2570 = vmatpush1.msra.mxu0 0.0
    %2571 = vmatprep.subr.mxu0 0.0
    %2572 = vmatpush1.msra.mxu0 0.0
    %2573 = vmatprep.subr.mxu0 0.0
    %2574 = vmatpush1.msra.mxu0 0.0
    %2575 = vmatprep.subr.mxu0 0.0
    %2576 = vmatpush1.msra.mxu0 0.0
    %2577 = vmatprep.subr.mxu0 0.0
    %2578 = vmatpush1.msra.mxu0 0.0
    %2579 = vmatprep.subr.mxu0 0.0
    %2580 = vmatpush1.msra.mxu0 0.0
    %2581 = vmatprep.subr.mxu0 0.0
    %2582 = vmatpush1.msra.mxu0 0.0
    %2583 = vmatprep.subr.mxu0 0.0
    %2584 = vmatpush1.msra.mxu0 0.0
    %2585 = vmatprep.subr.mxu0 0.0
    %2586 = vmatpush1.msra.mxu0 0.0
    %2587 = vmatprep.subr.mxu0 0.0
    %2588 = vmatpush1.msra.mxu0 0.0
    %2589 = vmatprep.subr.mxu0 0.0
    %2590 = vmatpush1.msra.mxu0 0.0
    %2591 = vmatprep.subr.mxu0 0.0
    %2592 = vmatpush1.msra.mxu0 0.0
    %2593 = vmatprep.subr.mxu0 0.0
    %2594 = vmatpush1.msra.mxu0 0.0
    %2595 = vmatprep.subr.mxu0 0.0
    %2596 = vmatpush1.msra.mxu0 0.0
    %2597 = vmatprep.subr.mxu0 0.0
    %2598 = vmatpush1.msra.mxu0 0.0
    %2599 = vmatprep.subr.mxu0 0.0
    %2600 = vmatpush1.msra.mxu0 0.0
    %2601 = vmatprep.subr.mxu0 0.0
    %2602 = vmatpush1.msra.mxu0 0.0
    %2603 = vmatprep.subr.mxu0 0.0
    %2604 = vmatpush1.msra.mxu0 0.0
    %2605 = vmatprep.subr.mxu0 0.0
    %2606 = vmatpush1.msra.mxu0 0.0
    %2607 = vmatprep.subr.mxu0 0.0
    %2608 = vmatpush1.msra.mxu0 0.0
    %2609 = vmatprep.subr.mxu0 0.0
    %2610 = vmatpush1.msra.mxu0 0.0
    %2611 = vmatprep.mubr.f32.mxu0 0.0
    %2612 = vmatmul.mubr.f32.gmra.mrb[0].mxu0 %v2533
    %v2613 = vpop.f32.mrb[0].mxu0
    %v2614 = vadd.f32 0.0, %v2613
    %v2615 = vpop.f32.mrb[0].mxu0
    %v2616 = vadd.f32 0.0, %v2615
    %2617 = vdwg.mxu0
    %2618 = vmatprep.subr.mxu0 %v2545
    %2619 = vmatpush1.msra.mxu0 %v2542
    %2620 = vmatprep.subr.mxu0 0.0
    %2621 = vmatpush1.msra.mxu0 0.0
    %2622 = vmatprep.subr.mxu0 0.0
    %2623 = vmatpush1.msra.mxu0 0.0
    %2624 = vmatprep.subr.mxu0 0.0
    %2625 = vmatpush1.msra.mxu0 0.0
    %2626 = vmatprep.subr.mxu0 0.0
    %2627 = vmatpush1.msra.mxu0 0.0
    %2628 = vmatprep.subr.mxu0 0.0
    %2629 = vmatpush1.msra.mxu0 0.0
    %2630 = vmatprep.subr.mxu0 0.0
    %2631 = vmatpush1.msra.mxu0 0.0
    %2632 = vmatprep.subr.mxu0 0.0
    %2633 = vmatpush1.msra.mxu0 0.0
    %2634 = vmatprep.subr.mxu0 0.0
    %2635 = vmatpush1.msra.mxu0 0.0
    %2636 = vmatprep.subr.mxu0 0.0
    %2637 = vmatpush1.msra.mxu0 0.0
    %2638 = vmatprep.subr.mxu0 0.0
    %2639 = vmatpush1.msra.mxu0 0.0
    %2640 = vmatprep.subr.mxu0 0.0
    %2641 = vmatpush1.msra.mxu0 0.0
    %2642 = vmatprep.subr.mxu0 0.0
    %2643 = vmatpush1.msra.mxu0 0.0
    %2644 = vmatprep.subr.mxu0 0.0
    %2645 = vmatpush1.msra.mxu0 0.0
    %2646 = vmatprep.subr.mxu0 0.0
    %2647 = vmatpush1.msra.mxu0 0.0
    %2648 = vmatprep.subr.mxu0 0.0
    %2649 = vmatpush1.msra.mxu0 0.0
    %2650 = vmatprep.subr.mxu0 0.0
    %2651 = vmatpush1.msra.mxu0 0.0
    %2652 = vmatprep.subr.mxu0 0.0
    %2653 = vmatpush1.msra.mxu0 0.0
    %2654 = vmatprep.subr.mxu0 0.0
    %2655 = vmatpush1.msra.mxu0 0.0
    %2656 = vmatprep.subr.mxu0 0.0
    %2657 = vmatpush1.msra.mxu0 0.0
    %2658 = vmatprep.subr.mxu0 0.0
    %2659 = vmatpush1.msra.mxu0 0.0
    %2660 = vmatprep.subr.mxu0 0.0
    %2661 = vmatpush1.msra.mxu0 0.0
    %2662 = vmatprep.subr.mxu0 0.0
    %2663 = vmatpush1.msra.mxu0 0.0
    %2664 = vmatprep.subr.mxu0 0.0
    %2665 = vmatpush1.msra.mxu0 0.0
    %2666 = vmatprep.subr.mxu0 0.0
    %2667 = vmatpush1.msra.mxu0 0.0
    %2668 = vmatprep.subr.mxu0 0.0
    %2669 = vmatpush1.msra.mxu0 0.0
    %2670 = vmatprep.subr.mxu0 0.0
    %2671 = vmatpush1.msra.mxu0 0.0
    %2672 = vmatprep.subr.mxu0 0.0
    %2673 = vmatpush1.msra.mxu0 0.0
    %2674 = vmatprep.subr.mxu0 0.0
    %2675 = vmatpush1.msra.mxu0 0.0
    %2676 = vmatprep.subr.mxu0 0.0
    %2677 = vmatpush1.msra.mxu0 0.0
    %2678 = vmatprep.subr.mxu0 0.0
    %2679 = vmatpush1.msra.mxu0 0.0
    %2680 = vmatprep.subr.mxu0 0.0
    %2681 = vmatpush1.msra.mxu0 0.0
    %2682 = vmatprep.mubr.f32.mxu0 0.0
    %2683 = vmatmul.mubr.f32.gmra.mrb[0].mxu0 %v2533
    %v2684 = vpop.f32.mrb[0].mxu0
    %v2685 = vadd.f32 0.0, %v2684
    %v2686 = vpop.f32.mrb[0].mxu0
    %v2687 = vadd.f32 0.0, %v2686
    %2688 = vdwg.mxu0
    %v2689 = vadd.f32 %v2526, %v2614
    %v2690 = vadd.f32 %v2527, %v2616
    %v2691 = vadd.f32 %v2528, %v2685
    %v2692 = vadd.f32 %v2529, %v2687
    %2693 = vrot.lane.b32.xlu0 %v1819, 127
    %v2694 = vpop.permute.xlu0 %2693
    %2695 = vrot.lane.b32.xlu0 %v1820, 127
    %v2696 = vpop.permute.xlu0 %2695
    %2697 = vrot.lane.b32.xlu0 %v1821, 127
    %v2698 = vpop.permute.xlu0 %2697
    %2699 = vrot.lane.b32.xlu0 %v1822, 127
    %v2700 = vpop.permute.xlu0 %2699
    %v2701 = vsel %vm1013, %v2698, %v2700
    %v2702 = vsel %vm1013, %v2696, %v2698
    %v2703 = vsel %vm1013, %v2694, %v2696
    %v2704 = vsel %vm1013, %v2700, %v2694
    %v2705 = vmul.f32 %v2703, %v1022
    %v2706 = vmul.f32 %v2702, %v1026
    %v2707 = vmul.f32 %v2701, %v1030
    %v2708 = vmul.f32 %v2704, %v1034
    %s2709 = scalar_lea.vmem %s3, 20
    %v2710 = vld [vmem:[%s2709] sm:$0xf]
    %v2712 = vsel %vm128, %v2710, 0
    %v2715 = vsel %vm132, %v2705, 0
    %v2718 = vsel %vm132, %v2706, 0
    %v2721 = vsel %vm132, %v2707, 0
    %v2724 = vsel %vm132, %v2708, 0
    %2726 = vmatprep.subr.mxu0 %v2718
    %2727 = vmatpush1.msra.mxu0 %v2715
    %2728 = vmatprep.subr.mxu0 0.0
    %2729 = vmatpush1.msra.mxu0 0.0
    %2730 = vmatprep.subr.mxu0 0.0
    %2731 = vmatpush1.msra.mxu0 0.0
    %2732 = vmatprep.subr.mxu0 0.0
    %2733 = vmatpush1.msra.mxu0 0.0
    %2734 = vmatprep.subr.mxu0 0.0
    %2735 = vmatpush1.msra.mxu0 0.0
    %2736 = vmatprep.subr.mxu0 0.0
    %2737 = vmatpush1.msra.mxu0 0.0
    %2738 = vmatprep.subr.mxu0 0.0
    %2739 = vmatpush1.msra.mxu0 0.0
    %2740 = vmatprep.subr.mxu0 0.0
    %2741 = vmatpush1.msra.mxu0 0.0
    %2742 = vmatprep.subr.mxu0 0.0
    %2743 = vmatpush1.msra.mxu0 0.0
    %2744 = vmatprep.subr.mxu0 0.0
    %2745 = vmatpush1.msra.mxu0 0.0
    %2746 = vmatprep.subr.mxu0 0.0
    %2747 = vmatpush1.msra.mxu0 0.0
    %2748 = vmatprep.subr.mxu0 0.0
    %2749 = vmatpush1.msra.mxu0 0.0
    %2750 = vmatprep.subr.mxu0 0.0
    %2751 = vmatpush1.msra.mxu0 0.0
    %2752 = vmatprep.subr.mxu0 0.0
    %2753 = vmatpush1.msra.mxu0 0.0
    %2754 = vmatprep.subr.mxu0 0.0
    %2755 = vmatpush1.msra.mxu0 0.0
    %2756 = vmatprep.subr.mxu0 0.0
    %2757 = vmatpush1.msra.mxu0 0.0
    %2758 = vmatprep.subr.mxu0 0.0
    %2759 = vmatpush1.msra.mxu0 0.0
    %2760 = vmatprep.subr.mxu0 0.0
    %2761 = vmatpush1.msra.mxu0 0.0
    %2762 = vmatprep.subr.mxu0 0.0
    %2763 = vmatpush1.msra.mxu0 0.0
    %2764 = vmatprep.subr.mxu0 0.0
    %2765 = vmatpush1.msra.mxu0 0.0
    %2766 = vmatprep.subr.mxu0 0.0
    %2767 = vmatpush1.msra.mxu0 0.0
    %2768 = vmatprep.subr.mxu0 0.0
    %2769 = vmatpush1.msra.mxu0 0.0
    %2770 = vmatprep.subr.mxu0 0.0
    %2771 = vmatpush1.msra.mxu0 0.0
    %2772 = vmatprep.subr.mxu0 0.0
    %2773 = vmatpush1.msra.mxu0 0.0
    %2774 = vmatprep.subr.mxu0 0.0
    %2775 = vmatpush1.msra.mxu0 0.0
    %2776 = vmatprep.subr.mxu0 0.0
    %2777 = vmatpush1.msra.mxu0 0.0
    %2778 = vmatprep.subr.mxu0 0.0
    %2779 = vmatpush1.msra.mxu0 0.0
    %2780 = vmatprep.subr.mxu0 0.0
    %2781 = vmatpush1.msra.mxu0 0.0
    %2782 = vmatprep.subr.mxu0 0.0
    %2783 = vmatpush1.msra.mxu0 0.0
    %2784 = vmatprep.subr.mxu0 0.0
    %2785 = vmatpush1.msra.mxu0 0.0
    %2786 = vmatprep.subr.mxu0 0.0
    %2787 = vmatpush1.msra.mxu0 0.0
    %2788 = vmatprep.subr.mxu0 0.0
    %2789 = vmatpush1.msra.mxu0 0.0
    %2790 = vmatprep.mubr.f32.mxu0 0.0
    %2791 = vmatmul.mubr.f32.gmra.mrb[0].mxu0 %v2712
    %v2792 = vpop.f32.mrb[0].mxu0
    %v2793 = vadd.f32 0.0, %v2792
    %v2794 = vpop.f32.mrb[0].mxu0
    %v2795 = vadd.f32 0.0, %v2794
    %2796 = vdwg.mxu0
    %2797 = vmatprep.subr.mxu0 %v2724
    %2798 = vmatpush1.msra.mxu0 %v2721
    %2799 = vmatprep.subr.mxu0 0.0
    %2800 = vmatpush1.msra.mxu0 0.0
    %2801 = vmatprep.subr.mxu0 0.0
    %2802 = vmatpush1.msra.mxu0 0.0
    %2803 = vmatprep.subr.mxu0 0.0
    %2804 = vmatpush1.msra.mxu0 0.0
    %2805 = vmatprep.subr.mxu0 0.0
    %2806 = vmatpush1.msra.mxu0 0.0
    %2807 = vmatprep.subr.mxu0 0.0
    %2808 = vmatpush1.msra.mxu0 0.0
    %2809 = vmatprep.subr.mxu0 0.0
    %2810 = vmatpush1.msra.mxu0 0.0
    %2811 = vmatprep.subr.mxu0 0.0
    %2812 = vmatpush1.msra.mxu0 0.0
    %2813 = vmatprep.subr.mxu0 0.0
    %2814 = vmatpush1.msra.mxu0 0.0
    %2815 = vmatprep.subr.mxu0 0.0
    %2816 = vmatpush1.msra.mxu0 0.0
    %2817 = vmatprep.subr.mxu0 0.0
    %2818 = vmatpush1.msra.mxu0 0.0
    %2819 = vmatprep.subr.mxu0 0.0
    %2820 = vmatpush1.msra.mxu0 0.0
    %2821 = vmatprep.subr.mxu0 0.0
    %2822 = vmatpush1.msra.mxu0 0.0
    %2823 = vmatprep.subr.mxu0 0.0
    %2824 = vmatpush1.msra.mxu0 0.0
    %2825 = vmatprep.subr.mxu0 0.0
    %2826 = vmatpush1.msra.mxu0 0.0
    %2827 = vmatprep.subr.mxu0 0.0
    %2828 = vmatpush1.msra.mxu0 0.0
    %2829 = vmatprep.subr.mxu0 0.0
    %2830 = vmatpush1.msra.mxu0 0.0
    %2831 = vmatprep.subr.mxu0 0.0
    %2832 = vmatpush1.msra.mxu0 0.0
    %2833 = vmatprep.subr.mxu0 0.0
    %2834 = vmatpush1.msra.mxu0 0.0
    %2835 = vmatprep.subr.mxu0 0.0
    %2836 = vmatpush1.msra.mxu0 0.0
    %2837 = vmatprep.subr.mxu0 0.0
    %2838 = vmatpush1.msra.mxu0 0.0
    %2839 = vmatprep.subr.mxu0 0.0
    %2840 = vmatpush1.msra.mxu0 0.0
    %2841 = vmatprep.subr.mxu0 0.0
    %2842 = vmatpush1.msra.mxu0 0.0
    %2843 = vmatprep.subr.mxu0 0.0
    %2844 = vmatpush1.msra.mxu0 0.0
    %2845 = vmatprep.subr.mxu0 0.0
    %2846 = vmatpush1.msra.mxu0 0.0
    %2847 = vmatprep.subr.mxu0 0.0
    %2848 = vmatpush1.msra.mxu0 0.0
    %2849 = vmatprep.subr.mxu0 0.0
    %2850 = vmatpush1.msra.mxu0 0.0
    %2851 = vmatprep.subr.mxu0 0.0
    %2852 = vmatpush1.msra.mxu0 0.0
    %2853 = vmatprep.subr.mxu0 0.0
    %2854 = vmatpush1.msra.mxu0 0.0
    %2855 = vmatprep.subr.mxu0 0.0
    %2856 = vmatpush1.msra.mxu0 0.0
    %2857 = vmatprep.subr.mxu0 0.0
    %2858 = vmatpush1.msra.mxu0 0.0
    %2859 = vmatprep.subr.mxu0 0.0
    %2860 = vmatpush1.msra.mxu0 0.0
    %2861 = vmatprep.mubr.f32.mxu0 0.0
    %2862 = vmatmul.mubr.f32.gmra.mrb[0].mxu0 %v2712
    %v2863 = vpop.f32.mrb[0].mxu0
    %v2864 = vadd.f32 0.0, %v2863
    %v2865 = vpop.f32.mrb[0].mxu0
    %v2866 = vadd.f32 0.0, %v2865
    %2867 = vdwg.mxu0
    %v2868 = vadd.f32 %v2689, %v2793
    %v2869 = vadd.f32 %v2690, %v2795
    %v2870 = vadd.f32 %v2691, %v2864
    %v2871 = vadd.f32 %v2692, %v2866
    %2872 = vrot.lane.b32.xlu0 %v1819, 113
    %v2873 = vpop.permute.xlu0 %2872
    %2874 = vrot.lane.b32.xlu0 %v1820, 113
    %v2875 = vpop.permute.xlu0 %2874
    %2876 = vrot.lane.b32.xlu0 %v1821, 113
    %v2877 = vpop.permute.xlu0 %2876
    %2878 = vrot.lane.b32.xlu0 %v1822, 113
    %v2879 = vpop.permute.xlu0 %2878
    %v2880 = vsel %vm1214, %v2877, %v2879
    %v2881 = vsel %vm1214, %v2875, %v2877
    %v2882 = vsel %vm1214, %v2873, %v2875
    %v2883 = vsel %vm1214, %v2879, %v2873
    %v2884 = vmul.f32 %v2882, %v1223
    %v2885 = vmul.f32 %v2881, %v1227
    %v2886 = vmul.f32 %v2880, %v1231
    %v2887 = vmul.f32 %v2883, %v1235
    %s2888 = scalar_lea.vmem %s3, 24
    %v2889 = vld [vmem:[%s2888] sm:$0xf]
    %v2891 = vsel %vm128, %v2889, 0
    %v2894 = vsel %vm132, %v2884, 0
    %v2897 = vsel %vm132, %v2885, 0
    %v2900 = vsel %vm132, %v2886, 0
    %v2903 = vsel %vm132, %v2887, 0
    %2905 = vmatprep.subr.mxu0 %v2897
    %2906 = vmatpush1.msra.mxu0 %v2894
    %2907 = vmatprep.subr.mxu0 0.0
    %2908 = vmatpush1.msra.mxu0 0.0
    %2909 = vmatprep.subr.mxu0 0.0
    %2910 = vmatpush1.msra.mxu0 0.0
    %2911 = vmatprep.subr.mxu0 0.0
    %2912 = vmatpush1.msra.mxu0 0.0
    %2913 = vmatprep.subr.mxu0 0.0
    %2914 = vmatpush1.msra.mxu0 0.0
    %2915 = vmatprep.subr.mxu0 0.0
    %2916 = vmatpush1.msra.mxu0 0.0
    %2917 = vmatprep.subr.mxu0 0.0
    %2918 = vmatpush1.msra.mxu0 0.0
    %2919 = vmatprep.subr.mxu0 0.0
    %2920 = vmatpush1.msra.mxu0 0.0
    %2921 = vmatprep.subr.mxu0 0.0
    %2922 = vmatpush1.msra.mxu0 0.0
    %2923 = vmatprep.subr.mxu0 0.0
    %2924 = vmatpush1.msra.mxu0 0.0
    %2925 = vmatprep.subr.mxu0 0.0
    %2926 = vmatpush1.msra.mxu0 0.0
    %2927 = vmatprep.subr.mxu0 0.0
    %2928 = vmatpush1.msra.mxu0 0.0
    %2929 = vmatprep.subr.mxu0 0.0
    %2930 = vmatpush1.msra.mxu0 0.0
    %2931 = vmatprep.subr.mxu0 0.0
    %2932 = vmatpush1.msra.mxu0 0.0
    %2933 = vmatprep.subr.mxu0 0.0
    %2934 = vmatpush1.msra.mxu0 0.0
    %2935 = vmatprep.subr.mxu0 0.0
    %2936 = vmatpush1.msra.mxu0 0.0
    %2937 = vmatprep.subr.mxu0 0.0
    %2938 = vmatpush1.msra.mxu0 0.0
    %2939 = vmatprep.subr.mxu0 0.0
    %2940 = vmatpush1.msra.mxu0 0.0
    %2941 = vmatprep.subr.mxu0 0.0
    %2942 = vmatpush1.msra.mxu0 0.0
    %2943 = vmatprep.subr.mxu0 0.0
    %2944 = vmatpush1.msra.mxu0 0.0
    %2945 = vmatprep.subr.mxu0 0.0
    %2946 = vmatpush1.msra.mxu0 0.0
    %2947 = vmatprep.subr.mxu0 0.0
    %2948 = vmatpush1.msra.mxu0 0.0
    %2949 = vmatprep.subr.mxu0 0.0
    %2950 = vmatpush1.msra.mxu0 0.0
    %2951 = vmatprep.subr.mxu0 0.0
    %2952 = vmatpush1.msra.mxu0 0.0
    %2953 = vmatprep.subr.mxu0 0.0
    %2954 = vmatpush1.msra.mxu0 0.0
    %2955 = vmatprep.subr.mxu0 0.0
    %2956 = vmatpush1.msra.mxu0 0.0
    %2957 = vmatprep.subr.mxu0 0.0
    %2958 = vmatpush1.msra.mxu0 0.0
    %2959 = vmatprep.subr.mxu0 0.0
    %2960 = vmatpush1.msra.mxu0 0.0
    %2961 = vmatprep.subr.mxu0 0.0
    %2962 = vmatpush1.msra.mxu0 0.0
    %2963 = vmatprep.subr.mxu0 0.0
    %2964 = vmatpush1.msra.mxu0 0.0
    %2965 = vmatprep.subr.mxu0 0.0
    %2966 = vmatpush1.msra.mxu0 0.0
    %2967 = vmatprep.subr.mxu0 0.0
    %2968 = vmatpush1.msra.mxu0 0.0
    %2969 = vmatprep.mubr.f32.mxu0 0.0
    %2970 = vmatmul.mubr.f32.gmra.mrb[0].mxu0 %v2891
    %v2971 = vpop.f32.mrb[0].mxu0
    %v2972 = vadd.f32 0.0, %v2971
    %v2973 = vpop.f32.mrb[0].mxu0
    %v2974 = vadd.f32 0.0, %v2973
    %2975 = vdwg.mxu0
    %2976 = vmatprep.subr.mxu0 %v2903
    %2977 = vmatpush1.msra.mxu0 %v2900
    %2978 = vmatprep.subr.mxu0 0.0
    %2979 = vmatpush1.msra.mxu0 0.0
    %2980 = vmatprep.subr.mxu0 0.0
    %2981 = vmatpush1.msra.mxu0 0.0
    %2982 = vmatprep.subr.mxu0 0.0
    %2983 = vmatpush1.msra.mxu0 0.0
    %2984 = vmatprep.subr.mxu0 0.0
    %2985 = vmatpush1.msra.mxu0 0.0
    %2986 = vmatprep.subr.mxu0 0.0
    %2987 = vmatpush1.msra.mxu0 0.0
    %2988 = vmatprep.subr.mxu0 0.0
    %2989 = vmatpush1.msra.mxu0 0.0
    %2990 = vmatprep.subr.mxu0 0.0
    %2991 = vmatpush1.msra.mxu0 0.0
    %2992 = vmatprep.subr.mxu0 0.0
    %2993 = vmatpush1.msra.mxu0 0.0
    %2994 = vmatprep.subr.mxu0 0.0
    %2995 = vmatpush1.msra.mxu0 0.0
    %2996 = vmatprep.subr.mxu0 0.0
    %2997 = vmatpush1.msra.mxu0 0.0
    %2998 = vmatprep.subr.mxu0 0.0
    %2999 = vmatpush1.msra.mxu0 0.0
    %3000 = vmatprep.subr.mxu0 0.0
    %3001 = vmatpush1.msra.mxu0 0.0
    %3002 = vmatprep.subr.mxu0 0.0
    %3003 = vmatpush1.msra.mxu0 0.0
    %3004 = vmatprep.subr.mxu0 0.0
    %3005 = vmatpush1.msra.mxu0 0.0
    %3006 = vmatprep.subr.mxu0 0.0
    %3007 = vmatpush1.msra.mxu0 0.0
    %3008 = vmatprep.subr.mxu0 0.0
    %3009 = vmatpush1.msra.mxu0 0.0
    %3010 = vmatprep.subr.mxu0 0.0
    %3011 = vmatpush1.msra.mxu0 0.0
    %3012 = vmatprep.subr.mxu0 0.0
    %3013 = vmatpush1.msra.mxu0 0.0
    %3014 = vmatprep.subr.mxu0 0.0
    %3015 = vmatpush1.msra.mxu0 0.0
    %3016 = vmatprep.subr.mxu0 0.0
    %3017 = vmatpush1.msra.mxu0 0.0
    %3018 = vmatprep.subr.mxu0 0.0
    %3019 = vmatpush1.msra.mxu0 0.0
    %3020 = vmatprep.subr.mxu0 0.0
    %3021 = vmatpush1.msra.mxu0 0.0
    %3022 = vmatprep.subr.mxu0 0.0
    %3023 = vmatpush1.msra.mxu0 0.0
    %3024 = vmatprep.subr.mxu0 0.0
    %3025 = vmatpush1.msra.mxu0 0.0
    %3026 = vmatprep.subr.mxu0 0.0
    %3027 = vmatpush1.msra.mxu0 0.0
    %3028 = vmatprep.subr.mxu0 0.0
    %3029 = vmatpush1.msra.mxu0 0.0
    %3030 = vmatprep.subr.mxu0 0.0
    %3031 = vmatpush1.msra.mxu0 0.0
    %3032 = vmatprep.subr.mxu0 0.0
    %3033 = vmatpush1.msra.mxu0 0.0
    %3034 = vmatprep.subr.mxu0 0.0
    %3035 = vmatpush1.msra.mxu0 0.0
    %3036 = vmatprep.subr.mxu0 0.0
    %3037 = vmatpush1.msra.mxu0 0.0
    %3038 = vmatprep.subr.mxu0 0.0
    %3039 = vmatpush1.msra.mxu0 0.0
    %3040 = vmatprep.mubr.f32.mxu0 0.0
    %3041 = vmatmul.mubr.f32.gmra.mrb[0].mxu0 %v2891
    %v3042 = vpop.f32.mrb[0].mxu0
    %v3043 = vadd.f32 0.0, %v3042
    %v3044 = vpop.f32.mrb[0].mxu0
    %v3045 = vadd.f32 0.0, %v3044
    %3046 = vdwg.mxu0
    %v3047 = vadd.f32 %v2868, %v2972
    %v3048 = vadd.f32 %v2869, %v2974
    %v3049 = vadd.f32 %v2870, %v3043
    %v3050 = vadd.f32 %v2871, %v3045
    %3051 = vrot.lane.b32.xlu0 %v1819, 112
    %v3052 = vpop.permute.xlu0 %3051
    %3053 = vrot.lane.b32.xlu0 %v1820, 112
    %v3054 = vpop.permute.xlu0 %3053
    %3055 = vrot.lane.b32.xlu0 %v1821, 112
    %v3056 = vpop.permute.xlu0 %3055
    %3057 = vrot.lane.b32.xlu0 %v1822, 112
    %v3058 = vpop.permute.xlu0 %3057
    %v3059 = vsel %vm1415, %v3056, %v3058
    %v3060 = vsel %vm1415, %v3054, %v3056
    %v3061 = vsel %vm1415, %v3052, %v3054
    %v3062 = vsel %vm1415, %v3058, %v3052
    %v3063 = vmul.f32 %v3061, %v1424
    %v3064 = vmul.f32 %v3060, %v1428
    %v3065 = vmul.f32 %v3059, %v1432
    %v3066 = vmul.f32 %v3062, %v1436
    %s3067 = scalar_lea.vmem %s3, 28
    %v3068 = vld [vmem:[%s3067] sm:$0xf]
    %v3070 = vsel %vm128, %v3068, 0
    %v3073 = vsel %vm132, %v3063, 0
    %v3076 = vsel %vm132, %v3064, 0
    %v3079 = vsel %vm132, %v3065, 0
    %v3082 = vsel %vm132, %v3066, 0
    %3084 = vmatprep.subr.mxu0 %v3076
    %3085 = vmatpush1.msra.mxu0 %v3073
    %3086 = vmatprep.subr.mxu0 0.0
    %3087 = vmatpush1.msra.mxu0 0.0
    %3088 = vmatprep.subr.mxu0 0.0
    %3089 = vmatpush1.msra.mxu0 0.0
    %3090 = vmatprep.subr.mxu0 0.0
    %3091 = vmatpush1.msra.mxu0 0.0
    %3092 = vmatprep.subr.mxu0 0.0
    %3093 = vmatpush1.msra.mxu0 0.0
    %3094 = vmatprep.subr.mxu0 0.0
    %3095 = vmatpush1.msra.mxu0 0.0
    %3096 = vmatprep.subr.mxu0 0.0
    %3097 = vmatpush1.msra.mxu0 0.0
    %3098 = vmatprep.subr.mxu0 0.0
    %3099 = vmatpush1.msra.mxu0 0.0
    %3100 = vmatprep.subr.mxu0 0.0
    %3101 = vmatpush1.msra.mxu0 0.0
    %3102 = vmatprep.subr.mxu0 0.0
    %3103 = vmatpush1.msra.mxu0 0.0
    %3104 = vmatprep.subr.mxu0 0.0
    %3105 = vmatpush1.msra.mxu0 0.0
    %3106 = vmatprep.subr.mxu0 0.0
    %3107 = vmatpush1.msra.mxu0 0.0
    %3108 = vmatprep.subr.mxu0 0.0
    %3109 = vmatpush1.msra.mxu0 0.0
    %3110 = vmatprep.subr.mxu0 0.0
    %3111 = vmatpush1.msra.mxu0 0.0
    %3112 = vmatprep.subr.mxu0 0.0
    %3113 = vmatpush1.msra.mxu0 0.0
    %3114 = vmatprep.subr.mxu0 0.0
    %3115 = vmatpush1.msra.mxu0 0.0
    %3116 = vmatprep.subr.mxu0 0.0
    %3117 = vmatpush1.msra.mxu0 0.0
    %3118 = vmatprep.subr.mxu0 0.0
    %3119 = vmatpush1.msra.mxu0 0.0
    %3120 = vmatprep.subr.mxu0 0.0
    %3121 = vmatpush1.msra.mxu0 0.0
    %3122 = vmatprep.subr.mxu0 0.0
    %3123 = vmatpush1.msra.mxu0 0.0
    %3124 = vmatprep.subr.mxu0 0.0
    %3125 = vmatpush1.msra.mxu0 0.0
    %3126 = vmatprep.subr.mxu0 0.0
    %3127 = vmatpush1.msra.mxu0 0.0
    %3128 = vmatprep.subr.mxu0 0.0
    %3129 = vmatpush1.msra.mxu0 0.0
    %3130 = vmatprep.subr.mxu0 0.0
    %3131 = vmatpush1.msra.mxu0 0.0
    %3132 = vmatprep.subr.mxu0 0.0
    %3133 = vmatpush1.msra.mxu0 0.0
    %3134 = vmatprep.subr.mxu0 0.0
    %3135 = vmatpush1.msra.mxu0 0.0
    %3136 = vmatprep.subr.mxu0 0.0
    %3137 = vmatpush1.msra.mxu0 0.0
    %3138 = vmatprep.subr.mxu0 0.0
    %3139 = vmatpush1.msra.mxu0 0.0
    %3140 = vmatprep.subr.mxu0 0.0
    %3141 = vmatpush1.msra.mxu0 0.0
    %3142 = vmatprep.subr.mxu0 0.0
    %3143 = vmatpush1.msra.mxu0 0.0
    %3144 = vmatprep.subr.mxu0 0.0
    %3145 = vmatpush1.msra.mxu0 0.0
    %3146 = vmatprep.subr.mxu0 0.0
    %3147 = vmatpush1.msra.mxu0 0.0
    %3148 = vmatprep.mubr.f32.mxu0 0.0
    %3149 = vmatmul.mubr.f32.gmra.mrb[0].mxu0 %v3070
    %v3150 = vpop.f32.mrb[0].mxu0
    %v3151 = vadd.f32 0.0, %v3150
    %v3152 = vpop.f32.mrb[0].mxu0
    %v3153 = vadd.f32 0.0, %v3152
    %3154 = vdwg.mxu0
    %3155 = vmatprep.subr.mxu0 %v3082
    %3156 = vmatpush1.msra.mxu0 %v3079
    %3157 = vmatprep.subr.mxu0 0.0
    %3158 = vmatpush1.msra.mxu0 0.0
    %3159 = vmatprep.subr.mxu0 0.0
    %3160 = vmatpush1.msra.mxu0 0.0
    %3161 = vmatprep.subr.mxu0 0.0
    %3162 = vmatpush1.msra.mxu0 0.0
    %3163 = vmatprep.subr.mxu0 0.0
    %3164 = vmatpush1.msra.mxu0 0.0
    %3165 = vmatprep.subr.mxu0 0.0
    %3166 = vmatpush1.msra.mxu0 0.0
    %3167 = vmatprep.subr.mxu0 0.0
    %3168 = vmatpush1.msra.mxu0 0.0
    %3169 = vmatprep.subr.mxu0 0.0
    %3170 = vmatpush1.msra.mxu0 0.0
    %3171 = vmatprep.subr.mxu0 0.0
    %3172 = vmatpush1.msra.mxu0 0.0
    %3173 = vmatprep.subr.mxu0 0.0
    %3174 = vmatpush1.msra.mxu0 0.0
    %3175 = vmatprep.subr.mxu0 0.0
    %3176 = vmatpush1.msra.mxu0 0.0
    %3177 = vmatprep.subr.mxu0 0.0
    %3178 = vmatpush1.msra.mxu0 0.0
    %3179 = vmatprep.subr.mxu0 0.0
    %3180 = vmatpush1.msra.mxu0 0.0
    %3181 = vmatprep.subr.mxu0 0.0
    %3182 = vmatpush1.msra.mxu0 0.0
    %3183 = vmatprep.subr.mxu0 0.0
    %3184 = vmatpush1.msra.mxu0 0.0
    %3185 = vmatprep.subr.mxu0 0.0
    %3186 = vmatpush1.msra.mxu0 0.0
    %3187 = vmatprep.subr.mxu0 0.0
    %3188 = vmatpush1.msra.mxu0 0.0
    %3189 = vmatprep.subr.mxu0 0.0
    %3190 = vmatpush1.msra.mxu0 0.0
    %3191 = vmatprep.subr.mxu0 0.0
    %3192 = vmatpush1.msra.mxu0 0.0
    %3193 = vmatprep.subr.mxu0 0.0
    %3194 = vmatpush1.msra.mxu0 0.0
    %3195 = vmatprep.subr.mxu0 0.0
    %3196 = vmatpush1.msra.mxu0 0.0
    %3197 = vmatprep.subr.mxu0 0.0
    %3198 = vmatpush1.msra.mxu0 0.0
    %3199 = vmatprep.subr.mxu0 0.0
    %3200 = vmatpush1.msra.mxu0 0.0
    %3201 = vmatprep.subr.mxu0 0.0
    %3202 = vmatpush1.msra.mxu0 0.0
    %3203 = vmatprep.subr.mxu0 0.0
    %3204 = vmatpush1.msra.mxu0 0.0
    %3205 = vmatprep.subr.mxu0 0.0
    %3206 = vmatpush1.msra.mxu0 0.0
    %3207 = vmatprep.subr.mxu0 0.0
    %3208 = vmatpush1.msra.mxu0 0.0
    %3209 = vmatprep.subr.mxu0 0.0
    %3210 = vmatpush1.msra.mxu0 0.0
    %3211 = vmatprep.subr.mxu0 0.0
    %3212 = vmatpush1.msra.mxu0 0.0
    %3213 = vmatprep.subr.mxu0 0.0
    %3214 = vmatpush1.msra.mxu0 0.0
    %3215 = vmatprep.subr.mxu0 0.0
    %3216 = vmatpush1.msra.mxu0 0.0
    %3217 = vmatprep.subr.mxu0 0.0
    %3218 = vmatpush1.msra.mxu0 0.0
    %3219 = vmatprep.mubr.f32.mxu0 0.0
    %3220 = vmatmul.mubr.f32.gmra.mrb[0].mxu0 %v3070
    %v3221 = vpop.f32.mrb[0].mxu0
    %v3222 = vadd.f32 0.0, %v3221
    %v3223 = vpop.f32.mrb[0].mxu0
    %v3224 = vadd.f32 0.0, %v3223
    %3225 = vdwg.mxu0
    %v3226 = vadd.f32 %v3047, %v3151
    %v3227 = vadd.f32 %v3048, %v3153
    %v3228 = vadd.f32 %v3049, %v3222
    %v3229 = vadd.f32 %v3050, %v3224
    %3230 = vrot.lane.b32.xlu0 %v1819, 111
    %v3231 = vpop.permute.xlu0 %3230
    %3232 = vrot.lane.b32.xlu0 %v1820, 111
    %v3233 = vpop.permute.xlu0 %3232
    %3234 = vrot.lane.b32.xlu0 %v1821, 111
    %v3235 = vpop.permute.xlu0 %3234
    %3236 = vrot.lane.b32.xlu0 %v1822, 111
    %v3237 = vpop.permute.xlu0 %3236
    %v3238 = vsel %vm1616, %v3235, %v3237
    %v3239 = vsel %vm1616, %v3233, %v3235
    %v3240 = vsel %vm1616, %v3231, %v3233
    %v3241 = vsel %vm1616, %v3237, %v3231
    %v3242 = vmul.f32 %v3240, %v1625
    %v3243 = vmul.f32 %v3239, %v1629
    %v3244 = vmul.f32 %v3238, %v1633
    %v3245 = vmul.f32 %v3241, %v1637
    %s3246 = scalar_lea.vmem %s3, 32
    %v3247 = vld [vmem:[%s3246] sm:$0xf]
    %v3249 = vsel %vm128, %v3247, 0
    %v3252 = vsel %vm132, %v3242, 0
    %v3255 = vsel %vm132, %v3243, 0
    %v3258 = vsel %vm132, %v3244, 0
    %v3261 = vsel %vm132, %v3245, 0
    %3263 = vmatprep.subr.mxu0 %v3255
    %3264 = vmatpush1.msra.mxu0 %v3252
    %3265 = vmatprep.subr.mxu0 0.0
    %3266 = vmatpush1.msra.mxu0 0.0
    %3267 = vmatprep.subr.mxu0 0.0
    %3268 = vmatpush1.msra.mxu0 0.0
    %3269 = vmatprep.subr.mxu0 0.0
    %3270 = vmatpush1.msra.mxu0 0.0
    %3271 = vmatprep.subr.mxu0 0.0
    %3272 = vmatpush1.msra.mxu0 0.0
    %3273 = vmatprep.subr.mxu0 0.0
    %3274 = vmatpush1.msra.mxu0 0.0
    %3275 = vmatprep.subr.mxu0 0.0
    %3276 = vmatpush1.msra.mxu0 0.0
    %3277 = vmatprep.subr.mxu0 0.0
    %3278 = vmatpush1.msra.mxu0 0.0
    %3279 = vmatprep.subr.mxu0 0.0
    %3280 = vmatpush1.msra.mxu0 0.0
    %3281 = vmatprep.subr.mxu0 0.0
    %3282 = vmatpush1.msra.mxu0 0.0
    %3283 = vmatprep.subr.mxu0 0.0
    %3284 = vmatpush1.msra.mxu0 0.0
    %3285 = vmatprep.subr.mxu0 0.0
    %3286 = vmatpush1.msra.mxu0 0.0
    %3287 = vmatprep.subr.mxu0 0.0
    %3288 = vmatpush1.msra.mxu0 0.0
    %3289 = vmatprep.subr.mxu0 0.0
    %3290 = vmatpush1.msra.mxu0 0.0
    %3291 = vmatprep.subr.mxu0 0.0
    %3292 = vmatpush1.msra.mxu0 0.0
    %3293 = vmatprep.subr.mxu0 0.0
    %3294 = vmatpush1.msra.mxu0 0.0
    %3295 = vmatprep.subr.mxu0 0.0
    %3296 = vmatpush1.msra.mxu0 0.0
    %3297 = vmatprep.subr.mxu0 0.0
    %3298 = vmatpush1.msra.mxu0 0.0
    %3299 = vmatprep.subr.mxu0 0.0
    %3300 = vmatpush1.msra.mxu0 0.0
    %3301 = vmatprep.subr.mxu0 0.0
    %3302 = vmatpush1.msra.mxu0 0.0
    %3303 = vmatprep.subr.mxu0 0.0
    %3304 = vmatpush1.msra.mxu0 0.0
    %3305 = vmatprep.subr.mxu0 0.0
    %3306 = vmatpush1.msra.mxu0 0.0
    %3307 = vmatprep.subr.mxu0 0.0
    %3308 = vmatpush1.msra.mxu0 0.0
    %3309 = vmatprep.subr.mxu0 0.0
    %3310 = vmatpush1.msra.mxu0 0.0
    %3311 = vmatprep.subr.mxu0 0.0
    %3312 = vmatpush1.msra.mxu0 0.0
    %3313 = vmatprep.subr.mxu0 0.0
    %3314 = vmatpush1.msra.mxu0 0.0
    %3315 = vmatprep.subr.mxu0 0.0
    %3316 = vmatpush1.msra.mxu0 0.0
    %3317 = vmatprep.subr.mxu0 0.0
    %3318 = vmatpush1.msra.mxu0 0.0
    %3319 = vmatprep.subr.mxu0 0.0
    %3320 = vmatpush1.msra.mxu0 0.0
    %3321 = vmatprep.subr.mxu0 0.0
    %3322 = vmatpush1.msra.mxu0 0.0
    %3323 = vmatprep.subr.mxu0 0.0
    %3324 = vmatpush1.msra.mxu0 0.0
    %3325 = vmatprep.subr.mxu0 0.0
    %3326 = vmatpush1.msra.mxu0 0.0
    %3327 = vmatprep.mubr.f32.mxu0 0.0
    %3328 = vmatmul.mubr.f32.gmra.mrb[0].mxu0 %v3249
    %v3329 = vpop.f32.mrb[0].mxu0
    %v3330 = vadd.f32 0.0, %v3329
    %v3331 = vpop.f32.mrb[0].mxu0
    %v3332 = vadd.f32 0.0, %v3331
    %3333 = vdwg.mxu0
    %3334 = vmatprep.subr.mxu0 %v3261
    %3335 = vmatpush1.msra.mxu0 %v3258
    %3336 = vmatprep.subr.mxu0 0.0
    %3337 = vmatpush1.msra.mxu0 0.0
    %3338 = vmatprep.subr.mxu0 0.0
    %3339 = vmatpush1.msra.mxu0 0.0
    %3340 = vmatprep.subr.mxu0 0.0
    %3341 = vmatpush1.msra.mxu0 0.0
    %3342 = vmatprep.subr.mxu0 0.0
    %3343 = vmatpush1.msra.mxu0 0.0
    %3344 = vmatprep.subr.mxu0 0.0
    %3345 = vmatpush1.msra.mxu0 0.0
    %3346 = vmatprep.subr.mxu0 0.0
    %3347 = vmatpush1.msra.mxu0 0.0
    %3348 = vmatprep.subr.mxu0 0.0
    %3349 = vmatpush1.msra.mxu0 0.0
    %3350 = vmatprep.subr.mxu0 0.0
    %3351 = vmatpush1.msra.mxu0 0.0
    %3352 = vmatprep.subr.mxu0 0.0
    %3353 = vmatpush1.msra.mxu0 0.0
    %3354 = vmatprep.subr.mxu0 0.0
    %3355 = vmatpush1.msra.mxu0 0.0
    %3356 = vmatprep.subr.mxu0 0.0
    %3357 = vmatpush1.msra.mxu0 0.0
    %3358 = vmatprep.subr.mxu0 0.0
    %3359 = vmatpush1.msra.mxu0 0.0
    %3360 = vmatprep.subr.mxu0 0.0
    %3361 = vmatpush1.msra.mxu0 0.0
    %3362 = vmatprep.subr.mxu0 0.0
    %3363 = vmatpush1.msra.mxu0 0.0
    %3364 = vmatprep.subr.mxu0 0.0
    %3365 = vmatpush1.msra.mxu0 0.0
    %3366 = vmatprep.subr.mxu0 0.0
    %3367 = vmatpush1.msra.mxu0 0.0
    %3368 = vmatprep.subr.mxu0 0.0
    %3369 = vmatpush1.msra.mxu0 0.0
    %3370 = vmatprep.subr.mxu0 0.0
    %3371 = vmatpush1.msra.mxu0 0.0
    %3372 = vmatprep.subr.mxu0 0.0
    %3373 = vmatpush1.msra.mxu0 0.0
    %3374 = vmatprep.subr.mxu0 0.0
    %3375 = vmatpush1.msra.mxu0 0.0
    %3376 = vmatprep.subr.mxu0 0.0
    %3377 = vmatpush1.msra.mxu0 0.0
    %3378 = vmatprep.subr.mxu0 0.0
    %3379 = vmatpush1.msra.mxu0 0.0
    %3380 = vmatprep.subr.mxu0 0.0
    %3381 = vmatpush1.msra.mxu0 0.0
    %3382 = vmatprep.subr.mxu0 0.0
    %3383 = vmatpush1.msra.mxu0 0.0
    %3384 = vmatprep.subr.mxu0 0.0
    %3385 = vmatpush1.msra.mxu0 0.0
    %3386 = vmatprep.subr.mxu0 0.0
    %3387 = vmatpush1.msra.mxu0 0.0
    %3388 = vmatprep.subr.mxu0 0.0
    %3389 = vmatpush1.msra.mxu0 0.0
    %3390 = vmatprep.subr.mxu0 0.0
    %3391 = vmatpush1.msra.mxu0 0.0
    %3392 = vmatprep.subr.mxu0 0.0
    %3393 = vmatpush1.msra.mxu0 0.0
    %3394 = vmatprep.subr.mxu0 0.0
    %3395 = vmatpush1.msra.mxu0 0.0
    %3396 = vmatprep.subr.mxu0 0.0
    %3397 = vmatpush1.msra.mxu0 0.0
    %3398 = vmatprep.mubr.f32.mxu0 0.0
    %3399 = vmatmul.mubr.f32.gmra.mrb[0].mxu0 %v3249
    %v3400 = vpop.f32.mrb[0].mxu0
    %v3401 = vadd.f32 0.0, %v3400
    %v3402 = vpop.f32.mrb[0].mxu0
    %v3403 = vadd.f32 0.0, %v3402
    %3404 = vdwg.mxu0
    %v3405 = vadd.f32 %v3226, %v3330
    %v3406 = vadd.f32 %v3227, %v3332
    %v3407 = vadd.f32 %v3228, %v3401
    %v3408 = vadd.f32 %v3229, %v3403
    %v3409 = vld [vmem:[%s4] sm:$0xf]
    %3411 = vset.pattern.permute.xlu0 0
    %3412 = vperm.xlu0 %3411, %v3409
    %v3413 = vpop.permute.xlu0 %3412
    %v3415 = vadd.f32 %v3405, %v3413
    %v3416 = vadd.f32 %v3406, %v3413
    %v3417 = vadd.f32 %v3407, %v3413
    %v3418 = vadd.f32 %v3408, %v3413
    %v3419 = vmax.f32 %v3415, 0.0
    %v3420 = vmax.f32 %v3416, 0.0
    %v3421 = vmax.f32 %v3417, 0.0
    %v3422 = vmax.f32 %v3418, 0.0
    %v3423 = vmul.f32 %v3419, 2.0
    %v3424 = vmul.f32 %v3420, 2.0
    %v3425 = vmul.f32 %v3421, 2.0
    %v3426 = vmul.f32 %v3422, 2.0
    %v3427 = vadd.f32 %v3423, %v24
    %v3428 = vadd.f32 %v3424, %v43
    %v3429 = vadd.f32 %v3425, %v25
    %v3430 = vadd.f32 %v3426, %v44
    %v3435 = vcombine.low %v3427, %v3428
    %v3436 = vcombine.low %v3429, %v3430
    %3439 = vst [vmem:[#allocation2] sm:$0xff] %v3435
    %3440 = vst [vmem:[#allocation2 + $0x8] sm:$0xff] %v3436
    // Predicated region
    $region26: #{tpu_custom_call.1} parent=1 // pred_check
      _
    $region27: #{tpu_custom_call.1} parent=1 // pred_check_branch
      %3442 = sbr.rel (0) target = $region29
    $region28: #{tpu_custom_call.1} parent=1 // pred_region
      %s3444 = ssub.s32 256, 256
      %3445 = vsyncadd [#allocation3], %s3444
      %s3447 = sshll.u32 [#allocation2], 4
      %s3448 = int_to_ptr.vmem [resolvable:$true] %s3447
      %3450 = dma.vmem_to_hbm [thread:$0]  %s3448, 256, %s6, [#allocation3]
    $region29: #{tpu_custom_call.1} parent=1 // pred_fallthru
      _
    // Predicated region
    $region30: #{tpu_custom_call.1} parent=1 // pred_check
      _
    $region31: #{tpu_custom_call.1} parent=1 // pred_check_branch
      %3452 = sbr.rel (0) target = $region33
    $region32: #{tpu_custom_call.1} parent=1 // pred_region
      %3453 = dma.done [#allocation3], 256
    $region33: #{tpu_custom_call.1} parent=1 // pred_fallthru
      _
    %3454 = vsyncpa [#allocation3], 1

</llo_original>
